<compile_context>
chip_gen: v6e
topology: v6e:2x2x1
jax: 0.10.0
libtpu: 0.0.40
codegen_flags: <defaults>
</compile_context>

<pallas_src>
import functools

import numpy as np
import jax
import jax.numpy as jnp
from jax.experimental import pallas as pl
from jax.experimental.pallas import tpu as pltpu

# ---- fixed hyper-params implied by Net.__init__ (w=h=28, 1 channel) ----
IN_C, OUT_C = 1, 1
H = W = 28
KS, STRIDE = 3, 2
OH = OW = (H - KS) // STRIDE + 1        # 13
NPIX = OH * OW                          # 169
POOL = 3                                # MaxPool2d(kernel_size=3) -> stride 3
PH = PW = (OH - POOL) // POOL + 1       # 4
FLAT = OUT_C * PH * PW                  # 16 (matches Linear(16, 10))
NUM_CLASSES = 10
XDIM = H * W                            # 784 raw pixels per sample
XPAD = 896                              # 784 -> next multiple of 128
NPIX_PAD = 256                          # 169 -> next multiple of 128
OUT_PAD = 128                           # lane-dense output / hidden width
BN_EPS = 1e-5
TAU = 2.0
V_TH = 1.0
LIF_THR = TAU * V_TH                    # spike iff pre-activation >= 2.0


def _round_up(x, m):
    return (x + m - 1) // m * m


def _cdiv(a, b):
    return (a + b - 1) // b


# ---------------- Pallas kernels ----------------

def _conv_stats_kernel(x_ref, s_ref, conv_ref, stat_ref):
    """Pass 1: conv as one MXU matmul (x @ S) + per-tile sum / sum-of-squares.

    x_ref:    (TN, 896)  bf16 VMEM   (raw pixels, lane-padded)
    s_ref:    (896, 256) bf16 VMEM   (constant weight-scatter matrix)
    conv_ref: (TN, 256)  bf16 VMEM   (cached conv map, reused by pass 2)
    stat_ref: (8, 256)   f32  VMEM   (row 0 = sum, row 1 = sum of squares)
    """
    conv = jnp.dot(x_ref[...], s_ref[...], preferred_element_type=jnp.float32)
    conv_ref[...] = conv.astype(conv_ref.dtype)
    stat_ref[0:1, :] = jnp.sum(conv, axis=0, keepdims=True)
    stat_ref[1:2, :] = jnp.sum(conv * conv, axis=0, keepdims=True)


def _fused_forward_kernel(conv_ref, bn_ref, pool_ref, lin_ref, thr_ref, out_ref):
    """Pass 2 (fused): cached conv -> BN affine -> LIF -> maxpool -> linear -> LIF."""
    conv = conv_ref[...].astype(jnp.float32)                  # (TN, 256)
    # BatchNorm folded to (scale, shift) SMEM scalars, LIF1 threshold folded.
    spikes1 = (conv * bn_ref[0] + bn_ref[1] >= LIF_THR).astype(jnp.float32)
    # 3x3 / stride-3 max-pool of BINARY spikes == (window sum >= 1); window sum
    # is one matmul with a constant 0/1 selection matrix (256 -> 128 lanes,
    # padded lanes/rows are zero).  Pure MXU, no reshape / strided slice.
    pooled = (jnp.dot(spikes1, pool_ref[...],
                      preferred_element_type=jnp.float32) >= 0.5)
    pooled = pooled.astype(jnp.float32)                       # (TN, 128)
    # Linear(16,10): bias folded into per-class LIF2 thresholds; lane-padded.
    logits = jnp.dot(pooled, lin_ref[...],
                     preferred_element_type=jnp.float32)      # (TN, 128)
    out_ref[...] = (logits >= thr_ref[...]).astype(out_ref.dtype)


# ---------------- host-side constant / glue helpers ----------------

def _conv_scatter_matrix(conv_w):
    """(1,1,3,3) weights -> (896, 256) bf16 scatter matrix S.

    Column p (< 169) of S has the 9 conv weights placed at the raw-pixel rows of
    output pixel p's 3x3/stride-2 receptive field, so conv = x_flat @ S.
    Padded rows / columns are zero, so lane/row padding contributes nothing.
    """
    w_flat = conv_w.reshape(KS * KS).astype(jnp.float32)
    rows, cols, taps = [], [], []
    for k in range(KS * KS):
        kh, kw = divmod(k, KS)
        for p in range(NPIX):
            ph, pw = divmod(p, OW)
            rows.append((STRIDE * ph + kh) * W + (STRIDE * pw + kw))
            cols.append(p)
            taps.append(k)
    s = jnp.zeros((XPAD, NPIX_PAD), jnp.float32)
    s = s.at[np.asarray(rows), np.asarray(cols)].set(w_flat[np.asarray(taps)])
    return s.astype(jnp.bfloat16)


def _pool_selection_matrix():
    """(256, 128) 0/1 matrix: column p sums the 3x3 window of pool cell p."""
    p = np.zeros((NPIX_PAD, OUT_PAD), np.float32)
    for ph in range(PH):
        for pw in range(PW):
            for dh in range(POOL):
                for dw in range(POOL):
                    p[(POOL * ph + dh) * OW + (POOL * pw + dw), ph * PW + pw] = 1.0
    return jnp.asarray(p)


def _padded_linear(lin_wT, lin_b):
    """Pad Linear(16,10) weights to (128,128); fold bias + LIF2 into thresholds."""
    wpad = jnp.zeros((OUT_PAD, OUT_PAD), jnp.float32)
    wpad = wpad.at[:FLAT, :NUM_CLASSES].set(lin_wT.astype(jnp.float32))
    thr = jnp.full((1, OUT_PAD), 1e30, jnp.float32)            # padded lanes never fire
    thr = thr.at[0, :NUM_CLASSES].set(LIF_THR - lin_b.astype(jnp.float32))
    return wpad, thr


# ---------------- forward ----------------

def net_forward(x_nchw, params, *, tile_n=512):
    conv_w, gamma, beta, lin_wT, lin_b = params
    N = x_nchw.shape[0]
    x = x_nchw[:, 0].reshape(N, XDIM)                          # (N, 784) f32

    # Batch tiling: balanced tiles (no full extra tile of padding for awkward
    # N), and >= 2 grid steps when possible so v7x's two TensorCores both work.
    tile_n = max(8, min(int(tile_n), _round_up(N, 8)))
    num_tiles = _cdiv(N, tile_n)
    if num_tiles == 1 and N > 8:
        num_tiles = 2
    tile_n = _round_up(_cdiv(N, num_tiles), 8)
    n_pad = num_tiles * tile_n

    # bf16 activation stream (halves HBM traffic); zero row/lane padding.
    x = jnp.pad(x, ((0, n_pad - N), (0, XPAD - XDIM))).astype(jnp.bfloat16)

    s_mat = _conv_scatter_matrix(conv_w)                       # (896, 256) bf16
    pool_mat = _pool_selection_matrix()                        # (256, 128) const
    wpad, thr = _padded_linear(lin_wT, lin_b)                  # (128,128), (1,128)

    # VMEM per step stays small (pass-2 input is the compact conv cache), so a
    # 32 MiB scoped budget covers tile_n up to a few thousand on every gen.
    cparams = pltpu.CompilerParams(
        dimension_semantics=("parallel",),                     # megacore on v7x
        vmem_limit_bytes=32 * 1024 * 1024,
    )
    smem_spec = pl.BlockSpec(memory_space=pltpu.MemorySpace.SMEM)

    # ---- pass 1: conv (one MXU matmul) + conv cache + per-tile BN statistics ----
    conv_cache, stats = pl.pallas_call(
        _conv_stats_kernel,
        out_shape=(
            jax.ShapeDtypeStruct((n_pad, NPIX_PAD), jnp.bfloat16),
            jax.ShapeDtypeStruct((num_tiles, 8, NPIX_PAD), jnp.float32),
        ),
        grid=(num_tiles,),
        in_specs=[
            pl.BlockSpec((tile_n, XPAD), lambda i: (i, 0)),        # raw pixels
            pl.BlockSpec((XPAD, NPIX_PAD), lambda i: (0, 0)),      # constant S
        ],
        out_specs=(
            pl.BlockSpec((tile_n, NPIX_PAD), lambda i: (i, 0)),    # conv cache
            pl.BlockSpec((None, 8, NPIX_PAD), lambda i: (i, 0, 0)),  # stats
        ),
        compiler_params=cparams,
    )(x, s_mat)

    # Fold BN (training-mode batch stats) into a single (scale, shift) affine.
    totals = jnp.sum(stats[:, 0:2, :], axis=(0, 2))            # [sum, sum_sq]
    cnt = jnp.float32(N * NPIX)
    mean = totals[0] / cnt
    var = jnp.maximum(totals[1] / cnt - mean * mean, 0.0)      # biased var (train)
    inv = jax.lax.rsqrt(var + BN_EPS)
    scale = gamma.reshape(()).astype(jnp.float32) * inv
    shift = beta.reshape(()).astype(jnp.float32) - scale * mean
    bn_params = jnp.stack([scale, shift])                      # (2,) -> SMEM

    # ---- pass 2: fused BN affine -> LIF -> maxpool -> linear -> LIF ----
    out_pad = pl.pallas_call(
        _fused_forward_kernel,
        out_shape=jax.ShapeDtypeStruct((n_pad, OUT_PAD), jnp.bfloat16),
        grid=(num_tiles,),
        in_specs=[
            pl.BlockSpec((tile_n, NPIX_PAD), lambda i: (i, 0)),    # cached conv
            smem_spec,                                             # BN scale/shift
            pl.BlockSpec((NPIX_PAD, OUT_PAD), lambda i: (0, 0)),   # pool matrix
            pl.BlockSpec((OUT_PAD, OUT_PAD), lambda i: (0, 0)),    # padded linear W
            pl.BlockSpec((1, OUT_PAD), lambda i: (0, 0)),          # folded thresholds
        ],
        out_specs=pl.BlockSpec((tile_n, OUT_PAD), lambda i: (i, 0)),
        compiler_params=cparams,
    )(conv_cache, bn_params, pool_mat, wpad, thr)

    return out_pad[:N, :NUM_CLASSES].astype(jnp.float32)


# ---------------- pure-JAX reference (sanity check) ----------------

def net_forward_ref(x_nchw, params):
    conv_w, gamma, beta, lin_wT, lin_b = params
    y = jax.lax.conv_general_dilated(
        x_nchw, conv_w, window_strides=(STRIDE, STRIDE), padding="VALID",
        dimension_numbers=("NCHW", "OIHW", "NCHW"))
    mean = jnp.mean(y, axis=(0, 2, 3), keepdims=True)
    var = jnp.mean((y - mean) ** 2, axis=(0, 2, 3), keepdims=True)
    y = (y - mean) * jax.lax.rsqrt(var + BN_EPS) \
        * gamma.reshape(1, -1, 1, 1) + beta.reshape(1, -1, 1, 1)
    s1 = (y >= LIF_THR).astype(jnp.float32)                    # LIF: x/tau >= v_th
    p = jax.lax.reduce_window(s1, -jnp.inf, jax.lax.max,
                              (1, 1, POOL, POOL), (1, 1, POOL, POOL), "VALID")
    flat = p.reshape(p.shape[0], -1)
    logits = flat @ lin_wT + lin_b.reshape(1, -1)
    return (logits >= LIF_THR).astype(jnp.float32)


if __name__ == "__main__":
    key = jax.random.PRNGKey(0)
    k1, k2, k3, k4 = jax.random.split(key, 4)

    # Deterministic parameter init (shapes from Net.__init__).
    conv_w = jax.random.normal(k1, (OUT_C, IN_C, KS, KS), jnp.float32) * (1.0 / KS)
    gamma = jnp.full((OUT_C,), 1.5, jnp.float32)               # BN weight
    beta = jnp.full((OUT_C,), 0.75, jnp.float32)               # BN bias
    lin_w = jax.random.normal(k2, (NUM_CLASSES, FLAT), jnp.float32) * 0.25
    lin_b = jax.random.normal(k3, (NUM_CLASSES,), jnp.float32) * 0.1
    params = (conv_w, gamma, beta, lin_w.T, lin_b)

    # Small batch; tile_n=8 -> a 2-step batch grid actually gets exercised.
    N = 16
    x = jax.random.normal(k4, (N, IN_C, H, W), jnp.float32)

    fwd = jax.jit(functools.partial(net_forward, tile_n=8))
    out = jax.block_until_ready(fwd(x, params))

    ref = net_forward_ref(x, params)
    assert out.shape == (N, NUM_CLASSES) and out.dtype == jnp.float32
    # Outputs are thresholded spikes; bf16 activation streaming and different
    # (valid) reduction orders for the BN statistics can flip values sitting
    # exactly at threshold, so use a Hamming tolerance rather than equality.
    mismatch = float(np.mean(np.asarray(out) != np.asarray(ref)))
    assert mismatch <= 0.05, f"spike mismatch fraction too high: {mismatch}"

    print("KERNEL_OK")
</pallas_src>

<mosaic_0001>
module attributes {stable_mosaic.version = 11 : i64} {
  func.func @_conv_stats_kernel(%arg0: i32, %arg1: memref<8x896xbf16, #tpu.memory_space<vmem>>, %arg2: memref<896x256xbf16, #tpu.memory_space<vmem>>, %arg3: memref<8x256xbf16, #tpu.memory_space<vmem>>, %arg4: memref<1x8x256xf32, #tpu.memory_space<vmem>>) attributes {dimension_semantics = [#tpu.dimension_semantics<parallel>], iteration_bounds = array<i64: 2>, scalar_prefetch = 0 : i64, scratch_operands = 0 : i64, tpu.core_type = #tpu.core_type<tc>, window_params = [{transform_indices = @transform_0, window_bounds = array<i64: 8, 896>}, {pipeline_mode = #tpu.pipeline_mode<synchronous>, transform_indices = @transform_1, window_bounds = array<i64: 896, 256>}, {transform_indices = @transform_2, window_bounds = array<i64: 8, 256>}, {transform_indices = @transform_3, window_bounds = array<i64: 1, 8, 256>}]} {
    %c0 = arith.constant 0 : index
    %c0_0 = arith.constant 0 : index
    %0 = vector.load %arg1[%c0, %c0_0] : memref<8x896xbf16, #tpu.memory_space<vmem>>, vector<8x896xbf16>
    %c0_1 = arith.constant 0 : index
    %c0_2 = arith.constant 0 : index
    %1 = vector.load %arg2[%c0_1, %c0_2] : memref<896x256xbf16, #tpu.memory_space<vmem>>, vector<896x256xbf16>
    %cst = arith.constant dense<0.000000e+00> : vector<8x256xf32>
    %2 = tpu.matmul %0, %1, %cst {dimension_numbers = #tpu.dot_dimension_numbers<[1], [0], [0], [1], [0, 0, 1, 1], [], []>} : vector<8x896xbf16>, vector<896x256xbf16>, vector<8x256xf32> -> vector<8x256xf32>
    %3 = arith.truncf %2 : vector<8x256xf32> to vector<8x256xbf16>
    %c0_3 = arith.constant 0 : index
    %c0_4 = arith.constant 0 : index
    %4 = vector.load %arg3[%c0_3, %c0_4] : memref<8x256xbf16, #tpu.memory_space<vmem>>, vector<8x256xbf16>
    tpu.vector_store %arg3[%c0_3, %c0_4], %3 {strides = array<i32>} : memref<8x256xbf16, #tpu.memory_space<vmem>>, vector<8x256xbf16>,
    %cst_5 = arith.constant dense<0.000000e+00> : vector<256xf32>
    %5 = vector.multi_reduction <add>, %2, %cst_5 [0] : vector<8x256xf32> to vector<256xf32>
    %6 = vector.shape_cast %5 : vector<256xf32> to vector<1x256xf32>
    %c0_6 = arith.constant 0 : index
    %c0_7 = arith.constant 0 : index
    %c0_8 = arith.constant 0 : index
    %7 = vector.load %arg4[%c0_6, %c0_7, %c0_8] : memref<1x8x256xf32, #tpu.memory_space<vmem>>, vector<1x1x256xf32>
    %8 = vector.shape_cast %7 : vector<1x1x256xf32> to vector<1x256xf32>
    %9 = vector.shape_cast %6 : vector<1x256xf32> to vector<1x1x256xf32>
    tpu.vector_store %arg4[%c0_6, %c0_7, %c0_8], %9 {strides = array<i32>} : memref<1x8x256xf32, #tpu.memory_space<vmem>>, vector<1x1x256xf32>,
    %10 = arith.mulf %2, %2 : vector<8x256xf32>
    %cst_9 = arith.constant dense<0.000000e+00> : vector<256xf32>
    %11 = vector.multi_reduction <add>, %10, %cst_9 [0] : vector<8x256xf32> to vector<256xf32>
    %12 = vector.shape_cast %11 : vector<256xf32> to vector<1x256xf32>
    %c0_10 = arith.constant 0 : index
    %c1 = arith.constant 1 : index
    %c0_11 = arith.constant 0 : index
    %13 = vector.load %arg4[%c0_10, %c1, %c0_11] : memref<1x8x256xf32, #tpu.memory_space<vmem>>, vector<1x1x256xf32>
    %14 = vector.shape_cast %13 : vector<1x1x256xf32> to vector<1x256xf32>
    %15 = vector.shape_cast %12 : vector<1x256xf32> to vector<1x1x256xf32>
    tpu.vector_store %arg4[%c0_10, %c1, %c0_11], %15 {strides = array<i32>} : memref<1x8x256xf32, #tpu.memory_space<vmem>>, vector<1x1x256xf32>,
    return
  }
  func.func @transform_0(%arg0: i32) -> (i32, i32) {
    %c0_i32 = arith.constant 0 : i32
    %c0_i32_0 = arith.constant 0 : i32
    return %arg0, %c0_i32 : i32, i32
  }
  func.func @transform_1(%arg0: i32) -> (i32, i32) {
    %c0_i32 = arith.constant 0 : i32
    %c0_i32_0 = arith.constant 0 : i32
    %c0_i32_1 = arith.constant 0 : i32
    return %c0_i32, %c0_i32_0 : i32, i32
  }
  func.func @transform_2(%arg0: i32) -> (i32, i32) {
    %c0_i32 = arith.constant 0 : i32
    %c0_i32_0 = arith.constant 0 : i32
    return %arg0, %c0_i32 : i32, i32
  }
  func.func @transform_3(%arg0: i32) -> (i32, i32, i32) {
    %c0_i32 = arith.constant 0 : i32
    %c0_i32_0 = arith.constant 0 : i32
    %c0_i32_1 = arith.constant 0 : i32
    return %arg0, %c0_i32, %c0_i32_0 : i32, i32, i32
  }
}

module attributes {stable_mosaic.version = 11 : i64} {
  func.func @_fused_forward_kernel(%arg0: i32, %arg1: memref<8x256xbf16, #tpu.memory_space<vmem>>, %arg2: memref<2xf32, #tpu.memory_space<smem>>, %arg3: memref<256x128xf32, #tpu.memory_space<vmem>>, %arg4: memref<128x128xf32, #tpu.memory_space<vmem>>, %arg5: memref<1x128xf32, #tpu.memory_space<vmem>>, %arg6: memref<8x128xbf16, #tpu.memory_space<vmem>>) attributes {dimension_semantics = [#tpu.dimension_semantics<parallel>], iteration_bounds = array<i64: 2>, scalar_prefetch = 0 : i64, scratch_operands = 0 : i64, tpu.core_type = #tpu.core_type<tc>, window_params = [{transform_indices = @transform_0, window_bounds = array<i64: 8, 256>}, {transform_indices = @transform_1, window_bounds = array<i64: 2>}, {pipeline_mode = #tpu.pipeline_mode<synchronous>, transform_indices = @transform_2, window_bounds = array<i64: 256, 128>}, {pipeline_mode = #tpu.pipeline_mode<synchronous>, transform_indices = @transform_3, window_bounds = array<i64: 128, 128>}, {pipeline_mode = #tpu.pipeline_mode<synchronous>, transform_indices = @transform_4, window_bounds = array<i64: 1, 128>}, {transform_indices = @transform_5, window_bounds = array<i64: 8, 128>}]} {
    %c0 = arith.constant 0 : index
    %c0_0 = arith.constant 0 : index
    %0 = vector.load %arg1[%c0, %c0_0] : memref<8x256xbf16, #tpu.memory_space<vmem>>, vector<8x256xbf16>
    %1 = arith.extf %0 : vector<8x256xbf16> to vector<8x256xf32>
    %c0_1 = arith.constant 0 : index
    %2 = memref.load %arg2[%c0_1] : memref<2xf32, #tpu.memory_space<smem>>
    %3 = vector.broadcast %2 : f32 to vector<8x256xf32>
    %4 = arith.mulf %1, %3 : vector<8x256xf32>
    %c1 = arith.constant 1 : index
    %5 = memref.load %arg2[%c1] : memref<2xf32, #tpu.memory_space<smem>>
    %6 = vector.broadcast %5 : f32 to vector<8x256xf32>
    %7 = arith.addf %4, %6 : vector<8x256xf32>
    %cst = arith.constant 2.000000e+00 : f32
    %8 = vector.broadcast %cst : f32 to vector<8x256xf32>
    %9 = arith.cmpf oge, %7, %8 : vector<8x256xf32>
    %10 = arith.extui %9 : vector<8x256xi1> to vector<8x256xi32>
    %11 = arith.sitofp %10 : vector<8x256xi32> to vector<8x256xf32>
    %c0_2 = arith.constant 0 : index
    %c0_3 = arith.constant 0 : index
    %12 = vector.load %arg3[%c0_2, %c0_3] : memref<256x128xf32, #tpu.memory_space<vmem>>, vector<256x128xf32>
    %cst_4 = arith.constant dense<0.000000e+00> : vector<8x128xf32>
    %13 = tpu.matmul %11, %12, %cst_4 {dimension_numbers = #tpu.dot_dimension_numbers<[1], [0], [0], [1], [0, 0, 1, 1], [], []>} : vector<8x256xf32>, vector<256x128xf32>, vector<8x128xf32> -> vector<8x128xf32>
    %cst_5 = arith.constant 5.000000e-01 : f32
    %14 = vector.broadcast %cst_5 : f32 to vector<8x128xf32>
    %15 = arith.cmpf oge, %13, %14 : vector<8x128xf32>
    %16 = arith.extui %15 : vector<8x128xi1> to vector<8x128xi32>
    %17 = arith.sitofp %16 : vector<8x128xi32> to vector<8x128xf32>
    %c0_6 = arith.constant 0 : index
    %c0_7 = arith.constant 0 : index
    %18 = vector.load %arg4[%c0_6, %c0_7] : memref<128x128xf32, #tpu.memory_space<vmem>>, vector<128x128xf32>
    %cst_8 = arith.constant dense<0.000000e+00> : vector<8x128xf32>
    %19 = tpu.matmul %17, %18, %cst_8 {dimension_numbers = #tpu.dot_dimension_numbers<[1], [0], [0], [1], [0, 0, 1, 1], [], []>} : vector<8x128xf32>, vector<128x128xf32>, vector<8x128xf32> -> vector<8x128xf32>
    %c0_9 = arith.constant 0 : index
    %c0_10 = arith.constant 0 : index
    %20 = vector.load %arg5[%c0_9, %c0_10] : memref<1x128xf32, #tpu.memory_space<vmem>>, vector<1x128xf32>
    %21 = vector.broadcast %20 : vector<1x128xf32> to vector<8x128xf32>
    %22 = arith.cmpf oge, %19, %21 : vector<8x128xf32>
    %23 = arith.extui %22 : vector<8x128xi1> to vector<8x128xi32>
    %24 = arith.sitofp %23 : vector<8x128xi32> to vector<8x128xf32>
    %25 = arith.truncf %24 : vector<8x128xf32> to vector<8x128xbf16>
    %c0_11 = arith.constant 0 : index
    %c0_12 = arith.constant 0 : index
    %26 = vector.load %arg6[%c0_11, %c0_12] : memref<8x128xbf16, #tpu.memory_space<vmem>>, vector<8x128xbf16>
    tpu.vector_store %arg6[%c0_11, %c0_12], %25 {strides = array<i32>} : memref<8x128xbf16, #tpu.memory_space<vmem>>, vector<8x128xbf16>,
    return
  }
  func.func @transform_0(%arg0: i32) -> (i32, i32) {
    %c0_i32 = arith.constant 0 : i32
    %c0_i32_0 = arith.constant 0 : i32
    return %arg0, %c0_i32 : i32, i32
  }
  func.func @transform_1(%arg0: i32) -> i32 {
    %c0_i32 = arith.constant 0 : i32
    %c0_i32_0 = arith.constant 0 : i32
    return %c0_i32 : i32
  }
  func.func @transform_2(%arg0: i32) -> (i32, i32) {
    %c0_i32 = arith.constant 0 : i32
    %c0_i32_0 = arith.constant 0 : i32
    %c0_i32_1 = arith.constant 0 : i32
    return %c0_i32, %c0_i32_0 : i32, i32
  }
  func.func @transform_3(%arg0: i32) -> (i32, i32) {
    %c0_i32 = arith.constant 0 : i32
    %c0_i32_0 = arith.constant 0 : i32
    %c0_i32_1 = arith.constant 0 : i32
    return %c0_i32, %c0_i32_0 : i32, i32
  }
  func.func @transform_4(%arg0: i32) -> (i32, i32) {
    %c0_i32 = arith.constant 0 : i32
    %c0_i32_0 = arith.constant 0 : i32
    %c0_i32_1 = arith.constant 0 : i32
    return %c0_i32, %c0_i32_0 : i32, i32
  }
  func.func @transform_5(%arg0: i32) -> (i32, i32) {
    %c0_i32 = arith.constant 0 : i32
    %c0_i32_0 = arith.constant 0 : i32
    return %arg0, %c0_i32 : i32, i32
  }
}

</mosaic_0001>

<llo_original>
// kernel: squeeze.0
$region0: #{squeeze.0}
  %s0 = inlined_call_operand.vmem [shape: bf16[16,28,28], index: 0, kind: input, shape index: {}]
  %s1 = inlined_call_operand.vmem [shape: bf16[16,784], index: 1, kind: output, shape index: {}]
  $region1: #{squeeze.0} parent=0
    #allocation0 [shape = 'u8[57344]{0}', space=vmem, size = 0xe000, scoped, tag = 'scoped mem for output reshape']
    #allocation1 [shape = 'u8[262144]{0}', space=vmem, size = 0x40000, scoped, tag = 'scoped mem for input reshape']
    %s3 = smul.u32 4, 2
    %s4 = sshll.u32 1, %s3
    %s5 = ssub.s32 %s4, 1
    %s6 = smul.addr 4, 63
    %s7 = scalar_lea.vmem %s0, %s6
    %s8 = sshrl.u32 %s5, 1
    %s9 = sor.u32 %s5, %s8
    %s10 = sand.u32 %s9, 85
    %s11 = sshrl.u32 %s10, 1
    %s12 = sor.u32 %s10, %s11
    %s13 = sand.u32 51, %s12
    %s14 = sshrl.u32 %s13, 2
    %s15 = sor.u32 %s13, %s14
    %s16 = sand.u32 15, %s15
    %v17 = vld [vmem:[%s7] sm:%s16]
    %v18 = vunpack.c.l.bf16 %v17
    %v19 = vunpack.c.h.bf16 %v17
    %s20 = scalar_lea.vmem [#allocation1], 504
    %21 = vst [vmem:[%s20] sm:%s5] %v18
    %s22 = smul.addr 4, 62
    %s23 = scalar_lea.vmem %s0, %s22
    %s24 = sshrl.u32 %s5, 1
    %s25 = sor.u32 %s5, %s24
    %s26 = sand.u32 %s25, 85
    %s27 = sshrl.u32 %s26, 1
    %s28 = sor.u32 %s26, %s27
    %s29 = sand.u32 51, %s28
    %s30 = sshrl.u32 %s29, 2
    %s31 = sor.u32 %s29, %s30
    %s32 = sand.u32 15, %s31
    %v33 = vld [vmem:[%s23] sm:%s32]
    %v34 = vunpack.c.l.bf16 %v33
    %v35 = vunpack.c.h.bf16 %v33
    %s36 = scalar_lea.vmem [#allocation1], 496
    %37 = vst [vmem:[%s36] sm:%s5] %v34
    %s38 = smul.addr 4, 61
    %s39 = scalar_lea.vmem %s0, %s38
    %s40 = sshrl.u32 %s5, 1
    %s41 = sor.u32 %s5, %s40
    %s42 = sand.u32 %s41, 85
    %s43 = sshrl.u32 %s42, 1
    %s44 = sor.u32 %s42, %s43
    %s45 = sand.u32 51, %s44
    %s46 = sshrl.u32 %s45, 2
    %s47 = sor.u32 %s45, %s46
    %s48 = sand.u32 15, %s47
    %v49 = vld [vmem:[%s39] sm:%s48]
    %v50 = vunpack.c.l.bf16 %v49
    %v51 = vunpack.c.h.bf16 %v49
    %s52 = scalar_lea.vmem [#allocation1], 488
    %53 = vst [vmem:[%s52] sm:%s5] %v50
    %s54 = smul.addr 4, 60
    %s55 = scalar_lea.vmem %s0, %s54
    %s56 = sshrl.u32 %s5, 1
    %s57 = sor.u32 %s5, %s56
    %s58 = sand.u32 %s57, 85
    %s59 = sshrl.u32 %s58, 1
    %s60 = sor.u32 %s58, %s59
    %s61 = sand.u32 51, %s60
    %s62 = sshrl.u32 %s61, 2
    %s63 = sor.u32 %s61, %s62
    %s64 = sand.u32 15, %s63
    %v65 = vld [vmem:[%s55] sm:%s64]
    %v66 = vunpack.c.l.bf16 %v65
    %v67 = vunpack.c.h.bf16 %v65
    %s68 = scalar_lea.vmem [#allocation1], 480
    %69 = vst [vmem:[%s68] sm:%s5] %v66
    %s70 = smul.addr 4, 59
    %s71 = scalar_lea.vmem %s0, %s70
    %s72 = sshrl.u32 %s5, 1
    %s73 = sor.u32 %s5, %s72
    %s74 = sand.u32 %s73, 85
    %s75 = sshrl.u32 %s74, 1
    %s76 = sor.u32 %s74, %s75
    %s77 = sand.u32 51, %s76
    %s78 = sshrl.u32 %s77, 2
    %s79 = sor.u32 %s77, %s78
    %s80 = sand.u32 15, %s79
    %v81 = vld [vmem:[%s71] sm:%s80]
    %v82 = vunpack.c.l.bf16 %v81
    %v83 = vunpack.c.h.bf16 %v81
    %s84 = scalar_lea.vmem [#allocation1], 472
    %85 = vst [vmem:[%s84] sm:%s5] %v82
    %s86 = smul.addr 4, 58
    %s87 = scalar_lea.vmem %s0, %s86
    %s88 = sshrl.u32 %s5, 1
    %s89 = sor.u32 %s5, %s88
    %s90 = sand.u32 %s89, 85
    %s91 = sshrl.u32 %s90, 1
    %s92 = sor.u32 %s90, %s91
    %s93 = sand.u32 51, %s92
    %s94 = sshrl.u32 %s93, 2
    %s95 = sor.u32 %s93, %s94
    %s96 = sand.u32 15, %s95
    %v97 = vld [vmem:[%s87] sm:%s96]
    %v98 = vunpack.c.l.bf16 %v97
    %v99 = vunpack.c.h.bf16 %v97
    %s100 = scalar_lea.vmem [#allocation1], 464
    %101 = vst [vmem:[%s100] sm:%s5] %v98
    %s102 = smul.addr 4, 57
    %s103 = scalar_lea.vmem %s0, %s102
    %s104 = sshrl.u32 %s5, 1
    %s105 = sor.u32 %s5, %s104
    %s106 = sand.u32 %s105, 85
    %s107 = sshrl.u32 %s106, 1
    %s108 = sor.u32 %s106, %s107
    %s109 = sand.u32 51, %s108
    %s110 = sshrl.u32 %s109, 2
    %s111 = sor.u32 %s109, %s110
    %s112 = sand.u32 15, %s111
    %v113 = vld [vmem:[%s103] sm:%s112]
    %v114 = vunpack.c.l.bf16 %v113
    %v115 = vunpack.c.h.bf16 %v113
    %s116 = scalar_lea.vmem [#allocation1], 456
    %117 = vst [vmem:[%s116] sm:%s5] %v114
    %s118 = smul.addr 4, 56
    %s119 = scalar_lea.vmem %s0, %s118
    %s120 = sshrl.u32 %s5, 1
    %s121 = sor.u32 %s5, %s120
    %s122 = sand.u32 %s121, 85
    %s123 = sshrl.u32 %s122, 1
    %s124 = sor.u32 %s122, %s123
    %s125 = sand.u32 51, %s124
    %s126 = sshrl.u32 %s125, 2
    %s127 = sor.u32 %s125, %s126
    %s128 = sand.u32 15, %s127
    %v129 = vld [vmem:[%s119] sm:%s128]
    %v130 = vunpack.c.l.bf16 %v129
    %v131 = vunpack.c.h.bf16 %v129
    %s132 = scalar_lea.vmem [#allocation1], 448
    %133 = vst [vmem:[%s132] sm:%s5] %v130
    %s134 = smul.addr 4, 55
    %s135 = scalar_lea.vmem %s0, %s134
    %s136 = sshrl.u32 %s5, 1
    %s137 = sor.u32 %s5, %s136
    %s138 = sand.u32 %s137, 85
    %s139 = sshrl.u32 %s138, 1
    %s140 = sor.u32 %s138, %s139
    %s141 = sand.u32 51, %s140
    %s142 = sshrl.u32 %s141, 2
    %s143 = sor.u32 %s141, %s142
    %s144 = sand.u32 15, %s143
    %v145 = vld [vmem:[%s135] sm:%s144]
    %v146 = vunpack.c.l.bf16 %v145
    %v147 = vunpack.c.h.bf16 %v145
    %s148 = scalar_lea.vmem [#allocation1], 440
    %149 = vst [vmem:[%s148] sm:%s5] %v146
    %s150 = smul.addr 4, 54
    %s151 = scalar_lea.vmem %s0, %s150
    %s152 = sshrl.u32 %s5, 1
    %s153 = sor.u32 %s5, %s152
    %s154 = sand.u32 %s153, 85
    %s155 = sshrl.u32 %s154, 1
    %s156 = sor.u32 %s154, %s155
    %s157 = sand.u32 51, %s156
    %s158 = sshrl.u32 %s157, 2
    %s159 = sor.u32 %s157, %s158
    %s160 = sand.u32 15, %s159
    %v161 = vld [vmem:[%s151] sm:%s160]
    %v162 = vunpack.c.l.bf16 %v161
    %v163 = vunpack.c.h.bf16 %v161
    %s164 = scalar_lea.vmem [#allocation1], 432
    %165 = vst [vmem:[%s164] sm:%s5] %v162
    %s166 = smul.addr 4, 53
    %s167 = scalar_lea.vmem %s0, %s166
    %s168 = sshrl.u32 %s5, 1
    %s169 = sor.u32 %s5, %s168
    %s170 = sand.u32 %s169, 85
    %s171 = sshrl.u32 %s170, 1
    %s172 = sor.u32 %s170, %s171
    %s173 = sand.u32 51, %s172
    %s174 = sshrl.u32 %s173, 2
    %s175 = sor.u32 %s173, %s174
    %s176 = sand.u32 15, %s175
    %v177 = vld [vmem:[%s167] sm:%s176]
    %v178 = vunpack.c.l.bf16 %v177
    %v179 = vunpack.c.h.bf16 %v177
    %s180 = scalar_lea.vmem [#allocation1], 424
    %181 = vst [vmem:[%s180] sm:%s5] %v178
    %s182 = smul.addr 4, 52
    %s183 = scalar_lea.vmem %s0, %s182
    %s184 = sshrl.u32 %s5, 1
    %s185 = sor.u32 %s5, %s184
    %s186 = sand.u32 %s185, 85
    %s187 = sshrl.u32 %s186, 1
    %s188 = sor.u32 %s186, %s187
    %s189 = sand.u32 51, %s188
    %s190 = sshrl.u32 %s189, 2
    %s191 = sor.u32 %s189, %s190
    %s192 = sand.u32 15, %s191
    %v193 = vld [vmem:[%s183] sm:%s192]
    %v194 = vunpack.c.l.bf16 %v193
    %v195 = vunpack.c.h.bf16 %v193
    %s196 = scalar_lea.vmem [#allocation1], 416
    %197 = vst [vmem:[%s196] sm:%s5] %v194
    %s198 = smul.addr 4, 51
    %s199 = scalar_lea.vmem %s0, %s198
    %s200 = sshrl.u32 %s5, 1
    %s201 = sor.u32 %s5, %s200
    %s202 = sand.u32 %s201, 85
    %s203 = sshrl.u32 %s202, 1
    %s204 = sor.u32 %s202, %s203
    %s205 = sand.u32 51, %s204
    %s206 = sshrl.u32 %s205, 2
    %s207 = sor.u32 %s205, %s206
    %s208 = sand.u32 15, %s207
    %v209 = vld [vmem:[%s199] sm:%s208]
    %v210 = vunpack.c.l.bf16 %v209
    %v211 = vunpack.c.h.bf16 %v209
    %s212 = scalar_lea.vmem [#allocation1], 408
    %213 = vst [vmem:[%s212] sm:%s5] %v210
    %s214 = smul.addr 4, 50
    %s215 = scalar_lea.vmem %s0, %s214
    %s216 = sshrl.u32 %s5, 1
    %s217 = sor.u32 %s5, %s216
    %s218 = sand.u32 %s217, 85
    %s219 = sshrl.u32 %s218, 1
    %s220 = sor.u32 %s218, %s219
    %s221 = sand.u32 51, %s220
    %s222 = sshrl.u32 %s221, 2
    %s223 = sor.u32 %s221, %s222
    %s224 = sand.u32 15, %s223
    %v225 = vld [vmem:[%s215] sm:%s224]
    %v226 = vunpack.c.l.bf16 %v225
    %v227 = vunpack.c.h.bf16 %v225
    %s228 = scalar_lea.vmem [#allocation1], 400
    %229 = vst [vmem:[%s228] sm:%s5] %v226
    %s230 = smul.addr 4, 49
    %s231 = scalar_lea.vmem %s0, %s230
    %s232 = sshrl.u32 %s5, 1
    %s233 = sor.u32 %s5, %s232
    %s234 = sand.u32 %s233, 85
    %s235 = sshrl.u32 %s234, 1
    %s236 = sor.u32 %s234, %s235
    %s237 = sand.u32 51, %s236
    %s238 = sshrl.u32 %s237, 2
    %s239 = sor.u32 %s237, %s238
    %s240 = sand.u32 15, %s239
    %v241 = vld [vmem:[%s231] sm:%s240]
    %v242 = vunpack.c.l.bf16 %v241
    %v243 = vunpack.c.h.bf16 %v241
    %s244 = scalar_lea.vmem [#allocation1], 392
    %245 = vst [vmem:[%s244] sm:%s5] %v242
    %s246 = smul.addr 4, 48
    %s247 = scalar_lea.vmem %s0, %s246
    %s248 = sshrl.u32 %s5, 1
    %s249 = sor.u32 %s5, %s248
    %s250 = sand.u32 %s249, 85
    %s251 = sshrl.u32 %s250, 1
    %s252 = sor.u32 %s250, %s251
    %s253 = sand.u32 51, %s252
    %s254 = sshrl.u32 %s253, 2
    %s255 = sor.u32 %s253, %s254
    %s256 = sand.u32 15, %s255
    %v257 = vld [vmem:[%s247] sm:%s256]
    %v258 = vunpack.c.l.bf16 %v257
    %v259 = vunpack.c.h.bf16 %v257
    %s260 = scalar_lea.vmem [#allocation1], 384
    %261 = vst [vmem:[%s260] sm:%s5] %v258
    %s262 = smul.addr 4, 47
    %s263 = scalar_lea.vmem %s0, %s262
    %s264 = sshrl.u32 %s5, 1
    %s265 = sor.u32 %s5, %s264
    %s266 = sand.u32 %s265, 85
    %s267 = sshrl.u32 %s266, 1
    %s268 = sor.u32 %s266, %s267
    %s269 = sand.u32 51, %s268
    %s270 = sshrl.u32 %s269, 2
    %s271 = sor.u32 %s269, %s270
    %s272 = sand.u32 15, %s271
    %v273 = vld [vmem:[%s263] sm:%s272]
    %v274 = vunpack.c.l.bf16 %v273
    %v275 = vunpack.c.h.bf16 %v273
    %s276 = scalar_lea.vmem [#allocation1], 376
    %277 = vst [vmem:[%s276] sm:%s5] %v274
    %s278 = smul.addr 4, 46
    %s279 = scalar_lea.vmem %s0, %s278
    %s280 = sshrl.u32 %s5, 1
    %s281 = sor.u32 %s5, %s280
    %s282 = sand.u32 %s281, 85
    %s283 = sshrl.u32 %s282, 1
    %s284 = sor.u32 %s282, %s283
    %s285 = sand.u32 51, %s284
    %s286 = sshrl.u32 %s285, 2
    %s287 = sor.u32 %s285, %s286
    %s288 = sand.u32 15, %s287
    %v289 = vld [vmem:[%s279] sm:%s288]
    %v290 = vunpack.c.l.bf16 %v289
    %v291 = vunpack.c.h.bf16 %v289
    %s292 = scalar_lea.vmem [#allocation1], 368
    %293 = vst [vmem:[%s292] sm:%s5] %v290
    %s294 = smul.addr 4, 45
    %s295 = scalar_lea.vmem %s0, %s294
    %s296 = sshrl.u32 %s5, 1
    %s297 = sor.u32 %s5, %s296
    %s298 = sand.u32 %s297, 85
    %s299 = sshrl.u32 %s298, 1
    %s300 = sor.u32 %s298, %s299
    %s301 = sand.u32 51, %s300
    %s302 = sshrl.u32 %s301, 2
    %s303 = sor.u32 %s301, %s302
    %s304 = sand.u32 15, %s303
    %v305 = vld [vmem:[%s295] sm:%s304]
    %v306 = vunpack.c.l.bf16 %v305
    %v307 = vunpack.c.h.bf16 %v305
    %s308 = scalar_lea.vmem [#allocation1], 360
    %309 = vst [vmem:[%s308] sm:%s5] %v306
    %s310 = smul.addr 4, 44
    %s311 = scalar_lea.vmem %s0, %s310
    %s312 = sshrl.u32 %s5, 1
    %s313 = sor.u32 %s5, %s312
    %s314 = sand.u32 %s313, 85
    %s315 = sshrl.u32 %s314, 1
    %s316 = sor.u32 %s314, %s315
    %s317 = sand.u32 51, %s316
    %s318 = sshrl.u32 %s317, 2
    %s319 = sor.u32 %s317, %s318
    %s320 = sand.u32 15, %s319
    %v321 = vld [vmem:[%s311] sm:%s320]
    %v322 = vunpack.c.l.bf16 %v321
    %v323 = vunpack.c.h.bf16 %v321
    %s324 = scalar_lea.vmem [#allocation1], 352
    %325 = vst [vmem:[%s324] sm:%s5] %v322
    %s326 = smul.addr 4, 43
    %s327 = scalar_lea.vmem %s0, %s326
    %s328 = sshrl.u32 %s5, 1
    %s329 = sor.u32 %s5, %s328
    %s330 = sand.u32 %s329, 85
    %s331 = sshrl.u32 %s330, 1
    %s332 = sor.u32 %s330, %s331
    %s333 = sand.u32 51, %s332
    %s334 = sshrl.u32 %s333, 2
    %s335 = sor.u32 %s333, %s334
    %s336 = sand.u32 15, %s335
    %v337 = vld [vmem:[%s327] sm:%s336]
    %v338 = vunpack.c.l.bf16 %v337
    %v339 = vunpack.c.h.bf16 %v337
    %s340 = scalar_lea.vmem [#allocation1], 344
    %341 = vst [vmem:[%s340] sm:%s5] %v338
    %s342 = smul.addr 4, 42
    %s343 = scalar_lea.vmem %s0, %s342
    %s344 = sshrl.u32 %s5, 1
    %s345 = sor.u32 %s5, %s344
    %s346 = sand.u32 %s345, 85
    %s347 = sshrl.u32 %s346, 1
    %s348 = sor.u32 %s346, %s347
    %s349 = sand.u32 51, %s348
    %s350 = sshrl.u32 %s349, 2
    %s351 = sor.u32 %s349, %s350
    %s352 = sand.u32 15, %s351
    %v353 = vld [vmem:[%s343] sm:%s352]
    %v354 = vunpack.c.l.bf16 %v353
    %v355 = vunpack.c.h.bf16 %v353
    %s356 = scalar_lea.vmem [#allocation1], 336
    %357 = vst [vmem:[%s356] sm:%s5] %v354
    %s358 = smul.addr 4, 41
    %s359 = scalar_lea.vmem %s0, %s358
    %s360 = sshrl.u32 %s5, 1
    %s361 = sor.u32 %s5, %s360
    %s362 = sand.u32 %s361, 85
    %s363 = sshrl.u32 %s362, 1
    %s364 = sor.u32 %s362, %s363
    %s365 = sand.u32 51, %s364
    %s366 = sshrl.u32 %s365, 2
    %s367 = sor.u32 %s365, %s366
    %s368 = sand.u32 15, %s367
    %v369 = vld [vmem:[%s359] sm:%s368]
    %v370 = vunpack.c.l.bf16 %v369
    %v371 = vunpack.c.h.bf16 %v369
    %s372 = scalar_lea.vmem [#allocation1], 328
    %373 = vst [vmem:[%s372] sm:%s5] %v370
    %s374 = smul.addr 4, 40
    %s375 = scalar_lea.vmem %s0, %s374
    %s376 = sshrl.u32 %s5, 1
    %s377 = sor.u32 %s5, %s376
    %s378 = sand.u32 %s377, 85
    %s379 = sshrl.u32 %s378, 1
    %s380 = sor.u32 %s378, %s379
    %s381 = sand.u32 51, %s380
    %s382 = sshrl.u32 %s381, 2
    %s383 = sor.u32 %s381, %s382
    %s384 = sand.u32 15, %s383
    %v385 = vld [vmem:[%s375] sm:%s384]
    %v386 = vunpack.c.l.bf16 %v385
    %v387 = vunpack.c.h.bf16 %v385
    %s388 = scalar_lea.vmem [#allocation1], 320
    %389 = vst [vmem:[%s388] sm:%s5] %v386
    %s390 = smul.addr 4, 39
    %s391 = scalar_lea.vmem %s0, %s390
    %s392 = sshrl.u32 %s5, 1
    %s393 = sor.u32 %s5, %s392
    %s394 = sand.u32 %s393, 85
    %s395 = sshrl.u32 %s394, 1
    %s396 = sor.u32 %s394, %s395
    %s397 = sand.u32 51, %s396
    %s398 = sshrl.u32 %s397, 2
    %s399 = sor.u32 %s397, %s398
    %s400 = sand.u32 15, %s399
    %v401 = vld [vmem:[%s391] sm:%s400]
    %v402 = vunpack.c.l.bf16 %v401
    %v403 = vunpack.c.h.bf16 %v401
    %s404 = scalar_lea.vmem [#allocation1], 312
    %405 = vst [vmem:[%s404] sm:%s5] %v402
    %s406 = smul.addr 4, 38
    %s407 = scalar_lea.vmem %s0, %s406
    %s408 = sshrl.u32 %s5, 1
    %s409 = sor.u32 %s5, %s408
    %s410 = sand.u32 %s409, 85
    %s411 = sshrl.u32 %s410, 1
    %s412 = sor.u32 %s410, %s411
    %s413 = sand.u32 51, %s412
    %s414 = sshrl.u32 %s413, 2
    %s415 = sor.u32 %s413, %s414
    %s416 = sand.u32 15, %s415
    %v417 = vld [vmem:[%s407] sm:%s416]
    %v418 = vunpack.c.l.bf16 %v417
    %v419 = vunpack.c.h.bf16 %v417
    %s420 = scalar_lea.vmem [#allocation1], 304
    %421 = vst [vmem:[%s420] sm:%s5] %v418
    %s422 = smul.addr 4, 37
    %s423 = scalar_lea.vmem %s0, %s422
    %s424 = sshrl.u32 %s5, 1
    %s425 = sor.u32 %s5, %s424
    %s426 = sand.u32 %s425, 85
    %s427 = sshrl.u32 %s426, 1
    %s428 = sor.u32 %s426, %s427
    %s429 = sand.u32 51, %s428
    %s430 = sshrl.u32 %s429, 2
    %s431 = sor.u32 %s429, %s430
    %s432 = sand.u32 15, %s431
    %v433 = vld [vmem:[%s423] sm:%s432]
    %v434 = vunpack.c.l.bf16 %v433
    %v435 = vunpack.c.h.bf16 %v433
    %s436 = scalar_lea.vmem [#allocation1], 296
    %437 = vst [vmem:[%s436] sm:%s5] %v434
    %s438 = smul.addr 4, 36
    %s439 = scalar_lea.vmem %s0, %s438
    %s440 = sshrl.u32 %s5, 1
    %s441 = sor.u32 %s5, %s440
    %s442 = sand.u32 %s441, 85
    %s443 = sshrl.u32 %s442, 1
    %s444 = sor.u32 %s442, %s443
    %s445 = sand.u32 51, %s444
    %s446 = sshrl.u32 %s445, 2
    %s447 = sor.u32 %s445, %s446
    %s448 = sand.u32 15, %s447
    %v449 = vld [vmem:[%s439] sm:%s448]
    %v450 = vunpack.c.l.bf16 %v449
    %v451 = vunpack.c.h.bf16 %v449
    %s452 = scalar_lea.vmem [#allocation1], 288
    %453 = vst [vmem:[%s452] sm:%s5] %v450
    %s454 = smul.addr 4, 35
    %s455 = scalar_lea.vmem %s0, %s454
    %s456 = sshrl.u32 %s5, 1
    %s457 = sor.u32 %s5, %s456
    %s458 = sand.u32 %s457, 85
    %s459 = sshrl.u32 %s458, 1
    %s460 = sor.u32 %s458, %s459
    %s461 = sand.u32 51, %s460
    %s462 = sshrl.u32 %s461, 2
    %s463 = sor.u32 %s461, %s462
    %s464 = sand.u32 15, %s463
    %v465 = vld [vmem:[%s455] sm:%s464]
    %v466 = vunpack.c.l.bf16 %v465
    %v467 = vunpack.c.h.bf16 %v465
    %s468 = scalar_lea.vmem [#allocation1], 280
    %469 = vst [vmem:[%s468] sm:%s5] %v466
    %s470 = smul.addr 4, 34
    %s471 = scalar_lea.vmem %s0, %s470
    %s472 = sshrl.u32 %s5, 1
    %s473 = sor.u32 %s5, %s472
    %s474 = sand.u32 %s473, 85
    %s475 = sshrl.u32 %s474, 1
    %s476 = sor.u32 %s474, %s475
    %s477 = sand.u32 51, %s476
    %s478 = sshrl.u32 %s477, 2
    %s479 = sor.u32 %s477, %s478
    %s480 = sand.u32 15, %s479
    %v481 = vld [vmem:[%s471] sm:%s480]
    %v482 = vunpack.c.l.bf16 %v481
    %v483 = vunpack.c.h.bf16 %v481
    %s484 = scalar_lea.vmem [#allocation1], 272
    %485 = vst [vmem:[%s484] sm:%s5] %v482
    %s486 = smul.addr 4, 33
    %s487 = scalar_lea.vmem %s0, %s486
    %s488 = sshrl.u32 %s5, 1
    %s489 = sor.u32 %s5, %s488
    %s490 = sand.u32 %s489, 85
    %s491 = sshrl.u32 %s490, 1
    %s492 = sor.u32 %s490, %s491
    %s493 = sand.u32 51, %s492
    %s494 = sshrl.u32 %s493, 2
    %s495 = sor.u32 %s493, %s494
    %s496 = sand.u32 15, %s495
    %v497 = vld [vmem:[%s487] sm:%s496]
    %v498 = vunpack.c.l.bf16 %v497
    %v499 = vunpack.c.h.bf16 %v497
    %s500 = scalar_lea.vmem [#allocation1], 264
    %501 = vst [vmem:[%s500] sm:%s5] %v498
    %s502 = smul.addr 4, 32
    %s503 = scalar_lea.vmem %s0, %s502
    %s504 = sshrl.u32 %s5, 1
    %s505 = sor.u32 %s5, %s504
    %s506 = sand.u32 %s505, 85
    %s507 = sshrl.u32 %s506, 1
    %s508 = sor.u32 %s506, %s507
    %s509 = sand.u32 51, %s508
    %s510 = sshrl.u32 %s509, 2
    %s511 = sor.u32 %s509, %s510
    %s512 = sand.u32 15, %s511
    %v513 = vld [vmem:[%s503] sm:%s512]
    %v514 = vunpack.c.l.bf16 %v513
    %v515 = vunpack.c.h.bf16 %v513
    %s516 = scalar_lea.vmem [#allocation1], 256
    %517 = vst [vmem:[%s516] sm:%s5] %v514
    %s518 = smul.addr 4, 31
    %s519 = scalar_lea.vmem %s0, %s518
    %s520 = sshrl.u32 %s5, 1
    %s521 = sor.u32 %s5, %s520
    %s522 = sand.u32 %s521, 85
    %s523 = sshrl.u32 %s522, 1
    %s524 = sor.u32 %s522, %s523
    %s525 = sand.u32 51, %s524
    %s526 = sshrl.u32 %s525, 2
    %s527 = sor.u32 %s525, %s526
    %s528 = sand.u32 15, %s527
    %v529 = vld [vmem:[%s519] sm:%s528]
    %v530 = vunpack.c.l.bf16 %v529
    %v531 = vunpack.c.h.bf16 %v529
    %s532 = scalar_lea.vmem [#allocation1], 248
    %533 = vst [vmem:[%s532] sm:%s5] %v530
    %s534 = smul.addr 4, 30
    %s535 = scalar_lea.vmem %s0, %s534
    %s536 = sshrl.u32 %s5, 1
    %s537 = sor.u32 %s5, %s536
    %s538 = sand.u32 %s537, 85
    %s539 = sshrl.u32 %s538, 1
    %s540 = sor.u32 %s538, %s539
    %s541 = sand.u32 51, %s540
    %s542 = sshrl.u32 %s541, 2
    %s543 = sor.u32 %s541, %s542
    %s544 = sand.u32 15, %s543
    %v545 = vld [vmem:[%s535] sm:%s544]
    %v546 = vunpack.c.l.bf16 %v545
    %v547 = vunpack.c.h.bf16 %v545
    %s548 = scalar_lea.vmem [#allocation1], 240
    %549 = vst [vmem:[%s548] sm:%s5] %v546
    %s550 = smul.addr 4, 29
    %s551 = scalar_lea.vmem %s0, %s550
    %s552 = sshrl.u32 %s5, 1
    %s553 = sor.u32 %s5, %s552
    %s554 = sand.u32 %s553, 85
    %s555 = sshrl.u32 %s554, 1
    %s556 = sor.u32 %s554, %s555
    %s557 = sand.u32 51, %s556
    %s558 = sshrl.u32 %s557, 2
    %s559 = sor.u32 %s557, %s558
    %s560 = sand.u32 15, %s559
    %v561 = vld [vmem:[%s551] sm:%s560]
    %v562 = vunpack.c.l.bf16 %v561
    %v563 = vunpack.c.h.bf16 %v561
    %s564 = scalar_lea.vmem [#allocation1], 232
    %565 = vst [vmem:[%s564] sm:%s5] %v562
    %s566 = smul.addr 4, 28
    %s567 = scalar_lea.vmem %s0, %s566
    %s568 = sshrl.u32 %s5, 1
    %s569 = sor.u32 %s5, %s568
    %s570 = sand.u32 %s569, 85
    %s571 = sshrl.u32 %s570, 1
    %s572 = sor.u32 %s570, %s571
    %s573 = sand.u32 51, %s572
    %s574 = sshrl.u32 %s573, 2
    %s575 = sor.u32 %s573, %s574
    %s576 = sand.u32 15, %s575
    %v577 = vld [vmem:[%s567] sm:%s576]
    %v578 = vunpack.c.l.bf16 %v577
    %v579 = vunpack.c.h.bf16 %v577
    %s580 = scalar_lea.vmem [#allocation1], 224
    %581 = vst [vmem:[%s580] sm:%s5] %v578
    %s582 = smul.addr 4, 27
    %s583 = scalar_lea.vmem %s0, %s582
    %s584 = sshrl.u32 %s5, 1
    %s585 = sor.u32 %s5, %s584
    %s586 = sand.u32 %s585, 85
    %s587 = sshrl.u32 %s586, 1
    %s588 = sor.u32 %s586, %s587
    %s589 = sand.u32 51, %s588
    %s590 = sshrl.u32 %s589, 2
    %s591 = sor.u32 %s589, %s590
    %s592 = sand.u32 15, %s591
    %v593 = vld [vmem:[%s583] sm:%s592]
    %v594 = vunpack.c.l.bf16 %v593
    %v595 = vunpack.c.h.bf16 %v593
    %s596 = scalar_lea.vmem [#allocation1], 216
    %597 = vst [vmem:[%s596] sm:%s5] %v594
    %s598 = smul.addr 4, 26
    %s599 = scalar_lea.vmem %s0, %s598
    %s600 = sshrl.u32 %s5, 1
    %s601 = sor.u32 %s5, %s600
    %s602 = sand.u32 %s601, 85
    %s603 = sshrl.u32 %s602, 1
    %s604 = sor.u32 %s602, %s603
    %s605 = sand.u32 51, %s604
    %s606 = sshrl.u32 %s605, 2
    %s607 = sor.u32 %s605, %s606
    %s608 = sand.u32 15, %s607
    %v609 = vld [vmem:[%s599] sm:%s608]
    %v610 = vunpack.c.l.bf16 %v609
    %v611 = vunpack.c.h.bf16 %v609
    %s612 = scalar_lea.vmem [#allocation1], 208
    %613 = vst [vmem:[%s612] sm:%s5] %v610
    %s614 = smul.addr 4, 25
    %s615 = scalar_lea.vmem %s0, %s614
    %s616 = sshrl.u32 %s5, 1
    %s617 = sor.u32 %s5, %s616
    %s618 = sand.u32 %s617, 85
    %s619 = sshrl.u32 %s618, 1
    %s620 = sor.u32 %s618, %s619
    %s621 = sand.u32 51, %s620
    %s622 = sshrl.u32 %s621, 2
    %s623 = sor.u32 %s621, %s622
    %s624 = sand.u32 15, %s623
    %v625 = vld [vmem:[%s615] sm:%s624]
    %v626 = vunpack.c.l.bf16 %v625
    %v627 = vunpack.c.h.bf16 %v625
    %s628 = scalar_lea.vmem [#allocation1], 200
    %629 = vst [vmem:[%s628] sm:%s5] %v626
    %s630 = smul.addr 4, 24
    %s631 = scalar_lea.vmem %s0, %s630
    %s632 = sshrl.u32 %s5, 1
    %s633 = sor.u32 %s5, %s632
    %s634 = sand.u32 %s633, 85
    %s635 = sshrl.u32 %s634, 1
    %s636 = sor.u32 %s634, %s635
    %s637 = sand.u32 51, %s636
    %s638 = sshrl.u32 %s637, 2
    %s639 = sor.u32 %s637, %s638
    %s640 = sand.u32 15, %s639
    %v641 = vld [vmem:[%s631] sm:%s640]
    %v642 = vunpack.c.l.bf16 %v641
    %v643 = vunpack.c.h.bf16 %v641
    %s644 = scalar_lea.vmem [#allocation1], 192
    %645 = vst [vmem:[%s644] sm:%s5] %v642
    %s646 = smul.addr 4, 23
    %s647 = scalar_lea.vmem %s0, %s646
    %s648 = sshrl.u32 %s5, 1
    %s649 = sor.u32 %s5, %s648
    %s650 = sand.u32 %s649, 85
    %s651 = sshrl.u32 %s650, 1
    %s652 = sor.u32 %s650, %s651
    %s653 = sand.u32 51, %s652
    %s654 = sshrl.u32 %s653, 2
    %s655 = sor.u32 %s653, %s654
    %s656 = sand.u32 15, %s655
    %v657 = vld [vmem:[%s647] sm:%s656]
    %v658 = vunpack.c.l.bf16 %v657
    %v659 = vunpack.c.h.bf16 %v657
    %s660 = scalar_lea.vmem [#allocation1], 184
    %661 = vst [vmem:[%s660] sm:%s5] %v658
    %s662 = smul.addr 4, 22
    %s663 = scalar_lea.vmem %s0, %s662
    %s664 = sshrl.u32 %s5, 1
    %s665 = sor.u32 %s5, %s664
    %s666 = sand.u32 %s665, 85
    %s667 = sshrl.u32 %s666, 1
    %s668 = sor.u32 %s666, %s667
    %s669 = sand.u32 51, %s668
    %s670 = sshrl.u32 %s669, 2
    %s671 = sor.u32 %s669, %s670
    %s672 = sand.u32 15, %s671
    %v673 = vld [vmem:[%s663] sm:%s672]
    %v674 = vunpack.c.l.bf16 %v673
    %v675 = vunpack.c.h.bf16 %v673
    %s676 = scalar_lea.vmem [#allocation1], 176
    %677 = vst [vmem:[%s676] sm:%s5] %v674
    %s678 = smul.addr 4, 21
    %s679 = scalar_lea.vmem %s0, %s678
    %s680 = sshrl.u32 %s5, 1
    %s681 = sor.u32 %s5, %s680
    %s682 = sand.u32 %s681, 85
    %s683 = sshrl.u32 %s682, 1
    %s684 = sor.u32 %s682, %s683
    %s685 = sand.u32 51, %s684
    %s686 = sshrl.u32 %s685, 2
    %s687 = sor.u32 %s685, %s686
    %s688 = sand.u32 15, %s687
    %v689 = vld [vmem:[%s679] sm:%s688]
    %v690 = vunpack.c.l.bf16 %v689
    %v691 = vunpack.c.h.bf16 %v689
    %s692 = scalar_lea.vmem [#allocation1], 168
    %693 = vst [vmem:[%s692] sm:%s5] %v690
    %s694 = smul.addr 4, 20
    %s695 = scalar_lea.vmem %s0, %s694
    %s696 = sshrl.u32 %s5, 1
    %s697 = sor.u32 %s5, %s696
    %s698 = sand.u32 %s697, 85
    %s699 = sshrl.u32 %s698, 1
    %s700 = sor.u32 %s698, %s699
    %s701 = sand.u32 51, %s700
    %s702 = sshrl.u32 %s701, 2
    %s703 = sor.u32 %s701, %s702
    %s704 = sand.u32 15, %s703
    %v705 = vld [vmem:[%s695] sm:%s704]
    %v706 = vunpack.c.l.bf16 %v705
    %v707 = vunpack.c.h.bf16 %v705
    %s708 = scalar_lea.vmem [#allocation1], 160
    %709 = vst [vmem:[%s708] sm:%s5] %v706
    %s710 = smul.addr 4, 19
    %s711 = scalar_lea.vmem %s0, %s710
    %s712 = sshrl.u32 %s5, 1
    %s713 = sor.u32 %s5, %s712
    %s714 = sand.u32 %s713, 85
    %s715 = sshrl.u32 %s714, 1
    %s716 = sor.u32 %s714, %s715
    %s717 = sand.u32 51, %s716
    %s718 = sshrl.u32 %s717, 2
    %s719 = sor.u32 %s717, %s718
    %s720 = sand.u32 15, %s719
    %v721 = vld [vmem:[%s711] sm:%s720]
    %v722 = vunpack.c.l.bf16 %v721
    %v723 = vunpack.c.h.bf16 %v721
    %s724 = scalar_lea.vmem [#allocation1], 152
    %725 = vst [vmem:[%s724] sm:%s5] %v722
    %s726 = smul.addr 4, 18
    %s727 = scalar_lea.vmem %s0, %s726
    %s728 = sshrl.u32 %s5, 1
    %s729 = sor.u32 %s5, %s728
    %s730 = sand.u32 %s729, 85
    %s731 = sshrl.u32 %s730, 1
    %s732 = sor.u32 %s730, %s731
    %s733 = sand.u32 51, %s732
    %s734 = sshrl.u32 %s733, 2
    %s735 = sor.u32 %s733, %s734
    %s736 = sand.u32 15, %s735
    %v737 = vld [vmem:[%s727] sm:%s736]
    %v738 = vunpack.c.l.bf16 %v737
    %v739 = vunpack.c.h.bf16 %v737
    %s740 = scalar_lea.vmem [#allocation1], 144
    %741 = vst [vmem:[%s740] sm:%s5] %v738
    %s742 = smul.addr 4, 17
    %s743 = scalar_lea.vmem %s0, %s742
    %s744 = sshrl.u32 %s5, 1
    %s745 = sor.u32 %s5, %s744
    %s746 = sand.u32 %s745, 85
    %s747 = sshrl.u32 %s746, 1
    %s748 = sor.u32 %s746, %s747
    %s749 = sand.u32 51, %s748
    %s750 = sshrl.u32 %s749, 2
    %s751 = sor.u32 %s749, %s750
    %s752 = sand.u32 15, %s751
    %v753 = vld [vmem:[%s743] sm:%s752]
    %v754 = vunpack.c.l.bf16 %v753
    %v755 = vunpack.c.h.bf16 %v753
    %s756 = scalar_lea.vmem [#allocation1], 136
    %757 = vst [vmem:[%s756] sm:%s5] %v754
    %s758 = smul.addr 4, 16
    %s759 = scalar_lea.vmem %s0, %s758
    %s760 = sshrl.u32 %s5, 1
    %s761 = sor.u32 %s5, %s760
    %s762 = sand.u32 %s761, 85
    %s763 = sshrl.u32 %s762, 1
    %s764 = sor.u32 %s762, %s763
    %s765 = sand.u32 51, %s764
    %s766 = sshrl.u32 %s765, 2
    %s767 = sor.u32 %s765, %s766
    %s768 = sand.u32 15, %s767
    %v769 = vld [vmem:[%s759] sm:%s768]
    %v770 = vunpack.c.l.bf16 %v769
    %v771 = vunpack.c.h.bf16 %v769
    %s772 = scalar_lea.vmem [#allocation1], 128
    %773 = vst [vmem:[%s772] sm:%s5] %v770
    %s774 = smul.addr 4, 15
    %s775 = scalar_lea.vmem %s0, %s774
    %s776 = sshrl.u32 %s5, 1
    %s777 = sor.u32 %s5, %s776
    %s778 = sand.u32 %s777, 85
    %s779 = sshrl.u32 %s778, 1
    %s780 = sor.u32 %s778, %s779
    %s781 = sand.u32 51, %s780
    %s782 = sshrl.u32 %s781, 2
    %s783 = sor.u32 %s781, %s782
    %s784 = sand.u32 15, %s783
    %v785 = vld [vmem:[%s775] sm:%s784]
    %v786 = vunpack.c.l.bf16 %v785
    %v787 = vunpack.c.h.bf16 %v785
    %s788 = scalar_lea.vmem [#allocation1], 120
    %789 = vst [vmem:[%s788] sm:%s5] %v786
    %s790 = smul.addr 4, 14
    %s791 = scalar_lea.vmem %s0, %s790
    %s792 = sshrl.u32 %s5, 1
    %s793 = sor.u32 %s5, %s792
    %s794 = sand.u32 %s793, 85
    %s795 = sshrl.u32 %s794, 1
    %s796 = sor.u32 %s794, %s795
    %s797 = sand.u32 51, %s796
    %s798 = sshrl.u32 %s797, 2
    %s799 = sor.u32 %s797, %s798
    %s800 = sand.u32 15, %s799
    %v801 = vld [vmem:[%s791] sm:%s800]
    %v802 = vunpack.c.l.bf16 %v801
    %v803 = vunpack.c.h.bf16 %v801
    %s804 = scalar_lea.vmem [#allocation1], 112
    %805 = vst [vmem:[%s804] sm:%s5] %v802
    %s806 = smul.addr 4, 13
    %s807 = scalar_lea.vmem %s0, %s806
    %s808 = sshrl.u32 %s5, 1
    %s809 = sor.u32 %s5, %s808
    %s810 = sand.u32 %s809, 85
    %s811 = sshrl.u32 %s810, 1
    %s812 = sor.u32 %s810, %s811
    %s813 = sand.u32 51, %s812
    %s814 = sshrl.u32 %s813, 2
    %s815 = sor.u32 %s813, %s814
    %s816 = sand.u32 15, %s815
    %v817 = vld [vmem:[%s807] sm:%s816]
    %v818 = vunpack.c.l.bf16 %v817
    %v819 = vunpack.c.h.bf16 %v817
    %s820 = scalar_lea.vmem [#allocation1], 104
    %821 = vst [vmem:[%s820] sm:%s5] %v818
    %s822 = smul.addr 4, 12
    %s823 = scalar_lea.vmem %s0, %s822
    %s824 = sshrl.u32 %s5, 1
    %s825 = sor.u32 %s5, %s824
    %s826 = sand.u32 %s825, 85
    %s827 = sshrl.u32 %s826, 1
    %s828 = sor.u32 %s826, %s827
    %s829 = sand.u32 51, %s828
    %s830 = sshrl.u32 %s829, 2
    %s831 = sor.u32 %s829, %s830
    %s832 = sand.u32 15, %s831
    %v833 = vld [vmem:[%s823] sm:%s832]
    %v834 = vunpack.c.l.bf16 %v833
    %v835 = vunpack.c.h.bf16 %v833
    %s836 = scalar_lea.vmem [#allocation1], 96
    %837 = vst [vmem:[%s836] sm:%s5] %v834
    %s838 = smul.addr 4, 11
    %s839 = scalar_lea.vmem %s0, %s838
    %s840 = sshrl.u32 %s5, 1
    %s841 = sor.u32 %s5, %s840
    %s842 = sand.u32 %s841, 85
    %s843 = sshrl.u32 %s842, 1
    %s844 = sor.u32 %s842, %s843
    %s845 = sand.u32 51, %s844
    %s846 = sshrl.u32 %s845, 2
    %s847 = sor.u32 %s845, %s846
    %s848 = sand.u32 15, %s847
    %v849 = vld [vmem:[%s839] sm:%s848]
    %v850 = vunpack.c.l.bf16 %v849
    %v851 = vunpack.c.h.bf16 %v849
    %s852 = scalar_lea.vmem [#allocation1], 88
    %853 = vst [vmem:[%s852] sm:%s5] %v850
    %s854 = smul.addr 4, 10
    %s855 = scalar_lea.vmem %s0, %s854
    %s856 = sshrl.u32 %s5, 1
    %s857 = sor.u32 %s5, %s856
    %s858 = sand.u32 %s857, 85
    %s859 = sshrl.u32 %s858, 1
    %s860 = sor.u32 %s858, %s859
    %s861 = sand.u32 51, %s860
    %s862 = sshrl.u32 %s861, 2
    %s863 = sor.u32 %s861, %s862
    %s864 = sand.u32 15, %s863
    %v865 = vld [vmem:[%s855] sm:%s864]
    %v866 = vunpack.c.l.bf16 %v865
    %v867 = vunpack.c.h.bf16 %v865
    %s868 = scalar_lea.vmem [#allocation1], 80
    %869 = vst [vmem:[%s868] sm:%s5] %v866
    %s870 = smul.addr 4, 9
    %s871 = scalar_lea.vmem %s0, %s870
    %s872 = sshrl.u32 %s5, 1
    %s873 = sor.u32 %s5, %s872
    %s874 = sand.u32 %s873, 85
    %s875 = sshrl.u32 %s874, 1
    %s876 = sor.u32 %s874, %s875
    %s877 = sand.u32 51, %s876
    %s878 = sshrl.u32 %s877, 2
    %s879 = sor.u32 %s877, %s878
    %s880 = sand.u32 15, %s879
    %v881 = vld [vmem:[%s871] sm:%s880]
    %v882 = vunpack.c.l.bf16 %v881
    %v883 = vunpack.c.h.bf16 %v881
    %s884 = scalar_lea.vmem [#allocation1], 72
    %885 = vst [vmem:[%s884] sm:%s5] %v882
    %s886 = smul.addr 4, 8
    %s887 = scalar_lea.vmem %s0, %s886
    %s888 = sshrl.u32 %s5, 1
    %s889 = sor.u32 %s5, %s888
    %s890 = sand.u32 %s889, 85
    %s891 = sshrl.u32 %s890, 1
    %s892 = sor.u32 %s890, %s891
    %s893 = sand.u32 51, %s892
    %s894 = sshrl.u32 %s893, 2
    %s895 = sor.u32 %s893, %s894
    %s896 = sand.u32 15, %s895
    %v897 = vld [vmem:[%s887] sm:%s896]
    %v898 = vunpack.c.l.bf16 %v897
    %v899 = vunpack.c.h.bf16 %v897
    %s900 = scalar_lea.vmem [#allocation1], 64
    %901 = vst [vmem:[%s900] sm:%s5] %v898
    %s902 = smul.addr 4, 7
    %s903 = scalar_lea.vmem %s0, %s902
    %s904 = sshrl.u32 %s5, 1
    %s905 = sor.u32 %s5, %s904
    %s906 = sand.u32 %s905, 85
    %s907 = sshrl.u32 %s906, 1
    %s908 = sor.u32 %s906, %s907
    %s909 = sand.u32 51, %s908
    %s910 = sshrl.u32 %s909, 2
    %s911 = sor.u32 %s909, %s910
    %s912 = sand.u32 15, %s911
    %v913 = vld [vmem:[%s903] sm:%s912]
    %v914 = vunpack.c.l.bf16 %v913
    %v915 = vunpack.c.h.bf16 %v913
    %s916 = scalar_lea.vmem [#allocation1], 56
    %917 = vst [vmem:[%s916] sm:%s5] %v914
    %s918 = smul.addr 4, 6
    %s919 = scalar_lea.vmem %s0, %s918
    %s920 = sshrl.u32 %s5, 1
    %s921 = sor.u32 %s5, %s920
    %s922 = sand.u32 %s921, 85
    %s923 = sshrl.u32 %s922, 1
    %s924 = sor.u32 %s922, %s923
    %s925 = sand.u32 51, %s924
    %s926 = sshrl.u32 %s925, 2
    %s927 = sor.u32 %s925, %s926
    %s928 = sand.u32 15, %s927
    %v929 = vld [vmem:[%s919] sm:%s928]
    %v930 = vunpack.c.l.bf16 %v929
    %v931 = vunpack.c.h.bf16 %v929
    %s932 = scalar_lea.vmem [#allocation1], 48
    %933 = vst [vmem:[%s932] sm:%s5] %v930
    %s934 = smul.addr 4, 5
    %s935 = scalar_lea.vmem %s0, %s934
    %s936 = sshrl.u32 %s5, 1
    %s937 = sor.u32 %s5, %s936
    %s938 = sand.u32 %s937, 85
    %s939 = sshrl.u32 %s938, 1
    %s940 = sor.u32 %s938, %s939
    %s941 = sand.u32 51, %s940
    %s942 = sshrl.u32 %s941, 2
    %s943 = sor.u32 %s941, %s942
    %s944 = sand.u32 15, %s943
    %v945 = vld [vmem:[%s935] sm:%s944]
    %v946 = vunpack.c.l.bf16 %v945
    %v947 = vunpack.c.h.bf16 %v945
    %s948 = scalar_lea.vmem [#allocation1], 40
    %949 = vst [vmem:[%s948] sm:%s5] %v946
    %s950 = smul.addr 4, 4
    %s951 = scalar_lea.vmem %s0, %s950
    %s952 = sshrl.u32 %s5, 1
    %s953 = sor.u32 %s5, %s952
    %s954 = sand.u32 %s953, 85
    %s955 = sshrl.u32 %s954, 1
    %s956 = sor.u32 %s954, %s955
    %s957 = sand.u32 51, %s956
    %s958 = sshrl.u32 %s957, 2
    %s959 = sor.u32 %s957, %s958
    %s960 = sand.u32 15, %s959
    %v961 = vld [vmem:[%s951] sm:%s960]
    %v962 = vunpack.c.l.bf16 %v961
    %v963 = vunpack.c.h.bf16 %v961
    %s964 = scalar_lea.vmem [#allocation1], 32
    %965 = vst [vmem:[%s964] sm:%s5] %v962
    %s966 = smul.addr 4, 3
    %s967 = scalar_lea.vmem %s0, %s966
    %s968 = sshrl.u32 %s5, 1
    %s969 = sor.u32 %s5, %s968
    %s970 = sand.u32 %s969, 85
    %s971 = sshrl.u32 %s970, 1
    %s972 = sor.u32 %s970, %s971
    %s973 = sand.u32 51, %s972
    %s974 = sshrl.u32 %s973, 2
    %s975 = sor.u32 %s973, %s974
    %s976 = sand.u32 15, %s975
    %v977 = vld [vmem:[%s967] sm:%s976]
    %v978 = vunpack.c.l.bf16 %v977
    %v979 = vunpack.c.h.bf16 %v977
    %s980 = scalar_lea.vmem [#allocation1], 24
    %981 = vst [vmem:[%s980] sm:%s5] %v978
    %s982 = smul.addr 4, 2
    %s983 = scalar_lea.vmem %s0, %s982
    %s984 = sshrl.u32 %s5, 1
    %s985 = sor.u32 %s5, %s984
    %s986 = sand.u32 %s985, 85
    %s987 = sshrl.u32 %s986, 1
    %s988 = sor.u32 %s986, %s987
    %s989 = sand.u32 51, %s988
    %s990 = sshrl.u32 %s989, 2
    %s991 = sor.u32 %s989, %s990
    %s992 = sand.u32 15, %s991
    %v993 = vld [vmem:[%s983] sm:%s992]
    %v994 = vunpack.c.l.bf16 %v993
    %v995 = vunpack.c.h.bf16 %v993
    %s996 = scalar_lea.vmem [#allocation1], 16
    %997 = vst [vmem:[%s996] sm:%s5] %v994
    %s998 = scalar_lea.vmem %s0, 4
    %s999 = sshrl.u32 %s5, 1
    %s1000 = sor.u32 %s5, %s999
    %s1001 = sand.u32 %s1000, 85
    %s1002 = sshrl.u32 %s1001, 1
    %s1003 = sor.u32 %s1001, %s1002
    %s1004 = sand.u32 51, %s1003
    %s1005 = sshrl.u32 %s1004, 2
    %s1006 = sor.u32 %s1004, %s1005
    %s1007 = sand.u32 15, %s1006
    %v1008 = vld [vmem:[%s998] sm:%s1007]
    %v1009 = vunpack.c.l.bf16 %v1008
    %v1010 = vunpack.c.h.bf16 %v1008
    %s1011 = scalar_lea.vmem [#allocation1], 8
    %1012 = vst [vmem:[%s1011] sm:%s5] %v1009
    %s1013 = sshrl.u32 %s5, 1
    %s1014 = sor.u32 %s5, %s1013
    %s1015 = sand.u32 %s1014, 85
    %s1016 = sshrl.u32 %s1015, 1
    %s1017 = sor.u32 %s1015, %s1016
    %s1018 = sand.u32 51, %s1017
    %s1019 = sshrl.u32 %s1018, 2
    %s1020 = sor.u32 %s1018, %s1019
    %s1021 = sand.u32 15, %s1020
    %v1022 = vld [vmem:[%s0] sm:%s1021]
    %v1023 = vunpack.c.l.bf16 %v1022
    %v1024 = vunpack.c.h.bf16 %v1022
    %1025 = vst [vmem:[#allocation1] sm:%s5] %v1023
    %v1026 = vld [vmem:[#allocation1] sm:$0x1]
    %s1027 = scalar_lea.vmem [#allocation1], 31
    %v1028 = vld [vmem:[%s1027] sm:$0x2]
    %vm1029 = vcmask 1041409
    %v1030 = vsel %vm1029, %v1028, %v1026
    %s1031 = scalar_lea.vmem [#allocation1], 62
    %v1032 = vld [vmem:[%s1031] sm:$0x4]
    %vm1033 = vcmask 1042434
    %v1034 = vsel %vm1033, %v1032, %v1030
    %s1035 = scalar_lea.vmem [#allocation1], 93
    %v1036 = vld [vmem:[%s1035] sm:$0x8]
    %vm1037 = vcmask 1043459
    %v1038 = vsel %vm1037, %v1036, %v1034
    %s1039 = scalar_lea.vmem [#allocation1], 124
    %v1040 = vld [vmem:[%s1039] sm:$0x10]
    %vm1041 = vcmask 1044484
    %v1042 = vsel %vm1041, %v1040, %v1038
    %s1043 = scalar_lea.vmem [#allocation1], 155
    %v1044 = vld [vmem:[%s1043] sm:$0x20]
    %vm1045 = vcmask 1045509
    %v1046 = vsel %vm1045, %v1044, %v1042
    %s1047 = scalar_lea.vmem [#allocation1], 186
    %v1048 = vld [vmem:[%s1047] sm:$0x40]
    %vm1049 = vcmask 1046534
    %v1050 = vsel %vm1049, %v1048, %v1046
    %s1051 = scalar_lea.vmem [#allocation1], 217
    %v1052 = vld [vmem:[%s1051] sm:$0x80]
    %vm1053 = vcmask 1047559
    %v1054 = vsel %vm1053, %v1052, %v1050
    %vm1055 = vcmask 228352
    %1056 = vst.msk [vmem:[#allocation0] sm:$0xff] %vm1055, %v1054
    %s1057 = scalar_lea.vmem [#allocation1], 256
    %v1058 = vld [vmem:[%s1057] sm:$0x1]
    %s1059 = scalar_lea.vmem [#allocation1], 287
    %v1060 = vld [vmem:[%s1059] sm:$0x2]
    %vm1061 = vcmask 1041409
    %v1062 = vsel %vm1061, %v1060, %v1058
    %s1063 = scalar_lea.vmem [#allocation1], 318
    %v1064 = vld [vmem:[%s1063] sm:$0x4]
    %vm1065 = vcmask 1042434
    %v1066 = vsel %vm1065, %v1064, %v1062
    %s1067 = scalar_lea.vmem [#allocation1], 349
    %v1068 = vld [vmem:[%s1067] sm:$0x8]
    %vm1069 = vcmask 1043459
    %v1070 = vsel %vm1069, %v1068, %v1066
    %s1071 = scalar_lea.vmem [#allocation1], 380
    %v1072 = vld [vmem:[%s1071] sm:$0x10]
    %vm1073 = vcmask 1044484
    %v1074 = vsel %vm1073, %v1072, %v1070
    %s1075 = scalar_lea.vmem [#allocation1], 411
    %v1076 = vld [vmem:[%s1075] sm:$0x20]
    %vm1077 = vcmask 1045509
    %v1078 = vsel %vm1077, %v1076, %v1074
    %s1079 = scalar_lea.vmem [#allocation1], 442
    %v1080 = vld [vmem:[%s1079] sm:$0x40]
    %vm1081 = vcmask 1046534
    %v1082 = vsel %vm1081, %v1080, %v1078
    %s1083 = scalar_lea.vmem [#allocation1], 473
    %v1084 = vld [vmem:[%s1083] sm:$0x80]
    %vm1085 = vcmask 1047559
    %v1086 = vsel %vm1085, %v1084, %v1082
    %vm1087 = vcmask 228352
    %s1088 = scalar_lea.vmem [#allocation0], 56
    %1089 = vst.msk [vmem:[%s1088] sm:$0xff] %vm1087, %v1086
    %s1090 = scalar_lea.vmem [#allocation1], 265
    %v1091 = vld [vmem:[%s1090] sm:$0x1]
    %s1092 = scalar_lea.vmem [#allocation1], 296
    %v1093 = vld [vmem:[%s1092] sm:$0x2]
    %vm1094 = vcmask 1041409
    %v1095 = vsel %vm1094, %v1093, %v1091
    %s1096 = scalar_lea.vmem [#allocation1], 327
    %v1097 = vld [vmem:[%s1096] sm:$0x4]
    %vm1098 = vcmask 1042434
    %v1099 = vsel %vm1098, %v1097, %v1095
    %s1100 = scalar_lea.vmem [#allocation1], 358
    %v1101 = vld [vmem:[%s1100] sm:$0x8]
    %vm1102 = vcmask 1043459
    %v1103 = vsel %vm1102, %v1101, %v1099
    %s1104 = scalar_lea.vmem [#allocation1], 389
    %v1105 = vld [vmem:[%s1104] sm:$0x10]
    %vm1106 = vcmask 1044484
    %v1107 = vsel %vm1106, %v1105, %v1103
    %s1108 = scalar_lea.vmem [#allocation1], 420
    %v1109 = vld [vmem:[%s1108] sm:$0x20]
    %vm1110 = vcmask 1045509
    %v1111 = vsel %vm1110, %v1109, %v1107
    %s1112 = scalar_lea.vmem [#allocation1], 451
    %v1113 = vld [vmem:[%s1112] sm:$0x40]
    %vm1114 = vcmask 1046534
    %v1115 = vsel %vm1114, %v1113, %v1111
    %s1116 = scalar_lea.vmem [#allocation1], 482
    %v1117 = vld [vmem:[%s1116] sm:$0x80]
    %vm1118 = vcmask 1047559
    %v1119 = vsel %vm1118, %v1117, %v1115
    %1120 = vrot.lane.b32.xlu0 %v1119, 124
    %v1121 = vpop.permute.xlu0 %1120
    %vm1122 = vcmask 195584
    %s1123 = scalar_lea.vmem [#allocation0], 72
    %1124 = vst.msk [vmem:[%s1123] sm:$0xff] %vm1122, %v1121
    %s1125 = scalar_lea.vmem [#allocation1], 265
    %v1126 = vld [vmem:[%s1125] sm:$0x1]
    %s1127 = scalar_lea.vmem [#allocation1], 296
    %v1128 = vld [vmem:[%s1127] sm:$0x2]
    %vm1129 = vcmask 1041409
    %v1130 = vsel %vm1129, %v1128, %v1126
    %s1131 = scalar_lea.vmem [#allocation1], 327
    %v1132 = vld [vmem:[%s1131] sm:$0x4]
    %vm1133 = vcmask 1042434
    %v1134 = vsel %vm1133, %v1132, %v1130
    %s1135 = scalar_lea.vmem [#allocation1], 358
    %v1136 = vld [vmem:[%s1135] sm:$0x8]
    %vm1137 = vcmask 1043459
    %v1138 = vsel %vm1137, %v1136, %v1134
    %s1139 = scalar_lea.vmem [#allocation1], 389
    %v1140 = vld [vmem:[%s1139] sm:$0x10]
    %vm1141 = vcmask 1044484
    %v1142 = vsel %vm1141, %v1140, %v1138
    %s1143 = scalar_lea.vmem [#allocation1], 420
    %v1144 = vld [vmem:[%s1143] sm:$0x20]
    %vm1145 = vcmask 1045509
    %v1146 = vsel %vm1145, %v1144, %v1142
    %s1147 = scalar_lea.vmem [#allocation1], 451
    %v1148 = vld [vmem:[%s1147] sm:$0x40]
    %vm1149 = vcmask 1046534
    %v1150 = vsel %vm1149, %v1148, %v1146
    %s1151 = scalar_lea.vmem [#allocation1], 482
    %v1152 = vld [vmem:[%s1151] sm:$0x80]
    %vm1153 = vcmask 1047559
    %v1154 = vsel %vm1153, %v1152, %v1150
    %1155 = vrot.lane.b32.xlu0 %v1154, 124
    %v1156 = vpop.permute.xlu0 %1155
    %vm1157 = vcmask 1048544
    %s1158 = scalar_lea.vmem [#allocation0], 64
    %1159 = vst.msk [vmem:[%s1158] sm:$0xff] %vm1157, %v1156
    %s1160 = scalar_lea.vmem [#allocation1], 9
    %v1161 = vld [vmem:[%s1160] sm:$0x1]
    %s1162 = scalar_lea.vmem [#allocation1], 40
    %v1163 = vld [vmem:[%s1162] sm:$0x2]
    %vm1164 = vcmask 1041409
    %v1165 = vsel %vm1164, %v1163, %v1161
    %s1166 = scalar_lea.vmem [#allocation1], 71
    %v1167 = vld [vmem:[%s1166] sm:$0x4]
    %vm1168 = vcmask 1042434
    %v1169 = vsel %vm1168, %v1167, %v1165
    %s1170 = scalar_lea.vmem [#allocation1], 102
    %v1171 = vld [vmem:[%s1170] sm:$0x8]
    %vm1172 = vcmask 1043459
    %v1173 = vsel %vm1172, %v1171, %v1169
    %s1174 = scalar_lea.vmem [#allocation1], 133
    %v1175 = vld [vmem:[%s1174] sm:$0x10]
    %vm1176 = vcmask 1044484
    %v1177 = vsel %vm1176, %v1175, %v1173
    %s1178 = scalar_lea.vmem [#allocation1], 164
    %v1179 = vld [vmem:[%s1178] sm:$0x20]
    %vm1180 = vcmask 1045509
    %v1181 = vsel %vm1180, %v1179, %v1177
    %s1182 = scalar_lea.vmem [#allocation1], 195
    %v1183 = vld [vmem:[%s1182] sm:$0x40]
    %vm1184 = vcmask 1046534
    %v1185 = vsel %vm1184, %v1183, %v1181
    %s1186 = scalar_lea.vmem [#allocation1], 226
    %v1187 = vld [vmem:[%s1186] sm:$0x80]
    %vm1188 = vcmask 1047559
    %v1189 = vsel %vm1188, %v1187, %v1185
    %1190 = vrot.lane.b32.xlu0 %v1189, 124
    %v1191 = vpop.permute.xlu0 %1190
    %vm1192 = vcmask 195584
    %s1193 = scalar_lea.vmem [#allocation0], 16
    %1194 = vst.msk [vmem:[%s1193] sm:$0xff] %vm1192, %v1191
    %s1195 = scalar_lea.vmem [#allocation1], 9
    %v1196 = vld [vmem:[%s1195] sm:$0x1]
    %s1197 = scalar_lea.vmem [#allocation1], 40
    %v1198 = vld [vmem:[%s1197] sm:$0x2]
    %vm1199 = vcmask 1041409
    %v1200 = vsel %vm1199, %v1198, %v1196
    %s1201 = scalar_lea.vmem [#allocation1], 71
    %v1202 = vld [vmem:[%s1201] sm:$0x4]
    %vm1203 = vcmask 1042434
    %v1204 = vsel %vm1203, %v1202, %v1200
    %s1205 = scalar_lea.vmem [#allocation1], 102
    %v1206 = vld [vmem:[%s1205] sm:$0x8]
    %vm1207 = vcmask 1043459
    %v1208 = vsel %vm1207, %v1206, %v1204
    %s1209 = scalar_lea.vmem [#allocation1], 133
    %v1210 = vld [vmem:[%s1209] sm:$0x10]
    %vm1211 = vcmask 1044484
    %v1212 = vsel %vm1211, %v1210, %v1208
    %s1213 = scalar_lea.vmem [#allocation1], 164
    %v1214 = vld [vmem:[%s1213] sm:$0x20]
    %vm1215 = vcmask 1045509
    %v1216 = vsel %vm1215, %v1214, %v1212
    %s1217 = scalar_lea.vmem [#allocation1], 195
    %v1218 = vld [vmem:[%s1217] sm:$0x40]
    %vm1219 = vcmask 1046534
    %v1220 = vsel %vm1219, %v1218, %v1216
    %s1221 = scalar_lea.vmem [#allocation1], 226
    %v1222 = vld [vmem:[%s1221] sm:$0x80]
    %vm1223 = vcmask 1047559
    %v1224 = vsel %vm1223, %v1222, %v1220
    %1225 = vrot.lane.b32.xlu0 %v1224, 124
    %v1226 = vpop.permute.xlu0 %1225
    %vm1227 = vcmask 1048544
    %s1228 = scalar_lea.vmem [#allocation0], 8
    %1229 = vst.msk [vmem:[%s1228] sm:$0xff] %vm1227, %v1226
    %s1230 = scalar_lea.vmem [#allocation1], 18
    %v1231 = vld [vmem:[%s1230] sm:$0x1]
    %s1232 = scalar_lea.vmem [#allocation1], 49
    %v1233 = vld [vmem:[%s1232] sm:$0x2]
    %vm1234 = vcmask 1041409
    %v1235 = vsel %vm1234, %v1233, %v1231
    %s1236 = scalar_lea.vmem [#allocation1], 80
    %v1237 = vld [vmem:[%s1236] sm:$0x4]
    %vm1238 = vcmask 1042434
    %v1239 = vsel %vm1238, %v1237, %v1235
    %s1240 = scalar_lea.vmem [#allocation1], 111
    %v1241 = vld [vmem:[%s1240] sm:$0x8]
    %vm1242 = vcmask 1043459
    %v1243 = vsel %vm1242, %v1241, %v1239
    %s1244 = scalar_lea.vmem [#allocation1], 142
    %v1245 = vld [vmem:[%s1244] sm:$0x10]
    %vm1246 = vcmask 1044484
    %v1247 = vsel %vm1246, %v1245, %v1243
    %s1248 = scalar_lea.vmem [#allocation1], 173
    %v1249 = vld [vmem:[%s1248] sm:$0x20]
    %vm1250 = vcmask 1045509
    %v1251 = vsel %vm1250, %v1249, %v1247
    %s1252 = scalar_lea.vmem [#allocation1], 204
    %v1253 = vld [vmem:[%s1252] sm:$0x40]
    %vm1254 = vcmask 1046534
    %v1255 = vsel %vm1254, %v1253, %v1251
    %s1256 = scalar_lea.vmem [#allocation1], 235
    %v1257 = vld [vmem:[%s1256] sm:$0x80]
    %vm1258 = vcmask 1047559
    %v1259 = vsel %vm1258, %v1257, %v1255
    %1260 = vrot.lane.b32.xlu0 %v1259, 120
    %v1261 = vpop.permute.xlu0 %1260
    %vm1262 = vcmask 162816
    %s1263 = scalar_lea.vmem [#allocation0], 32
    %1264 = vst.msk [vmem:[%s1263] sm:$0xff] %vm1262, %v1261
    %s1265 = scalar_lea.vmem [#allocation1], 274
    %v1266 = vld [vmem:[%s1265] sm:$0x1]
    %s1267 = scalar_lea.vmem [#allocation1], 305
    %v1268 = vld [vmem:[%s1267] sm:$0x2]
    %vm1269 = vcmask 1041409
    %v1270 = vsel %vm1269, %v1268, %v1266
    %s1271 = scalar_lea.vmem [#allocation1], 336
    %v1272 = vld [vmem:[%s1271] sm:$0x4]
    %vm1273 = vcmask 1042434
    %v1274 = vsel %vm1273, %v1272, %v1270
    %s1275 = scalar_lea.vmem [#allocation1], 367
    %v1276 = vld [vmem:[%s1275] sm:$0x8]
    %vm1277 = vcmask 1043459
    %v1278 = vsel %vm1277, %v1276, %v1274
    %s1279 = scalar_lea.vmem [#allocation1], 398
    %v1280 = vld [vmem:[%s1279] sm:$0x10]
    %vm1281 = vcmask 1044484
    %v1282 = vsel %vm1281, %v1280, %v1278
    %s1283 = scalar_lea.vmem [#allocation1], 429
    %v1284 = vld [vmem:[%s1283] sm:$0x20]
    %vm1285 = vcmask 1045509
    %v1286 = vsel %vm1285, %v1284, %v1282
    %s1287 = scalar_lea.vmem [#allocation1], 460
    %v1288 = vld [vmem:[%s1287] sm:$0x40]
    %vm1289 = vcmask 1046534
    %v1290 = vsel %vm1289, %v1288, %v1286
    %s1291 = scalar_lea.vmem [#allocation1], 491
    %v1292 = vld [vmem:[%s1291] sm:$0x80]
    %vm1293 = vcmask 1047559
    %v1294 = vsel %vm1293, %v1292, %v1290
    %1295 = vrot.lane.b32.xlu0 %v1294, 120
    %v1296 = vpop.permute.xlu0 %1295
    %vm1297 = vcmask 1048512
    %s1298 = scalar_lea.vmem [#allocation0], 80
    %1299 = vst.msk [vmem:[%s1298] sm:$0xff] %vm1297, %v1296
    %s1300 = scalar_lea.vmem [#allocation1], 274
    %v1301 = vld [vmem:[%s1300] sm:$0x1]
    %s1302 = scalar_lea.vmem [#allocation1], 305
    %v1303 = vld [vmem:[%s1302] sm:$0x2]
    %vm1304 = vcmask 1041409
    %v1305 = vsel %vm1304, %v1303, %v1301
    %s1306 = scalar_lea.vmem [#allocation1], 336
    %v1307 = vld [vmem:[%s1306] sm:$0x4]
    %vm1308 = vcmask 1042434
    %v1309 = vsel %vm1308, %v1307, %v1305
    %s1310 = scalar_lea.vmem [#allocation1], 367
    %v1311 = vld [vmem:[%s1310] sm:$0x8]
    %vm1312 = vcmask 1043459
    %v1313 = vsel %vm1312, %v1311, %v1309
    %s1314 = scalar_lea.vmem [#allocation1], 398
    %v1315 = vld [vmem:[%s1314] sm:$0x10]
    %vm1316 = vcmask 1044484
    %v1317 = vsel %vm1316, %v1315, %v1313
    %s1318 = scalar_lea.vmem [#allocation1], 429
    %v1319 = vld [vmem:[%s1318] sm:$0x20]
    %vm1320 = vcmask 1045509
    %v1321 = vsel %vm1320, %v1319, %v1317
    %s1322 = scalar_lea.vmem [#allocation1], 460
    %v1323 = vld [vmem:[%s1322] sm:$0x40]
    %vm1324 = vcmask 1046534
    %v1325 = vsel %vm1324, %v1323, %v1321
    %s1326 = scalar_lea.vmem [#allocation1], 491
    %v1327 = vld [vmem:[%s1326] sm:$0x80]
    %vm1328 = vcmask 1047559
    %v1329 = vsel %vm1328, %v1327, %v1325
    %1330 = vrot.lane.b32.xlu0 %v1329, 120
    %v1331 = vpop.permute.xlu0 %1330
    %vm1332 = vcmask 162816
    %s1333 = scalar_lea.vmem [#allocation0], 88
    %1334 = vst.msk [vmem:[%s1333] sm:$0xff] %vm1332, %v1331
    %s1335 = scalar_lea.vmem [#allocation1], 18
    %v1336 = vld [vmem:[%s1335] sm:$0x1]
    %s1337 = scalar_lea.vmem [#allocation1], 49
    %v1338 = vld [vmem:[%s1337] sm:$0x2]
    %vm1339 = vcmask 1041409
    %v1340 = vsel %vm1339, %v1338, %v1336
    %s1341 = scalar_lea.vmem [#allocation1], 80
    %v1342 = vld [vmem:[%s1341] sm:$0x4]
    %vm1343 = vcmask 1042434
    %v1344 = vsel %vm1343, %v1342, %v1340
    %s1345 = scalar_lea.vmem [#allocation1], 111
    %v1346 = vld [vmem:[%s1345] sm:$0x8]
    %vm1347 = vcmask 1043459
    %v1348 = vsel %vm1347, %v1346, %v1344
    %s1349 = scalar_lea.vmem [#allocation1], 142
    %v1350 = vld [vmem:[%s1349] sm:$0x10]
    %vm1351 = vcmask 1044484
    %v1352 = vsel %vm1351, %v1350, %v1348
    %s1353 = scalar_lea.vmem [#allocation1], 173
    %v1354 = vld [vmem:[%s1353] sm:$0x20]
    %vm1355 = vcmask 1045509
    %v1356 = vsel %vm1355, %v1354, %v1352
    %s1357 = scalar_lea.vmem [#allocation1], 204
    %v1358 = vld [vmem:[%s1357] sm:$0x40]
    %vm1359 = vcmask 1046534
    %v1360 = vsel %vm1359, %v1358, %v1356
    %s1361 = scalar_lea.vmem [#allocation1], 235
    %v1362 = vld [vmem:[%s1361] sm:$0x80]
    %vm1363 = vcmask 1047559
    %v1364 = vsel %vm1363, %v1362, %v1360
    %1365 = vrot.lane.b32.xlu0 %v1364, 120
    %v1366 = vpop.permute.xlu0 %1365
    %vm1367 = vcmask 1048512
    %s1368 = scalar_lea.vmem [#allocation0], 24
    %1369 = vst.msk [vmem:[%s1368] sm:$0xff] %vm1367, %v1366
    %s1370 = scalar_lea.vmem [#allocation1], 283
    %v1371 = vld [vmem:[%s1370] sm:$0x1]
    %s1372 = scalar_lea.vmem [#allocation1], 314
    %v1373 = vld [vmem:[%s1372] sm:$0x2]
    %vm1374 = vcmask 1041409
    %v1375 = vsel %vm1374, %v1373, %v1371
    %s1376 = scalar_lea.vmem [#allocation1], 345
    %v1377 = vld [vmem:[%s1376] sm:$0x4]
    %vm1378 = vcmask 1042434
    %v1379 = vsel %vm1378, %v1377, %v1375
    %s1380 = scalar_lea.vmem [#allocation1], 376
    %v1381 = vld [vmem:[%s1380] sm:$0x8]
    %vm1382 = vcmask 1043459
    %v1383 = vsel %vm1382, %v1381, %v1379
    %s1384 = scalar_lea.vmem [#allocation1], 407
    %v1385 = vld [vmem:[%s1384] sm:$0x10]
    %vm1386 = vcmask 1044484
    %v1387 = vsel %vm1386, %v1385, %v1383
    %s1388 = scalar_lea.vmem [#allocation1], 438
    %v1389 = vld [vmem:[%s1388] sm:$0x20]
    %vm1390 = vcmask 1045509
    %v1391 = vsel %vm1390, %v1389, %v1387
    %s1392 = scalar_lea.vmem [#allocation1], 469
    %v1393 = vld [vmem:[%s1392] sm:$0x40]
    %vm1394 = vcmask 1046534
    %v1395 = vsel %vm1394, %v1393, %v1391
    %s1396 = scalar_lea.vmem [#allocation1], 500
    %v1397 = vld [vmem:[%s1396] sm:$0x80]
    %vm1398 = vcmask 1047559
    %v1399 = vsel %vm1398, %v1397, %v1395
    %1400 = vrot.lane.b32.xlu0 %v1399, 116
    %v1401 = vpop.permute.xlu0 %1400
    %vm1402 = vcmask 130048
    %s1403 = scalar_lea.vmem [#allocation0], 104
    %1404 = vst.msk [vmem:[%s1403] sm:$0xff] %vm1402, %v1401
    %s1405 = scalar_lea.vmem [#allocation1], 283
    %v1406 = vld [vmem:[%s1405] sm:$0x1]
    %s1407 = scalar_lea.vmem [#allocation1], 314
    %v1408 = vld [vmem:[%s1407] sm:$0x2]
    %vm1409 = vcmask 1041409
    %v1410 = vsel %vm1409, %v1408, %v1406
    %s1411 = scalar_lea.vmem [#allocation1], 345
    %v1412 = vld [vmem:[%s1411] sm:$0x4]
    %vm1413 = vcmask 1042434
    %v1414 = vsel %vm1413, %v1412, %v1410
    %s1415 = scalar_lea.vmem [#allocation1], 376
    %v1416 = vld [vmem:[%s1415] sm:$0x8]
    %vm1417 = vcmask 1043459
    %v1418 = vsel %vm1417, %v1416, %v1414
    %s1419 = scalar_lea.vmem [#allocation1], 407
    %v1420 = vld [vmem:[%s1419] sm:$0x10]
    %vm1421 = vcmask 1044484
    %v1422 = vsel %vm1421, %v1420, %v1418
    %s1423 = scalar_lea.vmem [#allocation1], 438
    %v1424 = vld [vmem:[%s1423] sm:$0x20]
    %vm1425 = vcmask 1045509
    %v1426 = vsel %vm1425, %v1424, %v1422
    %s1427 = scalar_lea.vmem [#allocation1], 469
    %v1428 = vld [vmem:[%s1427] sm:$0x40]
    %vm1429 = vcmask 1046534
    %v1430 = vsel %vm1429, %v1428, %v1426
    %s1431 = scalar_lea.vmem [#allocation1], 500
    %v1432 = vld [vmem:[%s1431] sm:$0x80]
    %vm1433 = vcmask 1047559
    %v1434 = vsel %vm1433, %v1432, %v1430
    %1435 = vrot.lane.b32.xlu0 %v1434, 116
    %v1436 = vpop.permute.xlu0 %1435
    %vm1437 = vcmask 1048480
    %s1438 = scalar_lea.vmem [#allocation0], 96
    %1439 = vst.msk [vmem:[%s1438] sm:$0xff] %vm1437, %v1436
    %s1440 = scalar_lea.vmem [#allocation1], 27
    %v1441 = vld [vmem:[%s1440] sm:$0x1]
    %s1442 = scalar_lea.vmem [#allocation1], 58
    %v1443 = vld [vmem:[%s1442] sm:$0x2]
    %vm1444 = vcmask 1041409
    %v1445 = vsel %vm1444, %v1443, %v1441
    %s1446 = scalar_lea.vmem [#allocation1], 89
    %v1447 = vld [vmem:[%s1446] sm:$0x4]
    %vm1448 = vcmask 1042434
    %v1449 = vsel %vm1448, %v1447, %v1445
    %s1450 = scalar_lea.vmem [#allocation1], 120
    %v1451 = vld [vmem:[%s1450] sm:$0x8]
    %vm1452 = vcmask 1043459
    %v1453 = vsel %vm1452, %v1451, %v1449
    %s1454 = scalar_lea.vmem [#allocation1], 151
    %v1455 = vld [vmem:[%s1454] sm:$0x10]
    %vm1456 = vcmask 1044484
    %v1457 = vsel %vm1456, %v1455, %v1453
    %s1458 = scalar_lea.vmem [#allocation1], 182
    %v1459 = vld [vmem:[%s1458] sm:$0x20]
    %vm1460 = vcmask 1045509
    %v1461 = vsel %vm1460, %v1459, %v1457
    %s1462 = scalar_lea.vmem [#allocation1], 213
    %v1463 = vld [vmem:[%s1462] sm:$0x40]
    %vm1464 = vcmask 1046534
    %v1465 = vsel %vm1464, %v1463, %v1461
    %s1466 = scalar_lea.vmem [#allocation1], 244
    %v1467 = vld [vmem:[%s1466] sm:$0x80]
    %vm1468 = vcmask 1047559
    %v1469 = vsel %vm1468, %v1467, %v1465
    %1470 = vrot.lane.b32.xlu0 %v1469, 116
    %v1471 = vpop.permute.xlu0 %1470
    %vm1472 = vcmask 130048
    %s1473 = scalar_lea.vmem [#allocation0], 48
    %1474 = vst.msk [vmem:[%s1473] sm:$0xff] %vm1472, %v1471
    %s1475 = scalar_lea.vmem [#allocation1], 27
    %v1476 = vld [vmem:[%s1475] sm:$0x1]
    %s1477 = scalar_lea.vmem [#allocation1], 58
    %v1478 = vld [vmem:[%s1477] sm:$0x2]
    %vm1479 = vcmask 1041409
    %v1480 = vsel %vm1479, %v1478, %v1476
    %s1481 = scalar_lea.vmem [#allocation1], 89
    %v1482 = vld [vmem:[%s1481] sm:$0x4]
    %vm1483 = vcmask 1042434
    %v1484 = vsel %vm1483, %v1482, %v1480
    %s1485 = scalar_lea.vmem [#allocation1], 120
    %v1486 = vld [vmem:[%s1485] sm:$0x8]
    %vm1487 = vcmask 1043459
    %v1488 = vsel %vm1487, %v1486, %v1484
    %s1489 = scalar_lea.vmem [#allocation1], 151
    %v1490 = vld [vmem:[%s1489] sm:$0x10]
    %vm1491 = vcmask 1044484
    %v1492 = vsel %vm1491, %v1490, %v1488
    %s1493 = scalar_lea.vmem [#allocation1], 182
    %v1494 = vld [vmem:[%s1493] sm:$0x20]
    %vm1495 = vcmask 1045509
    %v1496 = vsel %vm1495, %v1494, %v1492
    %s1497 = scalar_lea.vmem [#allocation1], 213
    %v1498 = vld [vmem:[%s1497] sm:$0x40]
    %vm1499 = vcmask 1046534
    %v1500 = vsel %vm1499, %v1498, %v1496
    %s1501 = scalar_lea.vmem [#allocation1], 244
    %v1502 = vld [vmem:[%s1501] sm:$0x80]
    %vm1503 = vcmask 1047559
    %v1504 = vsel %vm1503, %v1502, %v1500
    %1505 = vrot.lane.b32.xlu0 %v1504, 116
    %v1506 = vpop.permute.xlu0 %1505
    %vm1507 = vcmask 1048480
    %s1508 = scalar_lea.vmem [#allocation0], 40
    %1509 = vst.msk [vmem:[%s1508] sm:$0xff] %vm1507, %v1506
    %s1510 = scalar_lea.vmem [#allocation1], 260
    %v1511 = vld [vmem:[%s1510] sm:$0x1]
    %s1512 = scalar_lea.vmem [#allocation1], 291
    %v1513 = vld [vmem:[%s1512] sm:$0x2]
    %vm1514 = vcmask 1041409
    %v1515 = vsel %vm1514, %v1513, %v1511
    %s1516 = scalar_lea.vmem [#allocation1], 322
    %v1517 = vld [vmem:[%s1516] sm:$0x4]
    %vm1518 = vcmask 1042434
    %v1519 = vsel %vm1518, %v1517, %v1515
    %s1520 = scalar_lea.vmem [#allocation1], 353
    %v1521 = vld [vmem:[%s1520] sm:$0x8]
    %vm1522 = vcmask 1043459
    %v1523 = vsel %vm1522, %v1521, %v1519
    %s1524 = scalar_lea.vmem [#allocation1], 384
    %v1525 = vld [vmem:[%s1524] sm:$0x10]
    %vm1526 = vcmask 1044484
    %v1527 = vsel %vm1526, %v1525, %v1523
    %s1528 = scalar_lea.vmem [#allocation1], 415
    %v1529 = vld [vmem:[%s1528] sm:$0x20]
    %vm1530 = vcmask 1045509
    %v1531 = vsel %vm1530, %v1529, %v1527
    %s1532 = scalar_lea.vmem [#allocation1], 446
    %v1533 = vld [vmem:[%s1532] sm:$0x40]
    %vm1534 = vcmask 1046534
    %v1535 = vsel %vm1534, %v1533, %v1531
    %s1536 = scalar_lea.vmem [#allocation1], 477
    %v1537 = vld [vmem:[%s1536] sm:$0x80]
    %vm1538 = vcmask 1047559
    %v1539 = vsel %vm1538, %v1537, %v1535
    %1540 = vrot.lane.b32.xlu0 %v1539, 112
    %v1541 = vpop.permute.xlu0 %1540
    %vm1542 = vcmask 97280
    %s1543 = scalar_lea.vmem [#allocation0], 64
    %1544 = vst.msk [vmem:[%s1543] sm:$0xff] %vm1542, %v1541
    %s1545 = scalar_lea.vmem [#allocation1], 4
    %v1546 = vld [vmem:[%s1545] sm:$0x1]
    %s1547 = scalar_lea.vmem [#allocation1], 35
    %v1548 = vld [vmem:[%s1547] sm:$0x2]
    %vm1549 = vcmask 1041409
    %v1550 = vsel %vm1549, %v1548, %v1546
    %s1551 = scalar_lea.vmem [#allocation1], 66
    %v1552 = vld [vmem:[%s1551] sm:$0x4]
    %vm1553 = vcmask 1042434
    %v1554 = vsel %vm1553, %v1552, %v1550
    %s1555 = scalar_lea.vmem [#allocation1], 97
    %v1556 = vld [vmem:[%s1555] sm:$0x8]
    %vm1557 = vcmask 1043459
    %v1558 = vsel %vm1557, %v1556, %v1554
    %s1559 = scalar_lea.vmem [#allocation1], 128
    %v1560 = vld [vmem:[%s1559] sm:$0x10]
    %vm1561 = vcmask 1044484
    %v1562 = vsel %vm1561, %v1560, %v1558
    %s1563 = scalar_lea.vmem [#allocation1], 159
    %v1564 = vld [vmem:[%s1563] sm:$0x20]
    %vm1565 = vcmask 1045509
    %v1566 = vsel %vm1565, %v1564, %v1562
    %s1567 = scalar_lea.vmem [#allocation1], 190
    %v1568 = vld [vmem:[%s1567] sm:$0x40]
    %vm1569 = vcmask 1046534
    %v1570 = vsel %vm1569, %v1568, %v1566
    %s1571 = scalar_lea.vmem [#allocation1], 221
    %v1572 = vld [vmem:[%s1571] sm:$0x80]
    %vm1573 = vcmask 1047559
    %v1574 = vsel %vm1573, %v1572, %v1570
    %1575 = vrot.lane.b32.xlu0 %v1574, 112
    %v1576 = vpop.permute.xlu0 %1575
    %vm1577 = vcmask 1048448
    %1578 = vst.msk [vmem:[#allocation0] sm:$0xff] %vm1577, %v1576
    %s1579 = scalar_lea.vmem [#allocation1], 4
    %v1580 = vld [vmem:[%s1579] sm:$0x1]
    %s1581 = scalar_lea.vmem [#allocation1], 35
    %v1582 = vld [vmem:[%s1581] sm:$0x2]
    %vm1583 = vcmask 1041409
    %v1584 = vsel %vm1583, %v1582, %v1580
    %s1585 = scalar_lea.vmem [#allocation1], 66
    %v1586 = vld [vmem:[%s1585] sm:$0x4]
    %vm1587 = vcmask 1042434
    %v1588 = vsel %vm1587, %v1586, %v1584
    %s1589 = scalar_lea.vmem [#allocation1], 97
    %v1590 = vld [vmem:[%s1589] sm:$0x8]
    %vm1591 = vcmask 1043459
    %v1592 = vsel %vm1591, %v1590, %v1588
    %s1593 = scalar_lea.vmem [#allocation1], 128
    %v1594 = vld [vmem:[%s1593] sm:$0x10]
    %vm1595 = vcmask 1044484
    %v1596 = vsel %vm1595, %v1594, %v1592
    %s1597 = scalar_lea.vmem [#allocation1], 159
    %v1598 = vld [vmem:[%s1597] sm:$0x20]
    %vm1599 = vcmask 1045509
    %v1600 = vsel %vm1599, %v1598, %v1596
    %s1601 = scalar_lea.vmem [#allocation1], 190
    %v1602 = vld [vmem:[%s1601] sm:$0x40]
    %vm1603 = vcmask 1046534
    %v1604 = vsel %vm1603, %v1602, %v1600
    %s1605 = scalar_lea.vmem [#allocation1], 221
    %v1606 = vld [vmem:[%s1605] sm:$0x80]
    %vm1607 = vcmask 1047559
    %v1608 = vsel %vm1607, %v1606, %v1604
    %1609 = vrot.lane.b32.xlu0 %v1608, 112
    %v1610 = vpop.permute.xlu0 %1609
    %vm1611 = vcmask 97280
    %s1612 = scalar_lea.vmem [#allocation0], 8
    %1613 = vst.msk [vmem:[%s1612] sm:$0xff] %vm1611, %v1610
    %s1614 = scalar_lea.vmem [#allocation1], 260
    %v1615 = vld [vmem:[%s1614] sm:$0x1]
    %s1616 = scalar_lea.vmem [#allocation1], 291
    %v1617 = vld [vmem:[%s1616] sm:$0x2]
    %vm1618 = vcmask 1041409
    %v1619 = vsel %vm1618, %v1617, %v1615
    %s1620 = scalar_lea.vmem [#allocation1], 322
    %v1621 = vld [vmem:[%s1620] sm:$0x4]
    %vm1622 = vcmask 1042434
    %v1623 = vsel %vm1622, %v1621, %v1619
    %s1624 = scalar_lea.vmem [#allocation1], 353
    %v1625 = vld [vmem:[%s1624] sm:$0x8]
    %vm1626 = vcmask 1043459
    %v1627 = vsel %vm1626, %v1625, %v1623
    %s1628 = scalar_lea.vmem [#allocation1], 384
    %v1629 = vld [vmem:[%s1628] sm:$0x10]
    %vm1630 = vcmask 1044484
    %v1631 = vsel %vm1630, %v1629, %v1627
    %s1632 = scalar_lea.vmem [#allocation1], 415
    %v1633 = vld [vmem:[%s1632] sm:$0x20]
    %vm1634 = vcmask 1045509
    %v1635 = vsel %vm1634, %v1633, %v1631
    %s1636 = scalar_lea.vmem [#allocation1], 446
    %v1637 = vld [vmem:[%s1636] sm:$0x40]
    %vm1638 = vcmask 1046534
    %v1639 = vsel %vm1638, %v1637, %v1635
    %s1640 = scalar_lea.vmem [#allocation1], 477
    %v1641 = vld [vmem:[%s1640] sm:$0x80]
    %vm1642 = vcmask 1047559
    %v1643 = vsel %vm1642, %v1641, %v1639
    %1644 = vrot.lane.b32.xlu0 %v1643, 112
    %v1645 = vpop.permute.xlu0 %1644
    %vm1646 = vcmask 1048448
    %s1647 = scalar_lea.vmem [#allocation0], 56
    %1648 = vst.msk [vmem:[%s1647] sm:$0xff] %vm1646, %v1645
    %s1649 = scalar_lea.vmem [#allocation1], 269
    %v1650 = vld [vmem:[%s1649] sm:$0x1]
    %s1651 = scalar_lea.vmem [#allocation1], 300
    %v1652 = vld [vmem:[%s1651] sm:$0x2]
    %vm1653 = vcmask 1041409
    %v1654 = vsel %vm1653, %v1652, %v1650
    %s1655 = scalar_lea.vmem [#allocation1], 331
    %v1656 = vld [vmem:[%s1655] sm:$0x4]
    %vm1657 = vcmask 1042434
    %v1658 = vsel %vm1657, %v1656, %v1654
    %s1659 = scalar_lea.vmem [#allocation1], 362
    %v1660 = vld [vmem:[%s1659] sm:$0x8]
    %vm1661 = vcmask 1043459
    %v1662 = vsel %vm1661, %v1660, %v1658
    %s1663 = scalar_lea.vmem [#allocation1], 393
    %v1664 = vld [vmem:[%s1663] sm:$0x10]
    %vm1665 = vcmask 1044484
    %v1666 = vsel %vm1665, %v1664, %v1662
    %s1667 = scalar_lea.vmem [#allocation1], 424
    %v1668 = vld [vmem:[%s1667] sm:$0x20]
    %vm1669 = vcmask 1045509
    %v1670 = vsel %vm1669, %v1668, %v1666
    %s1671 = scalar_lea.vmem [#allocation1], 455
    %v1672 = vld [vmem:[%s1671] sm:$0x40]
    %vm1673 = vcmask 1046534
    %v1674 = vsel %vm1673, %v1672, %v1670
    %s1675 = scalar_lea.vmem [#allocation1], 486
    %v1676 = vld [vmem:[%s1675] sm:$0x80]
    %vm1677 = vcmask 1047559
    %v1678 = vsel %vm1677, %v1676, %v1674
    %1679 = vrot.lane.b32.xlu0 %v1678, 108
    %v1680 = vpop.permute.xlu0 %1679
    %vm1681 = vcmask 64512
    %s1682 = scalar_lea.vmem [#allocation0], 80
    %1683 = vst.msk [vmem:[%s1682] sm:$0xff] %vm1681, %v1680
    %s1684 = scalar_lea.vmem [#allocation1], 269
    %v1685 = vld [vmem:[%s1684] sm:$0x1]
    %s1686 = scalar_lea.vmem [#allocation1], 300
    %v1687 = vld [vmem:[%s1686] sm:$0x2]
    %vm1688 = vcmask 1041409
    %v1689 = vsel %vm1688, %v1687, %v1685
    %s1690 = scalar_lea.vmem [#allocation1], 331
    %v1691 = vld [vmem:[%s1690] sm:$0x4]
    %vm1692 = vcmask 1042434
    %v1693 = vsel %vm1692, %v1691, %v1689
    %s1694 = scalar_lea.vmem [#allocation1], 362
    %v1695 = vld [vmem:[%s1694] sm:$0x8]
    %vm1696 = vcmask 1043459
    %v1697 = vsel %vm1696, %v1695, %v1693
    %s1698 = scalar_lea.vmem [#allocation1], 393
    %v1699 = vld [vmem:[%s1698] sm:$0x10]
    %vm1700 = vcmask 1044484
    %v1701 = vsel %vm1700, %v1699, %v1697
    %s1702 = scalar_lea.vmem [#allocation1], 424
    %v1703 = vld [vmem:[%s1702] sm:$0x20]
    %vm1704 = vcmask 1045509
    %v1705 = vsel %vm1704, %v1703, %v1701
    %s1706 = scalar_lea.vmem [#allocation1], 455
    %v1707 = vld [vmem:[%s1706] sm:$0x40]
    %vm1708 = vcmask 1046534
    %v1709 = vsel %vm1708, %v1707, %v1705
    %s1710 = scalar_lea.vmem [#allocation1], 486
    %v1711 = vld [vmem:[%s1710] sm:$0x80]
    %vm1712 = vcmask 1047559
    %v1713 = vsel %vm1712, %v1711, %v1709
    %1714 = vrot.lane.b32.xlu0 %v1713, 108
    %v1715 = vpop.permute.xlu0 %1714
    %vm1716 = vcmask 1048416
    %s1717 = scalar_lea.vmem [#allocation0], 72
    %1718 = vst.msk [vmem:[%s1717] sm:$0xff] %vm1716, %v1715
    %s1719 = scalar_lea.vmem [#allocation1], 13
    %v1720 = vld [vmem:[%s1719] sm:$0x1]
    %s1721 = scalar_lea.vmem [#allocation1], 44
    %v1722 = vld [vmem:[%s1721] sm:$0x2]
    %vm1723 = vcmask 1041409
    %v1724 = vsel %vm1723, %v1722, %v1720
    %s1725 = scalar_lea.vmem [#allocation1], 75
    %v1726 = vld [vmem:[%s1725] sm:$0x4]
    %vm1727 = vcmask 1042434
    %v1728 = vsel %vm1727, %v1726, %v1724
    %s1729 = scalar_lea.vmem [#allocation1], 106
    %v1730 = vld [vmem:[%s1729] sm:$0x8]
    %vm1731 = vcmask 1043459
    %v1732 = vsel %vm1731, %v1730, %v1728
    %s1733 = scalar_lea.vmem [#allocation1], 137
    %v1734 = vld [vmem:[%s1733] sm:$0x10]
    %vm1735 = vcmask 1044484
    %v1736 = vsel %vm1735, %v1734, %v1732
    %s1737 = scalar_lea.vmem [#allocation1], 168
    %v1738 = vld [vmem:[%s1737] sm:$0x20]
    %vm1739 = vcmask 1045509
    %v1740 = vsel %vm1739, %v1738, %v1736
    %s1741 = scalar_lea.vmem [#allocation1], 199
    %v1742 = vld [vmem:[%s1741] sm:$0x40]
    %vm1743 = vcmask 1046534
    %v1744 = vsel %vm1743, %v1742, %v1740
    %s1745 = scalar_lea.vmem [#allocation1], 230
    %v1746 = vld [vmem:[%s1745] sm:$0x80]
    %vm1747 = vcmask 1047559
    %v1748 = vsel %vm1747, %v1746, %v1744
    %1749 = vrot.lane.b32.xlu0 %v1748, 108
    %v1750 = vpop.permute.xlu0 %1749
    %vm1751 = vcmask 64512
    %s1752 = scalar_lea.vmem [#allocation0], 24
    %1753 = vst.msk [vmem:[%s1752] sm:$0xff] %vm1751, %v1750
    %s1754 = scalar_lea.vmem [#allocation1], 13
    %v1755 = vld [vmem:[%s1754] sm:$0x1]
    %s1756 = scalar_lea.vmem [#allocation1], 44
    %v1757 = vld [vmem:[%s1756] sm:$0x2]
    %vm1758 = vcmask 1041409
    %v1759 = vsel %vm1758, %v1757, %v1755
    %s1760 = scalar_lea.vmem [#allocation1], 75
    %v1761 = vld [vmem:[%s1760] sm:$0x4]
    %vm1762 = vcmask 1042434
    %v1763 = vsel %vm1762, %v1761, %v1759
    %s1764 = scalar_lea.vmem [#allocation1], 106
    %v1765 = vld [vmem:[%s1764] sm:$0x8]
    %vm1766 = vcmask 1043459
    %v1767 = vsel %vm1766, %v1765, %v1763
    %s1768 = scalar_lea.vmem [#allocation1], 137
    %v1769 = vld [vmem:[%s1768] sm:$0x10]
    %vm1770 = vcmask 1044484
    %v1771 = vsel %vm1770, %v1769, %v1767
    %s1772 = scalar_lea.vmem [#allocation1], 168
    %v1773 = vld [vmem:[%s1772] sm:$0x20]
    %vm1774 = vcmask 1045509
    %v1775 = vsel %vm1774, %v1773, %v1771
    %s1776 = scalar_lea.vmem [#allocation1], 199
    %v1777 = vld [vmem:[%s1776] sm:$0x40]
    %vm1778 = vcmask 1046534
    %v1779 = vsel %vm1778, %v1777, %v1775
    %s1780 = scalar_lea.vmem [#allocation1], 230
    %v1781 = vld [vmem:[%s1780] sm:$0x80]
    %vm1782 = vcmask 1047559
    %v1783 = vsel %vm1782, %v1781, %v1779
    %1784 = vrot.lane.b32.xlu0 %v1783, 108
    %v1785 = vpop.permute.xlu0 %1784
    %vm1786 = vcmask 1048416
    %s1787 = scalar_lea.vmem [#allocation0], 16
    %1788 = vst.msk [vmem:[%s1787] sm:$0xff] %vm1786, %v1785
    %s1789 = scalar_lea.vmem [#allocation1], 278
    %v1790 = vld [vmem:[%s1789] sm:$0x1]
    %s1791 = scalar_lea.vmem [#allocation1], 309
    %v1792 = vld [vmem:[%s1791] sm:$0x2]
    %vm1793 = vcmask 1041409
    %v1794 = vsel %vm1793, %v1792, %v1790
    %s1795 = scalar_lea.vmem [#allocation1], 340
    %v1796 = vld [vmem:[%s1795] sm:$0x4]
    %vm1797 = vcmask 1042434
    %v1798 = vsel %vm1797, %v1796, %v1794
    %s1799 = scalar_lea.vmem [#allocation1], 371
    %v1800 = vld [vmem:[%s1799] sm:$0x8]
    %vm1801 = vcmask 1043459
    %v1802 = vsel %vm1801, %v1800, %v1798
    %s1803 = scalar_lea.vmem [#allocation1], 402
    %v1804 = vld [vmem:[%s1803] sm:$0x10]
    %vm1805 = vcmask 1044484
    %v1806 = vsel %vm1805, %v1804, %v1802
    %s1807 = scalar_lea.vmem [#allocation1], 433
    %v1808 = vld [vmem:[%s1807] sm:$0x20]
    %vm1809 = vcmask 1045509
    %v1810 = vsel %vm1809, %v1808, %v1806
    %s1811 = scalar_lea.vmem [#allocation1], 464
    %v1812 = vld [vmem:[%s1811] sm:$0x40]
    %vm1813 = vcmask 1046534
    %v1814 = vsel %vm1813, %v1812, %v1810
    %s1815 = scalar_lea.vmem [#allocation1], 495
    %v1816 = vld [vmem:[%s1815] sm:$0x80]
    %vm1817 = vcmask 1047559
    %v1818 = vsel %vm1817, %v1816, %v1814
    %1819 = vrot.lane.b32.xlu0 %v1818, 104
    %v1820 = vpop.permute.xlu0 %1819
    %vm1821 = vcmask 31744
    %s1822 = scalar_lea.vmem [#allocation0], 96
    %1823 = vst.msk [vmem:[%s1822] sm:$0xff] %vm1821, %v1820
    %s1824 = scalar_lea.vmem [#allocation1], 22
    %v1825 = vld [vmem:[%s1824] sm:$0x1]
    %s1826 = scalar_lea.vmem [#allocation1], 53
    %v1827 = vld [vmem:[%s1826] sm:$0x2]
    %vm1828 = vcmask 1041409
    %v1829 = vsel %vm1828, %v1827, %v1825
    %s1830 = scalar_lea.vmem [#allocation1], 84
    %v1831 = vld [vmem:[%s1830] sm:$0x4]
    %vm1832 = vcmask 1042434
    %v1833 = vsel %vm1832, %v1831, %v1829
    %s1834 = scalar_lea.vmem [#allocation1], 115
    %v1835 = vld [vmem:[%s1834] sm:$0x8]
    %vm1836 = vcmask 1043459
    %v1837 = vsel %vm1836, %v1835, %v1833
    %s1838 = scalar_lea.vmem [#allocation1], 146
    %v1839 = vld [vmem:[%s1838] sm:$0x10]
    %vm1840 = vcmask 1044484
    %v1841 = vsel %vm1840, %v1839, %v1837
    %s1842 = scalar_lea.vmem [#allocation1], 177
    %v1843 = vld [vmem:[%s1842] sm:$0x20]
    %vm1844 = vcmask 1045509
    %v1845 = vsel %vm1844, %v1843, %v1841
    %s1846 = scalar_lea.vmem [#allocation1], 208
    %v1847 = vld [vmem:[%s1846] sm:$0x40]
    %vm1848 = vcmask 1046534
    %v1849 = vsel %vm1848, %v1847, %v1845
    %s1850 = scalar_lea.vmem [#allocation1], 239
    %v1851 = vld [vmem:[%s1850] sm:$0x80]
    %vm1852 = vcmask 1047559
    %v1853 = vsel %vm1852, %v1851, %v1849
    %1854 = vrot.lane.b32.xlu0 %v1853, 104
    %v1855 = vpop.permute.xlu0 %1854
    %vm1856 = vcmask 1048384
    %s1857 = scalar_lea.vmem [#allocation0], 32
    %1858 = vst.msk [vmem:[%s1857] sm:$0xff] %vm1856, %v1855
    %s1859 = scalar_lea.vmem [#allocation1], 22
    %v1860 = vld [vmem:[%s1859] sm:$0x1]
    %s1861 = scalar_lea.vmem [#allocation1], 53
    %v1862 = vld [vmem:[%s1861] sm:$0x2]
    %vm1863 = vcmask 1041409
    %v1864 = vsel %vm1863, %v1862, %v1860
    %s1865 = scalar_lea.vmem [#allocation1], 84
    %v1866 = vld [vmem:[%s1865] sm:$0x4]
    %vm1867 = vcmask 1042434
    %v1868 = vsel %vm1867, %v1866, %v1864
    %s1869 = scalar_lea.vmem [#allocation1], 115
    %v1870 = vld [vmem:[%s1869] sm:$0x8]
    %vm1871 = vcmask 1043459
    %v1872 = vsel %vm1871, %v1870, %v1868
    %s1873 = scalar_lea.vmem [#allocation1], 146
    %v1874 = vld [vmem:[%s1873] sm:$0x10]
    %vm1875 = vcmask 1044484
    %v1876 = vsel %vm1875, %v1874, %v1872
    %s1877 = scalar_lea.vmem [#allocation1], 177
    %v1878 = vld [vmem:[%s1877] sm:$0x20]
    %vm1879 = vcmask 1045509
    %v1880 = vsel %vm1879, %v1878, %v1876
    %s1881 = scalar_lea.vmem [#allocation1], 208
    %v1882 = vld [vmem:[%s1881] sm:$0x40]
    %vm1883 = vcmask 1046534
    %v1884 = vsel %vm1883, %v1882, %v1880
    %s1885 = scalar_lea.vmem [#allocation1], 239
    %v1886 = vld [vmem:[%s1885] sm:$0x80]
    %vm1887 = vcmask 1047559
    %v1888 = vsel %vm1887, %v1886, %v1884
    %1889 = vrot.lane.b32.xlu0 %v1888, 104
    %v1890 = vpop.permute.xlu0 %1889
    %vm1891 = vcmask 31744
    %s1892 = scalar_lea.vmem [#allocation0], 40
    %1893 = vst.msk [vmem:[%s1892] sm:$0xff] %vm1891, %v1890
    %s1894 = scalar_lea.vmem [#allocation1], 278
    %v1895 = vld [vmem:[%s1894] sm:$0x1]
    %s1896 = scalar_lea.vmem [#allocation1], 309
    %v1897 = vld [vmem:[%s1896] sm:$0x2]
    %vm1898 = vcmask 1041409
    %v1899 = vsel %vm1898, %v1897, %v1895
    %s1900 = scalar_lea.vmem [#allocation1], 340
    %v1901 = vld [vmem:[%s1900] sm:$0x4]
    %vm1902 = vcmask 1042434
    %v1903 = vsel %vm1902, %v1901, %v1899
    %s1904 = scalar_lea.vmem [#allocation1], 371
    %v1905 = vld [vmem:[%s1904] sm:$0x8]
    %vm1906 = vcmask 1043459
    %v1907 = vsel %vm1906, %v1905, %v1903
    %s1908 = scalar_lea.vmem [#allocation1], 402
    %v1909 = vld [vmem:[%s1908] sm:$0x10]
    %vm1910 = vcmask 1044484
    %v1911 = vsel %vm1910, %v1909, %v1907
    %s1912 = scalar_lea.vmem [#allocation1], 433
    %v1913 = vld [vmem:[%s1912] sm:$0x20]
    %vm1914 = vcmask 1045509
    %v1915 = vsel %vm1914, %v1913, %v1911
    %s1916 = scalar_lea.vmem [#allocation1], 464
    %v1917 = vld [vmem:[%s1916] sm:$0x40]
    %vm1918 = vcmask 1046534
    %v1919 = vsel %vm1918, %v1917, %v1915
    %s1920 = scalar_lea.vmem [#allocation1], 495
    %v1921 = vld [vmem:[%s1920] sm:$0x80]
    %vm1922 = vcmask 1047559
    %v1923 = vsel %vm1922, %v1921, %v1919
    %1924 = vrot.lane.b32.xlu0 %v1923, 104
    %v1925 = vpop.permute.xlu0 %1924
    %vm1926 = vcmask 1048384
    %s1927 = scalar_lea.vmem [#allocation0], 88
    %1928 = vst.msk [vmem:[%s1927] sm:$0xff] %vm1926, %v1925
    %s1929 = scalar_lea.vmem [#allocation1], 264
    %v1930 = vld [vmem:[%s1929] sm:$0x1]
    %s1931 = scalar_lea.vmem [#allocation1], 295
    %v1932 = vld [vmem:[%s1931] sm:$0x2]
    %vm1933 = vcmask 1041409
    %v1934 = vsel %vm1933, %v1932, %v1930
    %s1935 = scalar_lea.vmem [#allocation1], 326
    %v1936 = vld [vmem:[%s1935] sm:$0x4]
    %vm1937 = vcmask 1042434
    %v1938 = vsel %vm1937, %v1936, %v1934
    %s1939 = scalar_lea.vmem [#allocation1], 357
    %v1940 = vld [vmem:[%s1939] sm:$0x8]
    %vm1941 = vcmask 1043459
    %v1942 = vsel %vm1941, %v1940, %v1938
    %s1943 = scalar_lea.vmem [#allocation1], 388
    %v1944 = vld [vmem:[%s1943] sm:$0x10]
    %vm1945 = vcmask 1044484
    %v1946 = vsel %vm1945, %v1944, %v1942
    %s1947 = scalar_lea.vmem [#allocation1], 419
    %v1948 = vld [vmem:[%s1947] sm:$0x20]
    %vm1949 = vcmask 1045509
    %v1950 = vsel %vm1949, %v1948, %v1946
    %s1951 = scalar_lea.vmem [#allocation1], 450
    %v1952 = vld [vmem:[%s1951] sm:$0x40]
    %vm1953 = vcmask 1046534
    %v1954 = vsel %vm1953, %v1952, %v1950
    %s1955 = scalar_lea.vmem [#allocation1], 481
    %v1956 = vld [vmem:[%s1955] sm:$0x80]
    %vm1957 = vcmask 1047559
    %v1958 = vsel %vm1957, %v1956, %v1954
    %1959 = vrot.lane.b32.xlu0 %v1958, 96
    %v1960 = vpop.permute.xlu0 %1959
    %vm1961 = vcmask 1015552
    %s1962 = scalar_lea.vmem [#allocation0], 64
    %1963 = vst.msk [vmem:[%s1962] sm:$0xff] %vm1961, %v1960
    %s1964 = scalar_lea.vmem [#allocation1], 8
    %v1965 = vld [vmem:[%s1964] sm:$0x1]
    %s1966 = scalar_lea.vmem [#allocation1], 39
    %v1967 = vld [vmem:[%s1966] sm:$0x2]
    %vm1968 = vcmask 1041409
    %v1969 = vsel %vm1968, %v1967, %v1965
    %s1970 = scalar_lea.vmem [#allocation1], 70
    %v1971 = vld [vmem:[%s1970] sm:$0x4]
    %vm1972 = vcmask 1042434
    %v1973 = vsel %vm1972, %v1971, %v1969
    %s1974 = scalar_lea.vmem [#allocation1], 101
    %v1975 = vld [vmem:[%s1974] sm:$0x8]
    %vm1976 = vcmask 1043459
    %v1977 = vsel %vm1976, %v1975, %v1973
    %s1978 = scalar_lea.vmem [#allocation1], 132
    %v1979 = vld [vmem:[%s1978] sm:$0x10]
    %vm1980 = vcmask 1044484
    %v1981 = vsel %vm1980, %v1979, %v1977
    %s1982 = scalar_lea.vmem [#allocation1], 163
    %v1983 = vld [vmem:[%s1982] sm:$0x20]
    %vm1984 = vcmask 1045509
    %v1985 = vsel %vm1984, %v1983, %v1981
    %s1986 = scalar_lea.vmem [#allocation1], 194
    %v1987 = vld [vmem:[%s1986] sm:$0x40]
    %vm1988 = vcmask 1046534
    %v1989 = vsel %vm1988, %v1987, %v1985
    %s1990 = scalar_lea.vmem [#allocation1], 225
    %v1991 = vld [vmem:[%s1990] sm:$0x80]
    %vm1992 = vcmask 1047559
    %v1993 = vsel %vm1992, %v1991, %v1989
    %1994 = vrot.lane.b32.xlu0 %v1993, 96
    %v1995 = vpop.permute.xlu0 %1994
    %vm1996 = vcmask 1015552
    %s1997 = scalar_lea.vmem [#allocation0], 8
    %1998 = vst.msk [vmem:[%s1997] sm:$0xff] %vm1996, %v1995
    %s1999 = scalar_lea.vmem [#allocation1], 273
    %v2000 = vld [vmem:[%s1999] sm:$0x1]
    %s2001 = scalar_lea.vmem [#allocation1], 304
    %v2002 = vld [vmem:[%s2001] sm:$0x2]
    %vm2003 = vcmask 1041409
    %v2004 = vsel %vm2003, %v2002, %v2000
    %s2005 = scalar_lea.vmem [#allocation1], 335
    %v2006 = vld [vmem:[%s2005] sm:$0x4]
    %vm2007 = vcmask 1042434
    %v2008 = vsel %vm2007, %v2006, %v2004
    %s2009 = scalar_lea.vmem [#allocation1], 366
    %v2010 = vld [vmem:[%s2009] sm:$0x8]
    %vm2011 = vcmask 1043459
    %v2012 = vsel %vm2011, %v2010, %v2008
    %s2013 = scalar_lea.vmem [#allocation1], 397
    %v2014 = vld [vmem:[%s2013] sm:$0x10]
    %vm2015 = vcmask 1044484
    %v2016 = vsel %vm2015, %v2014, %v2012
    %s2017 = scalar_lea.vmem [#allocation1], 428
    %v2018 = vld [vmem:[%s2017] sm:$0x20]
    %vm2019 = vcmask 1045509
    %v2020 = vsel %vm2019, %v2018, %v2016
    %s2021 = scalar_lea.vmem [#allocation1], 459
    %v2022 = vld [vmem:[%s2021] sm:$0x40]
    %vm2023 = vcmask 1046534
    %v2024 = vsel %vm2023, %v2022, %v2020
    %s2025 = scalar_lea.vmem [#allocation1], 490
    %v2026 = vld [vmem:[%s2025] sm:$0x80]
    %vm2027 = vcmask 1047559
    %v2028 = vsel %vm2027, %v2026, %v2024
    %2029 = vrot.lane.b32.xlu0 %v2028, 92
    %v2030 = vpop.permute.xlu0 %2029
    %vm2031 = vcmask 982752
    %s2032 = scalar_lea.vmem [#allocation0], 80
    %2033 = vst.msk [vmem:[%s2032] sm:$0xff] %vm2031, %v2030
    %s2034 = scalar_lea.vmem [#allocation1], 17
    %v2035 = vld [vmem:[%s2034] sm:$0x1]
    %s2036 = scalar_lea.vmem [#allocation1], 48
    %v2037 = vld [vmem:[%s2036] sm:$0x2]
    %vm2038 = vcmask 1041409
    %v2039 = vsel %vm2038, %v2037, %v2035
    %s2040 = scalar_lea.vmem [#allocation1], 79
    %v2041 = vld [vmem:[%s2040] sm:$0x4]
    %vm2042 = vcmask 1042434
    %v2043 = vsel %vm2042, %v2041, %v2039
    %s2044 = scalar_lea.vmem [#allocation1], 110
    %v2045 = vld [vmem:[%s2044] sm:$0x8]
    %vm2046 = vcmask 1043459
    %v2047 = vsel %vm2046, %v2045, %v2043
    %s2048 = scalar_lea.vmem [#allocation1], 141
    %v2049 = vld [vmem:[%s2048] sm:$0x10]
    %vm2050 = vcmask 1044484
    %v2051 = vsel %vm2050, %v2049, %v2047
    %s2052 = scalar_lea.vmem [#allocation1], 172
    %v2053 = vld [vmem:[%s2052] sm:$0x20]
    %vm2054 = vcmask 1045509
    %v2055 = vsel %vm2054, %v2053, %v2051
    %s2056 = scalar_lea.vmem [#allocation1], 203
    %v2057 = vld [vmem:[%s2056] sm:$0x40]
    %vm2058 = vcmask 1046534
    %v2059 = vsel %vm2058, %v2057, %v2055
    %s2060 = scalar_lea.vmem [#allocation1], 234
    %v2061 = vld [vmem:[%s2060] sm:$0x80]
    %vm2062 = vcmask 1047559
    %v2063 = vsel %vm2062, %v2061, %v2059
    %2064 = vrot.lane.b32.xlu0 %v2063, 92
    %v2065 = vpop.permute.xlu0 %2064
    %vm2066 = vcmask 982752
    %s2067 = scalar_lea.vmem [#allocation0], 24
    %2068 = vst.msk [vmem:[%s2067] sm:$0xff] %vm2066, %v2065
    %s2069 = scalar_lea.vmem [#allocation1], 282
    %v2070 = vld [vmem:[%s2069] sm:$0x1]
    %s2071 = scalar_lea.vmem [#allocation1], 313
    %v2072 = vld [vmem:[%s2071] sm:$0x2]
    %vm2073 = vcmask 1041409
    %v2074 = vsel %vm2073, %v2072, %v2070
    %s2075 = scalar_lea.vmem [#allocation1], 344
    %v2076 = vld [vmem:[%s2075] sm:$0x4]
    %vm2077 = vcmask 1042434
    %v2078 = vsel %vm2077, %v2076, %v2074
    %s2079 = scalar_lea.vmem [#allocation1], 375
    %v2080 = vld [vmem:[%s2079] sm:$0x8]
    %vm2081 = vcmask 1043459
    %v2082 = vsel %vm2081, %v2080, %v2078
    %s2083 = scalar_lea.vmem [#allocation1], 406
    %v2084 = vld [vmem:[%s2083] sm:$0x10]
    %vm2085 = vcmask 1044484
    %v2086 = vsel %vm2085, %v2084, %v2082
    %s2087 = scalar_lea.vmem [#allocation1], 437
    %v2088 = vld [vmem:[%s2087] sm:$0x20]
    %vm2089 = vcmask 1045509
    %v2090 = vsel %vm2089, %v2088, %v2086
    %s2091 = scalar_lea.vmem [#allocation1], 468
    %v2092 = vld [vmem:[%s2091] sm:$0x40]
    %vm2093 = vcmask 1046534
    %v2094 = vsel %vm2093, %v2092, %v2090
    %s2095 = scalar_lea.vmem [#allocation1], 499
    %v2096 = vld [vmem:[%s2095] sm:$0x80]
    %vm2097 = vcmask 1047559
    %v2098 = vsel %vm2097, %v2096, %v2094
    %2099 = vrot.lane.b32.xlu0 %v2098, 88
    %v2100 = vpop.permute.xlu0 %2099
    %vm2101 = vcmask 949952
    %s2102 = scalar_lea.vmem [#allocation0], 96
    %2103 = vst.msk [vmem:[%s2102] sm:$0xff] %vm2101, %v2100
    %s2104 = scalar_lea.vmem [#allocation1], 26
    %v2105 = vld [vmem:[%s2104] sm:$0x1]
    %s2106 = scalar_lea.vmem [#allocation1], 57
    %v2107 = vld [vmem:[%s2106] sm:$0x2]
    %vm2108 = vcmask 1041409
    %v2109 = vsel %vm2108, %v2107, %v2105
    %s2110 = scalar_lea.vmem [#allocation1], 88
    %v2111 = vld [vmem:[%s2110] sm:$0x4]
    %vm2112 = vcmask 1042434
    %v2113 = vsel %vm2112, %v2111, %v2109
    %s2114 = scalar_lea.vmem [#allocation1], 119
    %v2115 = vld [vmem:[%s2114] sm:$0x8]
    %vm2116 = vcmask 1043459
    %v2117 = vsel %vm2116, %v2115, %v2113
    %s2118 = scalar_lea.vmem [#allocation1], 150
    %v2119 = vld [vmem:[%s2118] sm:$0x10]
    %vm2120 = vcmask 1044484
    %v2121 = vsel %vm2120, %v2119, %v2117
    %s2122 = scalar_lea.vmem [#allocation1], 181
    %v2123 = vld [vmem:[%s2122] sm:$0x20]
    %vm2124 = vcmask 1045509
    %v2125 = vsel %vm2124, %v2123, %v2121
    %s2126 = scalar_lea.vmem [#allocation1], 212
    %v2127 = vld [vmem:[%s2126] sm:$0x40]
    %vm2128 = vcmask 1046534
    %v2129 = vsel %vm2128, %v2127, %v2125
    %s2130 = scalar_lea.vmem [#allocation1], 243
    %v2131 = vld [vmem:[%s2130] sm:$0x80]
    %vm2132 = vcmask 1047559
    %v2133 = vsel %vm2132, %v2131, %v2129
    %2134 = vrot.lane.b32.xlu0 %v2133, 88
    %v2135 = vpop.permute.xlu0 %2134
    %vm2136 = vcmask 949952
    %s2137 = scalar_lea.vmem [#allocation0], 40
    %2138 = vst.msk [vmem:[%s2137] sm:$0xff] %vm2136, %v2135
    %s2139 = scalar_lea.vmem [#allocation1], 3
    %v2140 = vld [vmem:[%s2139] sm:$0x1]
    %s2141 = scalar_lea.vmem [#allocation1], 34
    %v2142 = vld [vmem:[%s2141] sm:$0x2]
    %vm2143 = vcmask 1041409
    %v2144 = vsel %vm2143, %v2142, %v2140
    %s2145 = scalar_lea.vmem [#allocation1], 65
    %v2146 = vld [vmem:[%s2145] sm:$0x4]
    %vm2147 = vcmask 1042434
    %v2148 = vsel %vm2147, %v2146, %v2144
    %s2149 = scalar_lea.vmem [#allocation1], 96
    %v2150 = vld [vmem:[%s2149] sm:$0x8]
    %vm2151 = vcmask 1043459
    %v2152 = vsel %vm2151, %v2150, %v2148
    %s2153 = scalar_lea.vmem [#allocation1], 127
    %v2154 = vld [vmem:[%s2153] sm:$0x10]
    %vm2155 = vcmask 1044484
    %v2156 = vsel %vm2155, %v2154, %v2152
    %s2157 = scalar_lea.vmem [#allocation1], 158
    %v2158 = vld [vmem:[%s2157] sm:$0x20]
    %vm2159 = vcmask 1045509
    %v2160 = vsel %vm2159, %v2158, %v2156
    %s2161 = scalar_lea.vmem [#allocation1], 189
    %v2162 = vld [vmem:[%s2161] sm:$0x40]
    %vm2163 = vcmask 1046534
    %v2164 = vsel %vm2163, %v2162, %v2160
    %s2165 = scalar_lea.vmem [#allocation1], 220
    %v2166 = vld [vmem:[%s2165] sm:$0x80]
    %vm2167 = vcmask 1047559
    %v2168 = vsel %vm2167, %v2166, %v2164
    %2169 = vrot.lane.b32.xlu0 %v2168, 84
    %v2170 = vpop.permute.xlu0 %2169
    %vm2171 = vcmask 917152
    %2172 = vst.msk [vmem:[#allocation0] sm:$0xff] %vm2171, %v2170
    %s2173 = scalar_lea.vmem [#allocation1], 259
    %v2174 = vld [vmem:[%s2173] sm:$0x1]
    %s2175 = scalar_lea.vmem [#allocation1], 290
    %v2176 = vld [vmem:[%s2175] sm:$0x2]
    %vm2177 = vcmask 1041409
    %v2178 = vsel %vm2177, %v2176, %v2174
    %s2179 = scalar_lea.vmem [#allocation1], 321
    %v2180 = vld [vmem:[%s2179] sm:$0x4]
    %vm2181 = vcmask 1042434
    %v2182 = vsel %vm2181, %v2180, %v2178
    %s2183 = scalar_lea.vmem [#allocation1], 352
    %v2184 = vld [vmem:[%s2183] sm:$0x8]
    %vm2185 = vcmask 1043459
    %v2186 = vsel %vm2185, %v2184, %v2182
    %s2187 = scalar_lea.vmem [#allocation1], 383
    %v2188 = vld [vmem:[%s2187] sm:$0x10]
    %vm2189 = vcmask 1044484
    %v2190 = vsel %vm2189, %v2188, %v2186
    %s2191 = scalar_lea.vmem [#allocation1], 414
    %v2192 = vld [vmem:[%s2191] sm:$0x20]
    %vm2193 = vcmask 1045509
    %v2194 = vsel %vm2193, %v2192, %v2190
    %s2195 = scalar_lea.vmem [#allocation1], 445
    %v2196 = vld [vmem:[%s2195] sm:$0x40]
    %vm2197 = vcmask 1046534
    %v2198 = vsel %vm2197, %v2196, %v2194
    %s2199 = scalar_lea.vmem [#allocation1], 476
    %v2200 = vld [vmem:[%s2199] sm:$0x80]
    %vm2201 = vcmask 1047559
    %v2202 = vsel %vm2201, %v2200, %v2198
    %2203 = vrot.lane.b32.xlu0 %v2202, 84
    %v2204 = vpop.permute.xlu0 %2203
    %vm2205 = vcmask 917152
    %s2206 = scalar_lea.vmem [#allocation0], 56
    %2207 = vst.msk [vmem:[%s2206] sm:$0xff] %vm2205, %v2204
    %s2208 = scalar_lea.vmem [#allocation1], 268
    %v2209 = vld [vmem:[%s2208] sm:$0x1]
    %s2210 = scalar_lea.vmem [#allocation1], 299
    %v2211 = vld [vmem:[%s2210] sm:$0x2]
    %vm2212 = vcmask 1041409
    %v2213 = vsel %vm2212, %v2211, %v2209
    %s2214 = scalar_lea.vmem [#allocation1], 330
    %v2215 = vld [vmem:[%s2214] sm:$0x4]
    %vm2216 = vcmask 1042434
    %v2217 = vsel %vm2216, %v2215, %v2213
    %s2218 = scalar_lea.vmem [#allocation1], 361
    %v2219 = vld [vmem:[%s2218] sm:$0x8]
    %vm2220 = vcmask 1043459
    %v2221 = vsel %vm2220, %v2219, %v2217
    %s2222 = scalar_lea.vmem [#allocation1], 392
    %v2223 = vld [vmem:[%s2222] sm:$0x10]
    %vm2224 = vcmask 1044484
    %v2225 = vsel %vm2224, %v2223, %v2221
    %s2226 = scalar_lea.vmem [#allocation1], 423
    %v2227 = vld [vmem:[%s2226] sm:$0x20]
    %vm2228 = vcmask 1045509
    %v2229 = vsel %vm2228, %v2227, %v2225
    %s2230 = scalar_lea.vmem [#allocation1], 454
    %v2231 = vld [vmem:[%s2230] sm:$0x40]
    %vm2232 = vcmask 1046534
    %v2233 = vsel %vm2232, %v2231, %v2229
    %s2234 = scalar_lea.vmem [#allocation1], 485
    %v2235 = vld [vmem:[%s2234] sm:$0x80]
    %vm2236 = vcmask 1047559
    %v2237 = vsel %vm2236, %v2235, %v2233
    %2238 = vrot.lane.b32.xlu0 %v2237, 80
    %v2239 = vpop.permute.xlu0 %2238
    %vm2240 = vcmask 884352
    %s2241 = scalar_lea.vmem [#allocation0], 72
    %2242 = vst.msk [vmem:[%s2241] sm:$0xff] %vm2240, %v2239
    %s2243 = scalar_lea.vmem [#allocation1], 12
    %v2244 = vld [vmem:[%s2243] sm:$0x1]
    %s2245 = scalar_lea.vmem [#allocation1], 43
    %v2246 = vld [vmem:[%s2245] sm:$0x2]
    %vm2247 = vcmask 1041409
    %v2248 = vsel %vm2247, %v2246, %v2244
    %s2249 = scalar_lea.vmem [#allocation1], 74
    %v2250 = vld [vmem:[%s2249] sm:$0x4]
    %vm2251 = vcmask 1042434
    %v2252 = vsel %vm2251, %v2250, %v2248
    %s2253 = scalar_lea.vmem [#allocation1], 105
    %v2254 = vld [vmem:[%s2253] sm:$0x8]
    %vm2255 = vcmask 1043459
    %v2256 = vsel %vm2255, %v2254, %v2252
    %s2257 = scalar_lea.vmem [#allocation1], 136
    %v2258 = vld [vmem:[%s2257] sm:$0x10]
    %vm2259 = vcmask 1044484
    %v2260 = vsel %vm2259, %v2258, %v2256
    %s2261 = scalar_lea.vmem [#allocation1], 167
    %v2262 = vld [vmem:[%s2261] sm:$0x20]
    %vm2263 = vcmask 1045509
    %v2264 = vsel %vm2263, %v2262, %v2260
    %s2265 = scalar_lea.vmem [#allocation1], 198
    %v2266 = vld [vmem:[%s2265] sm:$0x40]
    %vm2267 = vcmask 1046534
    %v2268 = vsel %vm2267, %v2266, %v2264
    %s2269 = scalar_lea.vmem [#allocation1], 229
    %v2270 = vld [vmem:[%s2269] sm:$0x80]
    %vm2271 = vcmask 1047559
    %v2272 = vsel %vm2271, %v2270, %v2268
    %2273 = vrot.lane.b32.xlu0 %v2272, 80
    %v2274 = vpop.permute.xlu0 %2273
    %vm2275 = vcmask 884352
    %s2276 = scalar_lea.vmem [#allocation0], 16
    %2277 = vst.msk [vmem:[%s2276] sm:$0xff] %vm2275, %v2274
    %s2278 = scalar_lea.vmem [#allocation1], 21
    %v2279 = vld [vmem:[%s2278] sm:$0x1]
    %s2280 = scalar_lea.vmem [#allocation1], 52
    %v2281 = vld [vmem:[%s2280] sm:$0x2]
    %vm2282 = vcmask 1041409
    %v2283 = vsel %vm2282, %v2281, %v2279
    %s2284 = scalar_lea.vmem [#allocation1], 83
    %v2285 = vld [vmem:[%s2284] sm:$0x4]
    %vm2286 = vcmask 1042434
    %v2287 = vsel %vm2286, %v2285, %v2283
    %s2288 = scalar_lea.vmem [#allocation1], 114
    %v2289 = vld [vmem:[%s2288] sm:$0x8]
    %vm2290 = vcmask 1043459
    %v2291 = vsel %vm2290, %v2289, %v2287
    %s2292 = scalar_lea.vmem [#allocation1], 145
    %v2293 = vld [vmem:[%s2292] sm:$0x10]
    %vm2294 = vcmask 1044484
    %v2295 = vsel %vm2294, %v2293, %v2291
    %s2296 = scalar_lea.vmem [#allocation1], 176
    %v2297 = vld [vmem:[%s2296] sm:$0x20]
    %vm2298 = vcmask 1045509
    %v2299 = vsel %vm2298, %v2297, %v2295
    %s2300 = scalar_lea.vmem [#allocation1], 207
    %v2301 = vld [vmem:[%s2300] sm:$0x40]
    %vm2302 = vcmask 1046534
    %v2303 = vsel %vm2302, %v2301, %v2299
    %s2304 = scalar_lea.vmem [#allocation1], 238
    %v2305 = vld [vmem:[%s2304] sm:$0x80]
    %vm2306 = vcmask 1047559
    %v2307 = vsel %vm2306, %v2305, %v2303
    %2308 = vrot.lane.b32.xlu0 %v2307, 76
    %v2309 = vpop.permute.xlu0 %2308
    %vm2310 = vcmask 851552
    %s2311 = scalar_lea.vmem [#allocation0], 32
    %2312 = vst.msk [vmem:[%s2311] sm:$0xff] %vm2310, %v2309
    %s2313 = scalar_lea.vmem [#allocation1], 277
    %v2314 = vld [vmem:[%s2313] sm:$0x1]
    %s2315 = scalar_lea.vmem [#allocation1], 308
    %v2316 = vld [vmem:[%s2315] sm:$0x2]
    %vm2317 = vcmask 1041409
    %v2318 = vsel %vm2317, %v2316, %v2314
    %s2319 = scalar_lea.vmem [#allocation1], 339
    %v2320 = vld [vmem:[%s2319] sm:$0x4]
    %vm2321 = vcmask 1042434
    %v2322 = vsel %vm2321, %v2320, %v2318
    %s2323 = scalar_lea.vmem [#allocation1], 370
    %v2324 = vld [vmem:[%s2323] sm:$0x8]
    %vm2325 = vcmask 1043459
    %v2326 = vsel %vm2325, %v2324, %v2322
    %s2327 = scalar_lea.vmem [#allocation1], 401
    %v2328 = vld [vmem:[%s2327] sm:$0x10]
    %vm2329 = vcmask 1044484
    %v2330 = vsel %vm2329, %v2328, %v2326
    %s2331 = scalar_lea.vmem [#allocation1], 432
    %v2332 = vld [vmem:[%s2331] sm:$0x20]
    %vm2333 = vcmask 1045509
    %v2334 = vsel %vm2333, %v2332, %v2330
    %s2335 = scalar_lea.vmem [#allocation1], 463
    %v2336 = vld [vmem:[%s2335] sm:$0x40]
    %vm2337 = vcmask 1046534
    %v2338 = vsel %vm2337, %v2336, %v2334
    %s2339 = scalar_lea.vmem [#allocation1], 494
    %v2340 = vld [vmem:[%s2339] sm:$0x80]
    %vm2341 = vcmask 1047559
    %v2342 = vsel %vm2341, %v2340, %v2338
    %2343 = vrot.lane.b32.xlu0 %v2342, 76
    %v2344 = vpop.permute.xlu0 %2343
    %vm2345 = vcmask 851552
    %s2346 = scalar_lea.vmem [#allocation0], 88
    %2347 = vst.msk [vmem:[%s2346] sm:$0xff] %vm2345, %v2344
    %s2348 = scalar_lea.vmem [#allocation1], 263
    %v2349 = vld [vmem:[%s2348] sm:$0x1]
    %s2350 = scalar_lea.vmem [#allocation1], 294
    %v2351 = vld [vmem:[%s2350] sm:$0x2]
    %vm2352 = vcmask 1041409
    %v2353 = vsel %vm2352, %v2351, %v2349
    %s2354 = scalar_lea.vmem [#allocation1], 325
    %v2355 = vld [vmem:[%s2354] sm:$0x4]
    %vm2356 = vcmask 1042434
    %v2357 = vsel %vm2356, %v2355, %v2353
    %s2358 = scalar_lea.vmem [#allocation1], 356
    %v2359 = vld [vmem:[%s2358] sm:$0x8]
    %vm2360 = vcmask 1043459
    %v2361 = vsel %vm2360, %v2359, %v2357
    %s2362 = scalar_lea.vmem [#allocation1], 387
    %v2363 = vld [vmem:[%s2362] sm:$0x10]
    %vm2364 = vcmask 1044484
    %v2365 = vsel %vm2364, %v2363, %v2361
    %s2366 = scalar_lea.vmem [#allocation1], 418
    %v2367 = vld [vmem:[%s2366] sm:$0x20]
    %vm2368 = vcmask 1045509
    %v2369 = vsel %vm2368, %v2367, %v2365
    %s2370 = scalar_lea.vmem [#allocation1], 449
    %v2371 = vld [vmem:[%s2370] sm:$0x40]
    %vm2372 = vcmask 1046534
    %v2373 = vsel %vm2372, %v2371, %v2369
    %s2374 = scalar_lea.vmem [#allocation1], 480
    %v2375 = vld [vmem:[%s2374] sm:$0x80]
    %vm2376 = vcmask 1047559
    %v2377 = vsel %vm2376, %v2375, %v2373
    %2378 = vrot.lane.b32.xlu0 %v2377, 68
    %v2379 = vpop.permute.xlu0 %2378
    %vm2380 = vcmask 785952
    %s2381 = scalar_lea.vmem [#allocation0], 64
    %2382 = vst.msk [vmem:[%s2381] sm:$0xff] %vm2380, %v2379
    %s2383 = scalar_lea.vmem [#allocation1], 7
    %v2384 = vld [vmem:[%s2383] sm:$0x1]
    %s2385 = scalar_lea.vmem [#allocation1], 38
    %v2386 = vld [vmem:[%s2385] sm:$0x2]
    %vm2387 = vcmask 1041409
    %v2388 = vsel %vm2387, %v2386, %v2384
    %s2389 = scalar_lea.vmem [#allocation1], 69
    %v2390 = vld [vmem:[%s2389] sm:$0x4]
    %vm2391 = vcmask 1042434
    %v2392 = vsel %vm2391, %v2390, %v2388
    %s2393 = scalar_lea.vmem [#allocation1], 100
    %v2394 = vld [vmem:[%s2393] sm:$0x8]
    %vm2395 = vcmask 1043459
    %v2396 = vsel %vm2395, %v2394, %v2392
    %s2397 = scalar_lea.vmem [#allocation1], 131
    %v2398 = vld [vmem:[%s2397] sm:$0x10]
    %vm2399 = vcmask 1044484
    %v2400 = vsel %vm2399, %v2398, %v2396
    %s2401 = scalar_lea.vmem [#allocation1], 162
    %v2402 = vld [vmem:[%s2401] sm:$0x20]
    %vm2403 = vcmask 1045509
    %v2404 = vsel %vm2403, %v2402, %v2400
    %s2405 = scalar_lea.vmem [#allocation1], 193
    %v2406 = vld [vmem:[%s2405] sm:$0x40]
    %vm2407 = vcmask 1046534
    %v2408 = vsel %vm2407, %v2406, %v2404
    %s2409 = scalar_lea.vmem [#allocation1], 224
    %v2410 = vld [vmem:[%s2409] sm:$0x80]
    %vm2411 = vcmask 1047559
    %v2412 = vsel %vm2411, %v2410, %v2408
    %2413 = vrot.lane.b32.xlu0 %v2412, 68
    %v2414 = vpop.permute.xlu0 %2413
    %vm2415 = vcmask 785952
    %s2416 = scalar_lea.vmem [#allocation0], 8
    %2417 = vst.msk [vmem:[%s2416] sm:$0xff] %vm2415, %v2414
    %s2418 = scalar_lea.vmem [#allocation1], 272
    %v2419 = vld [vmem:[%s2418] sm:$0x1]
    %s2420 = scalar_lea.vmem [#allocation1], 303
    %v2421 = vld [vmem:[%s2420] sm:$0x2]
    %vm2422 = vcmask 1041409
    %v2423 = vsel %vm2422, %v2421, %v2419
    %s2424 = scalar_lea.vmem [#allocation1], 334
    %v2425 = vld [vmem:[%s2424] sm:$0x4]
    %vm2426 = vcmask 1042434
    %v2427 = vsel %vm2426, %v2425, %v2423
    %s2428 = scalar_lea.vmem [#allocation1], 365
    %v2429 = vld [vmem:[%s2428] sm:$0x8]
    %vm2430 = vcmask 1043459
    %v2431 = vsel %vm2430, %v2429, %v2427
    %s2432 = scalar_lea.vmem [#allocation1], 396
    %v2433 = vld [vmem:[%s2432] sm:$0x10]
    %vm2434 = vcmask 1044484
    %v2435 = vsel %vm2434, %v2433, %v2431
    %s2436 = scalar_lea.vmem [#allocation1], 427
    %v2437 = vld [vmem:[%s2436] sm:$0x20]
    %vm2438 = vcmask 1045509
    %v2439 = vsel %vm2438, %v2437, %v2435
    %s2440 = scalar_lea.vmem [#allocation1], 458
    %v2441 = vld [vmem:[%s2440] sm:$0x40]
    %vm2442 = vcmask 1046534
    %v2443 = vsel %vm2442, %v2441, %v2439
    %s2444 = scalar_lea.vmem [#allocation1], 489
    %v2445 = vld [vmem:[%s2444] sm:$0x80]
    %vm2446 = vcmask 1047559
    %v2447 = vsel %vm2446, %v2445, %v2443
    %2448 = vrot.lane.b32.xlu0 %v2447, 64
    %v2449 = vpop.permute.xlu0 %2448
    %vm2450 = vcmask 753152
    %s2451 = scalar_lea.vmem [#allocation0], 80
    %2452 = vst.msk [vmem:[%s2451] sm:$0xff] %vm2450, %v2449
    %s2453 = scalar_lea.vmem [#allocation1], 16
    %v2454 = vld [vmem:[%s2453] sm:$0x1]
    %s2455 = scalar_lea.vmem [#allocation1], 47
    %v2456 = vld [vmem:[%s2455] sm:$0x2]
    %vm2457 = vcmask 1041409
    %v2458 = vsel %vm2457, %v2456, %v2454
    %s2459 = scalar_lea.vmem [#allocation1], 78
    %v2460 = vld [vmem:[%s2459] sm:$0x4]
    %vm2461 = vcmask 1042434
    %v2462 = vsel %vm2461, %v2460, %v2458
    %s2463 = scalar_lea.vmem [#allocation1], 109
    %v2464 = vld [vmem:[%s2463] sm:$0x8]
    %vm2465 = vcmask 1043459
    %v2466 = vsel %vm2465, %v2464, %v2462
    %s2467 = scalar_lea.vmem [#allocation1], 140
    %v2468 = vld [vmem:[%s2467] sm:$0x10]
    %vm2469 = vcmask 1044484
    %v2470 = vsel %vm2469, %v2468, %v2466
    %s2471 = scalar_lea.vmem [#allocation1], 171
    %v2472 = vld [vmem:[%s2471] sm:$0x20]
    %vm2473 = vcmask 1045509
    %v2474 = vsel %vm2473, %v2472, %v2470
    %s2475 = scalar_lea.vmem [#allocation1], 202
    %v2476 = vld [vmem:[%s2475] sm:$0x40]
    %vm2477 = vcmask 1046534
    %v2478 = vsel %vm2477, %v2476, %v2474
    %s2479 = scalar_lea.vmem [#allocation1], 233
    %v2480 = vld [vmem:[%s2479] sm:$0x80]
    %vm2481 = vcmask 1047559
    %v2482 = vsel %vm2481, %v2480, %v2478
    %2483 = vrot.lane.b32.xlu0 %v2482, 64
    %v2484 = vpop.permute.xlu0 %2483
    %vm2485 = vcmask 753152
    %s2486 = scalar_lea.vmem [#allocation0], 24
    %2487 = vst.msk [vmem:[%s2486] sm:$0xff] %vm2485, %v2484
    %s2488 = scalar_lea.vmem [#allocation1], 281
    %v2489 = vld [vmem:[%s2488] sm:$0x1]
    %s2490 = scalar_lea.vmem [#allocation1], 312
    %v2491 = vld [vmem:[%s2490] sm:$0x2]
    %vm2492 = vcmask 1041409
    %v2493 = vsel %vm2492, %v2491, %v2489
    %s2494 = scalar_lea.vmem [#allocation1], 343
    %v2495 = vld [vmem:[%s2494] sm:$0x4]
    %vm2496 = vcmask 1042434
    %v2497 = vsel %vm2496, %v2495, %v2493
    %s2498 = scalar_lea.vmem [#allocation1], 374
    %v2499 = vld [vmem:[%s2498] sm:$0x8]
    %vm2500 = vcmask 1043459
    %v2501 = vsel %vm2500, %v2499, %v2497
    %s2502 = scalar_lea.vmem [#allocation1], 405
    %v2503 = vld [vmem:[%s2502] sm:$0x10]
    %vm2504 = vcmask 1044484
    %v2505 = vsel %vm2504, %v2503, %v2501
    %s2506 = scalar_lea.vmem [#allocation1], 436
    %v2507 = vld [vmem:[%s2506] sm:$0x20]
    %vm2508 = vcmask 1045509
    %v2509 = vsel %vm2508, %v2507, %v2505
    %s2510 = scalar_lea.vmem [#allocation1], 467
    %v2511 = vld [vmem:[%s2510] sm:$0x40]
    %vm2512 = vcmask 1046534
    %v2513 = vsel %vm2512, %v2511, %v2509
    %s2514 = scalar_lea.vmem [#allocation1], 498
    %v2515 = vld [vmem:[%s2514] sm:$0x80]
    %vm2516 = vcmask 1047559
    %v2517 = vsel %vm2516, %v2515, %v2513
    %2518 = vrot.lane.b32.xlu0 %v2517, 60
    %v2519 = vpop.permute.xlu0 %2518
    %vm2520 = vcmask 720352
    %s2521 = scalar_lea.vmem [#allocation0], 96
    %2522 = vst.msk [vmem:[%s2521] sm:$0xff] %vm2520, %v2519
    %s2523 = scalar_lea.vmem [#allocation1], 25
    %v2524 = vld [vmem:[%s2523] sm:$0x1]
    %s2525 = scalar_lea.vmem [#allocation1], 56
    %v2526 = vld [vmem:[%s2525] sm:$0x2]
    %vm2527 = vcmask 1041409
    %v2528 = vsel %vm2527, %v2526, %v2524
    %s2529 = scalar_lea.vmem [#allocation1], 87
    %v2530 = vld [vmem:[%s2529] sm:$0x4]
    %vm2531 = vcmask 1042434
    %v2532 = vsel %vm2531, %v2530, %v2528
    %s2533 = scalar_lea.vmem [#allocation1], 118
    %v2534 = vld [vmem:[%s2533] sm:$0x8]
    %vm2535 = vcmask 1043459
    %v2536 = vsel %vm2535, %v2534, %v2532
    %s2537 = scalar_lea.vmem [#allocation1], 149
    %v2538 = vld [vmem:[%s2537] sm:$0x10]
    %vm2539 = vcmask 1044484
    %v2540 = vsel %vm2539, %v2538, %v2536
    %s2541 = scalar_lea.vmem [#allocation1], 180
    %v2542 = vld [vmem:[%s2541] sm:$0x20]
    %vm2543 = vcmask 1045509
    %v2544 = vsel %vm2543, %v2542, %v2540
    %s2545 = scalar_lea.vmem [#allocation1], 211
    %v2546 = vld [vmem:[%s2545] sm:$0x40]
    %vm2547 = vcmask 1046534
    %v2548 = vsel %vm2547, %v2546, %v2544
    %s2549 = scalar_lea.vmem [#allocation1], 242
    %v2550 = vld [vmem:[%s2549] sm:$0x80]
    %vm2551 = vcmask 1047559
    %v2552 = vsel %vm2551, %v2550, %v2548
    %2553 = vrot.lane.b32.xlu0 %v2552, 60
    %v2554 = vpop.permute.xlu0 %2553
    %vm2555 = vcmask 720352
    %s2556 = scalar_lea.vmem [#allocation0], 40
    %2557 = vst.msk [vmem:[%s2556] sm:$0xff] %vm2555, %v2554
    %s2558 = scalar_lea.vmem [#allocation1], 2
    %v2559 = vld [vmem:[%s2558] sm:$0x1]
    %s2560 = scalar_lea.vmem [#allocation1], 33
    %v2561 = vld [vmem:[%s2560] sm:$0x2]
    %vm2562 = vcmask 1041409
    %v2563 = vsel %vm2562, %v2561, %v2559
    %s2564 = scalar_lea.vmem [#allocation1], 64
    %v2565 = vld [vmem:[%s2564] sm:$0x4]
    %vm2566 = vcmask 1042434
    %v2567 = vsel %vm2566, %v2565, %v2563
    %s2568 = scalar_lea.vmem [#allocation1], 95
    %v2569 = vld [vmem:[%s2568] sm:$0x8]
    %vm2570 = vcmask 1043459
    %v2571 = vsel %vm2570, %v2569, %v2567
    %s2572 = scalar_lea.vmem [#allocation1], 126
    %v2573 = vld [vmem:[%s2572] sm:$0x10]
    %vm2574 = vcmask 1044484
    %v2575 = vsel %vm2574, %v2573, %v2571
    %s2576 = scalar_lea.vmem [#allocation1], 157
    %v2577 = vld [vmem:[%s2576] sm:$0x20]
    %vm2578 = vcmask 1045509
    %v2579 = vsel %vm2578, %v2577, %v2575
    %s2580 = scalar_lea.vmem [#allocation1], 188
    %v2581 = vld [vmem:[%s2580] sm:$0x40]
    %vm2582 = vcmask 1046534
    %v2583 = vsel %vm2582, %v2581, %v2579
    %s2584 = scalar_lea.vmem [#allocation1], 219
    %v2585 = vld [vmem:[%s2584] sm:$0x80]
    %vm2586 = vcmask 1047559
    %v2587 = vsel %vm2586, %v2585, %v2583
    %2588 = vrot.lane.b32.xlu0 %v2587, 56
    %v2589 = vpop.permute.xlu0 %2588
    %vm2590 = vcmask 687552
    %2591 = vst.msk [vmem:[#allocation0] sm:$0xff] %vm2590, %v2589
    %s2592 = scalar_lea.vmem [#allocation1], 258
    %v2593 = vld [vmem:[%s2592] sm:$0x1]
    %s2594 = scalar_lea.vmem [#allocation1], 289
    %v2595 = vld [vmem:[%s2594] sm:$0x2]
    %vm2596 = vcmask 1041409
    %v2597 = vsel %vm2596, %v2595, %v2593
    %s2598 = scalar_lea.vmem [#allocation1], 320
    %v2599 = vld [vmem:[%s2598] sm:$0x4]
    %vm2600 = vcmask 1042434
    %v2601 = vsel %vm2600, %v2599, %v2597
    %s2602 = scalar_lea.vmem [#allocation1], 351
    %v2603 = vld [vmem:[%s2602] sm:$0x8]
    %vm2604 = vcmask 1043459
    %v2605 = vsel %vm2604, %v2603, %v2601
    %s2606 = scalar_lea.vmem [#allocation1], 382
    %v2607 = vld [vmem:[%s2606] sm:$0x10]
    %vm2608 = vcmask 1044484
    %v2609 = vsel %vm2608, %v2607, %v2605
    %s2610 = scalar_lea.vmem [#allocation1], 413
    %v2611 = vld [vmem:[%s2610] sm:$0x20]
    %vm2612 = vcmask 1045509
    %v2613 = vsel %vm2612, %v2611, %v2609
    %s2614 = scalar_lea.vmem [#allocation1], 444
    %v2615 = vld [vmem:[%s2614] sm:$0x40]
    %vm2616 = vcmask 1046534
    %v2617 = vsel %vm2616, %v2615, %v2613
    %s2618 = scalar_lea.vmem [#allocation1], 475
    %v2619 = vld [vmem:[%s2618] sm:$0x80]
    %vm2620 = vcmask 1047559
    %v2621 = vsel %vm2620, %v2619, %v2617
    %2622 = vrot.lane.b32.xlu0 %v2621, 56
    %v2623 = vpop.permute.xlu0 %2622
    %vm2624 = vcmask 687552
    %s2625 = scalar_lea.vmem [#allocation0], 56
    %2626 = vst.msk [vmem:[%s2625] sm:$0xff] %vm2624, %v2623
    %s2627 = scalar_lea.vmem [#allocation1], 267
    %v2628 = vld [vmem:[%s2627] sm:$0x1]
    %s2629 = scalar_lea.vmem [#allocation1], 298
    %v2630 = vld [vmem:[%s2629] sm:$0x2]
    %vm2631 = vcmask 1041409
    %v2632 = vsel %vm2631, %v2630, %v2628
    %s2633 = scalar_lea.vmem [#allocation1], 329
    %v2634 = vld [vmem:[%s2633] sm:$0x4]
    %vm2635 = vcmask 1042434
    %v2636 = vsel %vm2635, %v2634, %v2632
    %s2637 = scalar_lea.vmem [#allocation1], 360
    %v2638 = vld [vmem:[%s2637] sm:$0x8]
    %vm2639 = vcmask 1043459
    %v2640 = vsel %vm2639, %v2638, %v2636
    %s2641 = scalar_lea.vmem [#allocation1], 391
    %v2642 = vld [vmem:[%s2641] sm:$0x10]
    %vm2643 = vcmask 1044484
    %v2644 = vsel %vm2643, %v2642, %v2640
    %s2645 = scalar_lea.vmem [#allocation1], 422
    %v2646 = vld [vmem:[%s2645] sm:$0x20]
    %vm2647 = vcmask 1045509
    %v2648 = vsel %vm2647, %v2646, %v2644
    %s2649 = scalar_lea.vmem [#allocation1], 453
    %v2650 = vld [vmem:[%s2649] sm:$0x40]
    %vm2651 = vcmask 1046534
    %v2652 = vsel %vm2651, %v2650, %v2648
    %s2653 = scalar_lea.vmem [#allocation1], 484
    %v2654 = vld [vmem:[%s2653] sm:$0x80]
    %vm2655 = vcmask 1047559
    %v2656 = vsel %vm2655, %v2654, %v2652
    %2657 = vrot.lane.b32.xlu0 %v2656, 52
    %v2658 = vpop.permute.xlu0 %2657
    %vm2659 = vcmask 654752
    %s2660 = scalar_lea.vmem [#allocation0], 72
    %2661 = vst.msk [vmem:[%s2660] sm:$0xff] %vm2659, %v2658
    %s2662 = scalar_lea.vmem [#allocation1], 11
    %v2663 = vld [vmem:[%s2662] sm:$0x1]
    %s2664 = scalar_lea.vmem [#allocation1], 42
    %v2665 = vld [vmem:[%s2664] sm:$0x2]
    %vm2666 = vcmask 1041409
    %v2667 = vsel %vm2666, %v2665, %v2663
    %s2668 = scalar_lea.vmem [#allocation1], 73
    %v2669 = vld [vmem:[%s2668] sm:$0x4]
    %vm2670 = vcmask 1042434
    %v2671 = vsel %vm2670, %v2669, %v2667
    %s2672 = scalar_lea.vmem [#allocation1], 104
    %v2673 = vld [vmem:[%s2672] sm:$0x8]
    %vm2674 = vcmask 1043459
    %v2675 = vsel %vm2674, %v2673, %v2671
    %s2676 = scalar_lea.vmem [#allocation1], 135
    %v2677 = vld [vmem:[%s2676] sm:$0x10]
    %vm2678 = vcmask 1044484
    %v2679 = vsel %vm2678, %v2677, %v2675
    %s2680 = scalar_lea.vmem [#allocation1], 166
    %v2681 = vld [vmem:[%s2680] sm:$0x20]
    %vm2682 = vcmask 1045509
    %v2683 = vsel %vm2682, %v2681, %v2679
    %s2684 = scalar_lea.vmem [#allocation1], 197
    %v2685 = vld [vmem:[%s2684] sm:$0x40]
    %vm2686 = vcmask 1046534
    %v2687 = vsel %vm2686, %v2685, %v2683
    %s2688 = scalar_lea.vmem [#allocation1], 228
    %v2689 = vld [vmem:[%s2688] sm:$0x80]
    %vm2690 = vcmask 1047559
    %v2691 = vsel %vm2690, %v2689, %v2687
    %2692 = vrot.lane.b32.xlu0 %v2691, 52
    %v2693 = vpop.permute.xlu0 %2692
    %vm2694 = vcmask 654752
    %s2695 = scalar_lea.vmem [#allocation0], 16
    %2696 = vst.msk [vmem:[%s2695] sm:$0xff] %vm2694, %v2693
    %s2697 = scalar_lea.vmem [#allocation1], 20
    %v2698 = vld [vmem:[%s2697] sm:$0x1]
    %s2699 = scalar_lea.vmem [#allocation1], 51
    %v2700 = vld [vmem:[%s2699] sm:$0x2]
    %vm2701 = vcmask 1041409
    %v2702 = vsel %vm2701, %v2700, %v2698
    %s2703 = scalar_lea.vmem [#allocation1], 82
    %v2704 = vld [vmem:[%s2703] sm:$0x4]
    %vm2705 = vcmask 1042434
    %v2706 = vsel %vm2705, %v2704, %v2702
    %s2707 = scalar_lea.vmem [#allocation1], 113
    %v2708 = vld [vmem:[%s2707] sm:$0x8]
    %vm2709 = vcmask 1043459
    %v2710 = vsel %vm2709, %v2708, %v2706
    %s2711 = scalar_lea.vmem [#allocation1], 144
    %v2712 = vld [vmem:[%s2711] sm:$0x10]
    %vm2713 = vcmask 1044484
    %v2714 = vsel %vm2713, %v2712, %v2710
    %s2715 = scalar_lea.vmem [#allocation1], 175
    %v2716 = vld [vmem:[%s2715] sm:$0x20]
    %vm2717 = vcmask 1045509
    %v2718 = vsel %vm2717, %v2716, %v2714
    %s2719 = scalar_lea.vmem [#allocation1], 206
    %v2720 = vld [vmem:[%s2719] sm:$0x40]
    %vm2721 = vcmask 1046534
    %v2722 = vsel %vm2721, %v2720, %v2718
    %s2723 = scalar_lea.vmem [#allocation1], 237
    %v2724 = vld [vmem:[%s2723] sm:$0x80]
    %vm2725 = vcmask 1047559
    %v2726 = vsel %vm2725, %v2724, %v2722
    %2727 = vrot.lane.b32.xlu0 %v2726, 48
    %v2728 = vpop.permute.xlu0 %2727
    %vm2729 = vcmask 621952
    %s2730 = scalar_lea.vmem [#allocation0], 32
    %2731 = vst.msk [vmem:[%s2730] sm:$0xff] %vm2729, %v2728
    %s2732 = scalar_lea.vmem [#allocation1], 276
    %v2733 = vld [vmem:[%s2732] sm:$0x1]
    %s2734 = scalar_lea.vmem [#allocation1], 307
    %v2735 = vld [vmem:[%s2734] sm:$0x2]
    %vm2736 = vcmask 1041409
    %v2737 = vsel %vm2736, %v2735, %v2733
    %s2738 = scalar_lea.vmem [#allocation1], 338
    %v2739 = vld [vmem:[%s2738] sm:$0x4]
    %vm2740 = vcmask 1042434
    %v2741 = vsel %vm2740, %v2739, %v2737
    %s2742 = scalar_lea.vmem [#allocation1], 369
    %v2743 = vld [vmem:[%s2742] sm:$0x8]
    %vm2744 = vcmask 1043459
    %v2745 = vsel %vm2744, %v2743, %v2741
    %s2746 = scalar_lea.vmem [#allocation1], 400
    %v2747 = vld [vmem:[%s2746] sm:$0x10]
    %vm2748 = vcmask 1044484
    %v2749 = vsel %vm2748, %v2747, %v2745
    %s2750 = scalar_lea.vmem [#allocation1], 431
    %v2751 = vld [vmem:[%s2750] sm:$0x20]
    %vm2752 = vcmask 1045509
    %v2753 = vsel %vm2752, %v2751, %v2749
    %s2754 = scalar_lea.vmem [#allocation1], 462
    %v2755 = vld [vmem:[%s2754] sm:$0x40]
    %vm2756 = vcmask 1046534
    %v2757 = vsel %vm2756, %v2755, %v2753
    %s2758 = scalar_lea.vmem [#allocation1], 493
    %v2759 = vld [vmem:[%s2758] sm:$0x80]
    %vm2760 = vcmask 1047559
    %v2761 = vsel %vm2760, %v2759, %v2757
    %2762 = vrot.lane.b32.xlu0 %v2761, 48
    %v2763 = vpop.permute.xlu0 %2762
    %vm2764 = vcmask 621952
    %s2765 = scalar_lea.vmem [#allocation0], 88
    %2766 = vst.msk [vmem:[%s2765] sm:$0xff] %vm2764, %v2763
    %s2767 = scalar_lea.vmem [#allocation1], 262
    %v2768 = vld [vmem:[%s2767] sm:$0x1]
    %s2769 = scalar_lea.vmem [#allocation1], 293
    %v2770 = vld [vmem:[%s2769] sm:$0x2]
    %vm2771 = vcmask 1041409
    %v2772 = vsel %vm2771, %v2770, %v2768
    %s2773 = scalar_lea.vmem [#allocation1], 324
    %v2774 = vld [vmem:[%s2773] sm:$0x4]
    %vm2775 = vcmask 1042434
    %v2776 = vsel %vm2775, %v2774, %v2772
    %s2777 = scalar_lea.vmem [#allocation1], 355
    %v2778 = vld [vmem:[%s2777] sm:$0x8]
    %vm2779 = vcmask 1043459
    %v2780 = vsel %vm2779, %v2778, %v2776
    %s2781 = scalar_lea.vmem [#allocation1], 386
    %v2782 = vld [vmem:[%s2781] sm:$0x10]
    %vm2783 = vcmask 1044484
    %v2784 = vsel %vm2783, %v2782, %v2780
    %s2785 = scalar_lea.vmem [#allocation1], 417
    %v2786 = vld [vmem:[%s2785] sm:$0x20]
    %vm2787 = vcmask 1045509
    %v2788 = vsel %vm2787, %v2786, %v2784
    %s2789 = scalar_lea.vmem [#allocation1], 448
    %v2790 = vld [vmem:[%s2789] sm:$0x40]
    %vm2791 = vcmask 1046534
    %v2792 = vsel %vm2791, %v2790, %v2788
    %s2793 = scalar_lea.vmem [#allocation1], 479
    %v2794 = vld [vmem:[%s2793] sm:$0x80]
    %vm2795 = vcmask 1047559
    %v2796 = vsel %vm2795, %v2794, %v2792
    %2797 = vrot.lane.b32.xlu0 %v2796, 40
    %v2798 = vpop.permute.xlu0 %2797
    %vm2799 = vcmask 556352
    %s2800 = scalar_lea.vmem [#allocation0], 64
    %2801 = vst.msk [vmem:[%s2800] sm:$0xff] %vm2799, %v2798
    %s2802 = scalar_lea.vmem [#allocation1], 6
    %v2803 = vld [vmem:[%s2802] sm:$0x1]
    %s2804 = scalar_lea.vmem [#allocation1], 37
    %v2805 = vld [vmem:[%s2804] sm:$0x2]
    %vm2806 = vcmask 1041409
    %v2807 = vsel %vm2806, %v2805, %v2803
    %s2808 = scalar_lea.vmem [#allocation1], 68
    %v2809 = vld [vmem:[%s2808] sm:$0x4]
    %vm2810 = vcmask 1042434
    %v2811 = vsel %vm2810, %v2809, %v2807
    %s2812 = scalar_lea.vmem [#allocation1], 99
    %v2813 = vld [vmem:[%s2812] sm:$0x8]
    %vm2814 = vcmask 1043459
    %v2815 = vsel %vm2814, %v2813, %v2811
    %s2816 = scalar_lea.vmem [#allocation1], 130
    %v2817 = vld [vmem:[%s2816] sm:$0x10]
    %vm2818 = vcmask 1044484
    %v2819 = vsel %vm2818, %v2817, %v2815
    %s2820 = scalar_lea.vmem [#allocation1], 161
    %v2821 = vld [vmem:[%s2820] sm:$0x20]
    %vm2822 = vcmask 1045509
    %v2823 = vsel %vm2822, %v2821, %v2819
    %s2824 = scalar_lea.vmem [#allocation1], 192
    %v2825 = vld [vmem:[%s2824] sm:$0x40]
    %vm2826 = vcmask 1046534
    %v2827 = vsel %vm2826, %v2825, %v2823
    %s2828 = scalar_lea.vmem [#allocation1], 223
    %v2829 = vld [vmem:[%s2828] sm:$0x80]
    %vm2830 = vcmask 1047559
    %v2831 = vsel %vm2830, %v2829, %v2827
    %2832 = vrot.lane.b32.xlu0 %v2831, 40
    %v2833 = vpop.permute.xlu0 %2832
    %vm2834 = vcmask 556352
    %s2835 = scalar_lea.vmem [#allocation0], 8
    %2836 = vst.msk [vmem:[%s2835] sm:$0xff] %vm2834, %v2833
    %s2837 = scalar_lea.vmem [#allocation1], 271
    %v2838 = vld [vmem:[%s2837] sm:$0x1]
    %s2839 = scalar_lea.vmem [#allocation1], 302
    %v2840 = vld [vmem:[%s2839] sm:$0x2]
    %vm2841 = vcmask 1041409
    %v2842 = vsel %vm2841, %v2840, %v2838
    %s2843 = scalar_lea.vmem [#allocation1], 333
    %v2844 = vld [vmem:[%s2843] sm:$0x4]
    %vm2845 = vcmask 1042434
    %v2846 = vsel %vm2845, %v2844, %v2842
    %s2847 = scalar_lea.vmem [#allocation1], 364
    %v2848 = vld [vmem:[%s2847] sm:$0x8]
    %vm2849 = vcmask 1043459
    %v2850 = vsel %vm2849, %v2848, %v2846
    %s2851 = scalar_lea.vmem [#allocation1], 395
    %v2852 = vld [vmem:[%s2851] sm:$0x10]
    %vm2853 = vcmask 1044484
    %v2854 = vsel %vm2853, %v2852, %v2850
    %s2855 = scalar_lea.vmem [#allocation1], 426
    %v2856 = vld [vmem:[%s2855] sm:$0x20]
    %vm2857 = vcmask 1045509
    %v2858 = vsel %vm2857, %v2856, %v2854
    %s2859 = scalar_lea.vmem [#allocation1], 457
    %v2860 = vld [vmem:[%s2859] sm:$0x40]
    %vm2861 = vcmask 1046534
    %v2862 = vsel %vm2861, %v2860, %v2858
    %s2863 = scalar_lea.vmem [#allocation1], 488
    %v2864 = vld [vmem:[%s2863] sm:$0x80]
    %vm2865 = vcmask 1047559
    %v2866 = vsel %vm2865, %v2864, %v2862
    %2867 = vrot.lane.b32.xlu0 %v2866, 36
    %v2868 = vpop.permute.xlu0 %2867
    %vm2869 = vcmask 523552
    %s2870 = scalar_lea.vmem [#allocation0], 80
    %2871 = vst.msk [vmem:[%s2870] sm:$0xff] %vm2869, %v2868
    %s2872 = scalar_lea.vmem [#allocation1], 15
    %v2873 = vld [vmem:[%s2872] sm:$0x1]
    %s2874 = scalar_lea.vmem [#allocation1], 46
    %v2875 = vld [vmem:[%s2874] sm:$0x2]
    %vm2876 = vcmask 1041409
    %v2877 = vsel %vm2876, %v2875, %v2873
    %s2878 = scalar_lea.vmem [#allocation1], 77
    %v2879 = vld [vmem:[%s2878] sm:$0x4]
    %vm2880 = vcmask 1042434
    %v2881 = vsel %vm2880, %v2879, %v2877
    %s2882 = scalar_lea.vmem [#allocation1], 108
    %v2883 = vld [vmem:[%s2882] sm:$0x8]
    %vm2884 = vcmask 1043459
    %v2885 = vsel %vm2884, %v2883, %v2881
    %s2886 = scalar_lea.vmem [#allocation1], 139
    %v2887 = vld [vmem:[%s2886] sm:$0x10]
    %vm2888 = vcmask 1044484
    %v2889 = vsel %vm2888, %v2887, %v2885
    %s2890 = scalar_lea.vmem [#allocation1], 170
    %v2891 = vld [vmem:[%s2890] sm:$0x20]
    %vm2892 = vcmask 1045509
    %v2893 = vsel %vm2892, %v2891, %v2889
    %s2894 = scalar_lea.vmem [#allocation1], 201
    %v2895 = vld [vmem:[%s2894] sm:$0x40]
    %vm2896 = vcmask 1046534
    %v2897 = vsel %vm2896, %v2895, %v2893
    %s2898 = scalar_lea.vmem [#allocation1], 232
    %v2899 = vld [vmem:[%s2898] sm:$0x80]
    %vm2900 = vcmask 1047559
    %v2901 = vsel %vm2900, %v2899, %v2897
    %2902 = vrot.lane.b32.xlu0 %v2901, 36
    %v2903 = vpop.permute.xlu0 %2902
    %vm2904 = vcmask 523552
    %s2905 = scalar_lea.vmem [#allocation0], 24
    %2906 = vst.msk [vmem:[%s2905] sm:$0xff] %vm2904, %v2903
    %s2907 = scalar_lea.vmem [#allocation1], 280
    %v2908 = vld [vmem:[%s2907] sm:$0x1]
    %s2909 = scalar_lea.vmem [#allocation1], 311
    %v2910 = vld [vmem:[%s2909] sm:$0x2]
    %vm2911 = vcmask 1041409
    %v2912 = vsel %vm2911, %v2910, %v2908
    %s2913 = scalar_lea.vmem [#allocation1], 342
    %v2914 = vld [vmem:[%s2913] sm:$0x4]
    %vm2915 = vcmask 1042434
    %v2916 = vsel %vm2915, %v2914, %v2912
    %s2917 = scalar_lea.vmem [#allocation1], 373
    %v2918 = vld [vmem:[%s2917] sm:$0x8]
    %vm2919 = vcmask 1043459
    %v2920 = vsel %vm2919, %v2918, %v2916
    %s2921 = scalar_lea.vmem [#allocation1], 404
    %v2922 = vld [vmem:[%s2921] sm:$0x10]
    %vm2923 = vcmask 1044484
    %v2924 = vsel %vm2923, %v2922, %v2920
    %s2925 = scalar_lea.vmem [#allocation1], 435
    %v2926 = vld [vmem:[%s2925] sm:$0x20]
    %vm2927 = vcmask 1045509
    %v2928 = vsel %vm2927, %v2926, %v2924
    %s2929 = scalar_lea.vmem [#allocation1], 466
    %v2930 = vld [vmem:[%s2929] sm:$0x40]
    %vm2931 = vcmask 1046534
    %v2932 = vsel %vm2931, %v2930, %v2928
    %s2933 = scalar_lea.vmem [#allocation1], 497
    %v2934 = vld [vmem:[%s2933] sm:$0x80]
    %vm2935 = vcmask 1047559
    %v2936 = vsel %vm2935, %v2934, %v2932
    %2937 = vrot.lane.b32.xlu0 %v2936, 32
    %v2938 = vpop.permute.xlu0 %2937
    %vm2939 = vcmask 490752
    %s2940 = scalar_lea.vmem [#allocation0], 96
    %2941 = vst.msk [vmem:[%s2940] sm:$0xff] %vm2939, %v2938
    %s2942 = scalar_lea.vmem [#allocation1], 24
    %v2943 = vld [vmem:[%s2942] sm:$0x1]
    %s2944 = scalar_lea.vmem [#allocation1], 55
    %v2945 = vld [vmem:[%s2944] sm:$0x2]
    %vm2946 = vcmask 1041409
    %v2947 = vsel %vm2946, %v2945, %v2943
    %s2948 = scalar_lea.vmem [#allocation1], 86
    %v2949 = vld [vmem:[%s2948] sm:$0x4]
    %vm2950 = vcmask 1042434
    %v2951 = vsel %vm2950, %v2949, %v2947
    %s2952 = scalar_lea.vmem [#allocation1], 117
    %v2953 = vld [vmem:[%s2952] sm:$0x8]
    %vm2954 = vcmask 1043459
    %v2955 = vsel %vm2954, %v2953, %v2951
    %s2956 = scalar_lea.vmem [#allocation1], 148
    %v2957 = vld [vmem:[%s2956] sm:$0x10]
    %vm2958 = vcmask 1044484
    %v2959 = vsel %vm2958, %v2957, %v2955
    %s2960 = scalar_lea.vmem [#allocation1], 179
    %v2961 = vld [vmem:[%s2960] sm:$0x20]
    %vm2962 = vcmask 1045509
    %v2963 = vsel %vm2962, %v2961, %v2959
    %s2964 = scalar_lea.vmem [#allocation1], 210
    %v2965 = vld [vmem:[%s2964] sm:$0x40]
    %vm2966 = vcmask 1046534
    %v2967 = vsel %vm2966, %v2965, %v2963
    %s2968 = scalar_lea.vmem [#allocation1], 241
    %v2969 = vld [vmem:[%s2968] sm:$0x80]
    %vm2970 = vcmask 1047559
    %v2971 = vsel %vm2970, %v2969, %v2967
    %2972 = vrot.lane.b32.xlu0 %v2971, 32
    %v2973 = vpop.permute.xlu0 %2972
    %vm2974 = vcmask 490752
    %s2975 = scalar_lea.vmem [#allocation0], 40
    %2976 = vst.msk [vmem:[%s2975] sm:$0xff] %vm2974, %v2973
    %s2977 = scalar_lea.vmem [#allocation1], 1
    %v2978 = vld [vmem:[%s2977] sm:$0x1]
    %s2979 = scalar_lea.vmem [#allocation1], 32
    %v2980 = vld [vmem:[%s2979] sm:$0x2]
    %vm2981 = vcmask 1041409
    %v2982 = vsel %vm2981, %v2980, %v2978
    %s2983 = scalar_lea.vmem [#allocation1], 63
    %v2984 = vld [vmem:[%s2983] sm:$0x4]
    %vm2985 = vcmask 1042434
    %v2986 = vsel %vm2985, %v2984, %v2982
    %s2987 = scalar_lea.vmem [#allocation1], 94
    %v2988 = vld [vmem:[%s2987] sm:$0x8]
    %vm2989 = vcmask 1043459
    %v2990 = vsel %vm2989, %v2988, %v2986
    %s2991 = scalar_lea.vmem [#allocation1], 125
    %v2992 = vld [vmem:[%s2991] sm:$0x10]
    %vm2993 = vcmask 1044484
    %v2994 = vsel %vm2993, %v2992, %v2990
    %s2995 = scalar_lea.vmem [#allocation1], 156
    %v2996 = vld [vmem:[%s2995] sm:$0x20]
    %vm2997 = vcmask 1045509
    %v2998 = vsel %vm2997, %v2996, %v2994
    %s2999 = scalar_lea.vmem [#allocation1], 187
    %v3000 = vld [vmem:[%s2999] sm:$0x40]
    %vm3001 = vcmask 1046534
    %v3002 = vsel %vm3001, %v3000, %v2998
    %s3003 = scalar_lea.vmem [#allocation1], 218
    %v3004 = vld [vmem:[%s3003] sm:$0x80]
    %vm3005 = vcmask 1047559
    %v3006 = vsel %vm3005, %v3004, %v3002
    %3007 = vrot.lane.b32.xlu0 %v3006, 28
    %v3008 = vpop.permute.xlu0 %3007
    %vm3009 = vcmask 457952
    %3010 = vst.msk [vmem:[#allocation0] sm:$0xff] %vm3009, %v3008
    %s3011 = scalar_lea.vmem [#allocation1], 257
    %v3012 = vld [vmem:[%s3011] sm:$0x1]
    %s3013 = scalar_lea.vmem [#allocation1], 288
    %v3014 = vld [vmem:[%s3013] sm:$0x2]
    %vm3015 = vcmask 1041409
    %v3016 = vsel %vm3015, %v3014, %v3012
    %s3017 = scalar_lea.vmem [#allocation1], 319
    %v3018 = vld [vmem:[%s3017] sm:$0x4]
    %vm3019 = vcmask 1042434
    %v3020 = vsel %vm3019, %v3018, %v3016
    %s3021 = scalar_lea.vmem [#allocation1], 350
    %v3022 = vld [vmem:[%s3021] sm:$0x8]
    %vm3023 = vcmask 1043459
    %v3024 = vsel %vm3023, %v3022, %v3020
    %s3025 = scalar_lea.vmem [#allocation1], 381
    %v3026 = vld [vmem:[%s3025] sm:$0x10]
    %vm3027 = vcmask 1044484
    %v3028 = vsel %vm3027, %v3026, %v3024
    %s3029 = scalar_lea.vmem [#allocation1], 412
    %v3030 = vld [vmem:[%s3029] sm:$0x20]
    %vm3031 = vcmask 1045509
    %v3032 = vsel %vm3031, %v3030, %v3028
    %s3033 = scalar_lea.vmem [#allocation1], 443
    %v3034 = vld [vmem:[%s3033] sm:$0x40]
    %vm3035 = vcmask 1046534
    %v3036 = vsel %vm3035, %v3034, %v3032
    %s3037 = scalar_lea.vmem [#allocation1], 474
    %v3038 = vld [vmem:[%s3037] sm:$0x80]
    %vm3039 = vcmask 1047559
    %v3040 = vsel %vm3039, %v3038, %v3036
    %3041 = vrot.lane.b32.xlu0 %v3040, 28
    %v3042 = vpop.permute.xlu0 %3041
    %vm3043 = vcmask 457952
    %s3044 = scalar_lea.vmem [#allocation0], 56
    %3045 = vst.msk [vmem:[%s3044] sm:$0xff] %vm3043, %v3042
    %s3046 = scalar_lea.vmem [#allocation1], 266
    %v3047 = vld [vmem:[%s3046] sm:$0x1]
    %s3048 = scalar_lea.vmem [#allocation1], 297
    %v3049 = vld [vmem:[%s3048] sm:$0x2]
    %vm3050 = vcmask 1041409
    %v3051 = vsel %vm3050, %v3049, %v3047
    %s3052 = scalar_lea.vmem [#allocation1], 328
    %v3053 = vld [vmem:[%s3052] sm:$0x4]
    %vm3054 = vcmask 1042434
    %v3055 = vsel %vm3054, %v3053, %v3051
    %s3056 = scalar_lea.vmem [#allocation1], 359
    %v3057 = vld [vmem:[%s3056] sm:$0x8]
    %vm3058 = vcmask 1043459
    %v3059 = vsel %vm3058, %v3057, %v3055
    %s3060 = scalar_lea.vmem [#allocation1], 390
    %v3061 = vld [vmem:[%s3060] sm:$0x10]
    %vm3062 = vcmask 1044484
    %v3063 = vsel %vm3062, %v3061, %v3059
    %s3064 = scalar_lea.vmem [#allocation1], 421
    %v3065 = vld [vmem:[%s3064] sm:$0x20]
    %vm3066 = vcmask 1045509
    %v3067 = vsel %vm3066, %v3065, %v3063
    %s3068 = scalar_lea.vmem [#allocation1], 452
    %v3069 = vld [vmem:[%s3068] sm:$0x40]
    %vm3070 = vcmask 1046534
    %v3071 = vsel %vm3070, %v3069, %v3067
    %s3072 = scalar_lea.vmem [#allocation1], 483
    %v3073 = vld [vmem:[%s3072] sm:$0x80]
    %vm3074 = vcmask 1047559
    %v3075 = vsel %vm3074, %v3073, %v3071
    %3076 = vrot.lane.b32.xlu0 %v3075, 24
    %v3077 = vpop.permute.xlu0 %3076
    %vm3078 = vcmask 425152
    %s3079 = scalar_lea.vmem [#allocation0], 72
    %3080 = vst.msk [vmem:[%s3079] sm:$0xff] %vm3078, %v3077
    %s3081 = scalar_lea.vmem [#allocation1], 10
    %v3082 = vld [vmem:[%s3081] sm:$0x1]
    %s3083 = scalar_lea.vmem [#allocation1], 41
    %v3084 = vld [vmem:[%s3083] sm:$0x2]
    %vm3085 = vcmask 1041409
    %v3086 = vsel %vm3085, %v3084, %v3082
    %s3087 = scalar_lea.vmem [#allocation1], 72
    %v3088 = vld [vmem:[%s3087] sm:$0x4]
    %vm3089 = vcmask 1042434
    %v3090 = vsel %vm3089, %v3088, %v3086
    %s3091 = scalar_lea.vmem [#allocation1], 103
    %v3092 = vld [vmem:[%s3091] sm:$0x8]
    %vm3093 = vcmask 1043459
    %v3094 = vsel %vm3093, %v3092, %v3090
    %s3095 = scalar_lea.vmem [#allocation1], 134
    %v3096 = vld [vmem:[%s3095] sm:$0x10]
    %vm3097 = vcmask 1044484
    %v3098 = vsel %vm3097, %v3096, %v3094
    %s3099 = scalar_lea.vmem [#allocation1], 165
    %v3100 = vld [vmem:[%s3099] sm:$0x20]
    %vm3101 = vcmask 1045509
    %v3102 = vsel %vm3101, %v3100, %v3098
    %s3103 = scalar_lea.vmem [#allocation1], 196
    %v3104 = vld [vmem:[%s3103] sm:$0x40]
    %vm3105 = vcmask 1046534
    %v3106 = vsel %vm3105, %v3104, %v3102
    %s3107 = scalar_lea.vmem [#allocation1], 227
    %v3108 = vld [vmem:[%s3107] sm:$0x80]
    %vm3109 = vcmask 1047559
    %v3110 = vsel %vm3109, %v3108, %v3106
    %3111 = vrot.lane.b32.xlu0 %v3110, 24
    %v3112 = vpop.permute.xlu0 %3111
    %vm3113 = vcmask 425152
    %s3114 = scalar_lea.vmem [#allocation0], 16
    %3115 = vst.msk [vmem:[%s3114] sm:$0xff] %vm3113, %v3112
    %s3116 = scalar_lea.vmem [#allocation1], 19
    %v3117 = vld [vmem:[%s3116] sm:$0x1]
    %s3118 = scalar_lea.vmem [#allocation1], 50
    %v3119 = vld [vmem:[%s3118] sm:$0x2]
    %vm3120 = vcmask 1041409
    %v3121 = vsel %vm3120, %v3119, %v3117
    %s3122 = scalar_lea.vmem [#allocation1], 81
    %v3123 = vld [vmem:[%s3122] sm:$0x4]
    %vm3124 = vcmask 1042434
    %v3125 = vsel %vm3124, %v3123, %v3121
    %s3126 = scalar_lea.vmem [#allocation1], 112
    %v3127 = vld [vmem:[%s3126] sm:$0x8]
    %vm3128 = vcmask 1043459
    %v3129 = vsel %vm3128, %v3127, %v3125
    %s3130 = scalar_lea.vmem [#allocation1], 143
    %v3131 = vld [vmem:[%s3130] sm:$0x10]
    %vm3132 = vcmask 1044484
    %v3133 = vsel %vm3132, %v3131, %v3129
    %s3134 = scalar_lea.vmem [#allocation1], 174
    %v3135 = vld [vmem:[%s3134] sm:$0x20]
    %vm3136 = vcmask 1045509
    %v3137 = vsel %vm3136, %v3135, %v3133
    %s3138 = scalar_lea.vmem [#allocation1], 205
    %v3139 = vld [vmem:[%s3138] sm:$0x40]
    %vm3140 = vcmask 1046534
    %v3141 = vsel %vm3140, %v3139, %v3137
    %s3142 = scalar_lea.vmem [#allocation1], 236
    %v3143 = vld [vmem:[%s3142] sm:$0x80]
    %vm3144 = vcmask 1047559
    %v3145 = vsel %vm3144, %v3143, %v3141
    %3146 = vrot.lane.b32.xlu0 %v3145, 20
    %v3147 = vpop.permute.xlu0 %3146
    %vm3148 = vcmask 392352
    %s3149 = scalar_lea.vmem [#allocation0], 32
    %3150 = vst.msk [vmem:[%s3149] sm:$0xff] %vm3148, %v3147
    %s3151 = scalar_lea.vmem [#allocation1], 275
    %v3152 = vld [vmem:[%s3151] sm:$0x1]
    %s3153 = scalar_lea.vmem [#allocation1], 306
    %v3154 = vld [vmem:[%s3153] sm:$0x2]
    %vm3155 = vcmask 1041409
    %v3156 = vsel %vm3155, %v3154, %v3152
    %s3157 = scalar_lea.vmem [#allocation1], 337
    %v3158 = vld [vmem:[%s3157] sm:$0x4]
    %vm3159 = vcmask 1042434
    %v3160 = vsel %vm3159, %v3158, %v3156
    %s3161 = scalar_lea.vmem [#allocation1], 368
    %v3162 = vld [vmem:[%s3161] sm:$0x8]
    %vm3163 = vcmask 1043459
    %v3164 = vsel %vm3163, %v3162, %v3160
    %s3165 = scalar_lea.vmem [#allocation1], 399
    %v3166 = vld [vmem:[%s3165] sm:$0x10]
    %vm3167 = vcmask 1044484
    %v3168 = vsel %vm3167, %v3166, %v3164
    %s3169 = scalar_lea.vmem [#allocation1], 430
    %v3170 = vld [vmem:[%s3169] sm:$0x20]
    %vm3171 = vcmask 1045509
    %v3172 = vsel %vm3171, %v3170, %v3168
    %s3173 = scalar_lea.vmem [#allocation1], 461
    %v3174 = vld [vmem:[%s3173] sm:$0x40]
    %vm3175 = vcmask 1046534
    %v3176 = vsel %vm3175, %v3174, %v3172
    %s3177 = scalar_lea.vmem [#allocation1], 492
    %v3178 = vld [vmem:[%s3177] sm:$0x80]
    %vm3179 = vcmask 1047559
    %v3180 = vsel %vm3179, %v3178, %v3176
    %3181 = vrot.lane.b32.xlu0 %v3180, 20
    %v3182 = vpop.permute.xlu0 %3181
    %vm3183 = vcmask 392352
    %s3184 = scalar_lea.vmem [#allocation0], 88
    %3185 = vst.msk [vmem:[%s3184] sm:$0xff] %vm3183, %v3182
    %s3186 = scalar_lea.vmem [#allocation1], 261
    %v3187 = vld [vmem:[%s3186] sm:$0x1]
    %s3188 = scalar_lea.vmem [#allocation1], 292
    %v3189 = vld [vmem:[%s3188] sm:$0x2]
    %vm3190 = vcmask 1041409
    %v3191 = vsel %vm3190, %v3189, %v3187
    %s3192 = scalar_lea.vmem [#allocation1], 323
    %v3193 = vld [vmem:[%s3192] sm:$0x4]
    %vm3194 = vcmask 1042434
    %v3195 = vsel %vm3194, %v3193, %v3191
    %s3196 = scalar_lea.vmem [#allocation1], 354
    %v3197 = vld [vmem:[%s3196] sm:$0x8]
    %vm3198 = vcmask 1043459
    %v3199 = vsel %vm3198, %v3197, %v3195
    %s3200 = scalar_lea.vmem [#allocation1], 385
    %v3201 = vld [vmem:[%s3200] sm:$0x10]
    %vm3202 = vcmask 1044484
    %v3203 = vsel %vm3202, %v3201, %v3199
    %s3204 = scalar_lea.vmem [#allocation1], 416
    %v3205 = vld [vmem:[%s3204] sm:$0x20]
    %vm3206 = vcmask 1045509
    %v3207 = vsel %vm3206, %v3205, %v3203
    %s3208 = scalar_lea.vmem [#allocation1], 447
    %v3209 = vld [vmem:[%s3208] sm:$0x40]
    %vm3210 = vcmask 1046534
    %v3211 = vsel %vm3210, %v3209, %v3207
    %s3212 = scalar_lea.vmem [#allocation1], 478
    %v3213 = vld [vmem:[%s3212] sm:$0x80]
    %vm3214 = vcmask 1047559
    %v3215 = vsel %vm3214, %v3213, %v3211
    %3216 = vrot.lane.b32.xlu0 %v3215, 12
    %v3217 = vpop.permute.xlu0 %3216
    %vm3218 = vcmask 326752
    %s3219 = scalar_lea.vmem [#allocation0], 64
    %3220 = vst.msk [vmem:[%s3219] sm:$0xff] %vm3218, %v3217
    %s3221 = scalar_lea.vmem [#allocation1], 5
    %v3222 = vld [vmem:[%s3221] sm:$0x1]
    %s3223 = scalar_lea.vmem [#allocation1], 36
    %v3224 = vld [vmem:[%s3223] sm:$0x2]
    %vm3225 = vcmask 1041409
    %v3226 = vsel %vm3225, %v3224, %v3222
    %s3227 = scalar_lea.vmem [#allocation1], 67
    %v3228 = vld [vmem:[%s3227] sm:$0x4]
    %vm3229 = vcmask 1042434
    %v3230 = vsel %vm3229, %v3228, %v3226
    %s3231 = scalar_lea.vmem [#allocation1], 98
    %v3232 = vld [vmem:[%s3231] sm:$0x8]
    %vm3233 = vcmask 1043459
    %v3234 = vsel %vm3233, %v3232, %v3230
    %s3235 = scalar_lea.vmem [#allocation1], 129
    %v3236 = vld [vmem:[%s3235] sm:$0x10]
    %vm3237 = vcmask 1044484
    %v3238 = vsel %vm3237, %v3236, %v3234
    %s3239 = scalar_lea.vmem [#allocation1], 160
    %v3240 = vld [vmem:[%s3239] sm:$0x20]
    %vm3241 = vcmask 1045509
    %v3242 = vsel %vm3241, %v3240, %v3238
    %s3243 = scalar_lea.vmem [#allocation1], 191
    %v3244 = vld [vmem:[%s3243] sm:$0x40]
    %vm3245 = vcmask 1046534
    %v3246 = vsel %vm3245, %v3244, %v3242
    %s3247 = scalar_lea.vmem [#allocation1], 222
    %v3248 = vld [vmem:[%s3247] sm:$0x80]
    %vm3249 = vcmask 1047559
    %v3250 = vsel %vm3249, %v3248, %v3246
    %3251 = vrot.lane.b32.xlu0 %v3250, 12
    %v3252 = vpop.permute.xlu0 %3251
    %vm3253 = vcmask 326752
    %s3254 = scalar_lea.vmem [#allocation0], 8
    %3255 = vst.msk [vmem:[%s3254] sm:$0xff] %vm3253, %v3252
    %s3256 = scalar_lea.vmem [#allocation1], 270
    %v3257 = vld [vmem:[%s3256] sm:$0x1]
    %s3258 = scalar_lea.vmem [#allocation1], 301
    %v3259 = vld [vmem:[%s3258] sm:$0x2]
    %vm3260 = vcmask 1041409
    %v3261 = vsel %vm3260, %v3259, %v3257
    %s3262 = scalar_lea.vmem [#allocation1], 332
    %v3263 = vld [vmem:[%s3262] sm:$0x4]
    %vm3264 = vcmask 1042434
    %v3265 = vsel %vm3264, %v3263, %v3261
    %s3266 = scalar_lea.vmem [#allocation1], 363
    %v3267 = vld [vmem:[%s3266] sm:$0x8]
    %vm3268 = vcmask 1043459
    %v3269 = vsel %vm3268, %v3267, %v3265
    %s3270 = scalar_lea.vmem [#allocation1], 394
    %v3271 = vld [vmem:[%s3270] sm:$0x10]
    %vm3272 = vcmask 1044484
    %v3273 = vsel %vm3272, %v3271, %v3269
    %s3274 = scalar_lea.vmem [#allocation1], 425
    %v3275 = vld [vmem:[%s3274] sm:$0x20]
    %vm3276 = vcmask 1045509
    %v3277 = vsel %vm3276, %v3275, %v3273
    %s3278 = scalar_lea.vmem [#allocation1], 456
    %v3279 = vld [vmem:[%s3278] sm:$0x40]
    %vm3280 = vcmask 1046534
    %v3281 = vsel %vm3280, %v3279, %v3277
    %s3282 = scalar_lea.vmem [#allocation1], 487
    %v3283 = vld [vmem:[%s3282] sm:$0x80]
    %vm3284 = vcmask 1047559
    %v3285 = vsel %vm3284, %v3283, %v3281
    %3286 = vrot.lane.b32.xlu0 %v3285, 8
    %v3287 = vpop.permute.xlu0 %3286
    %vm3288 = vcmask 293952
    %s3289 = scalar_lea.vmem [#allocation0], 80
    %3290 = vst.msk [vmem:[%s3289] sm:$0xff] %vm3288, %v3287
    %s3291 = scalar_lea.vmem [#allocation1], 14
    %v3292 = vld [vmem:[%s3291] sm:$0x1]
    %s3293 = scalar_lea.vmem [#allocation1], 45
    %v3294 = vld [vmem:[%s3293] sm:$0x2]
    %vm3295 = vcmask 1041409
    %v3296 = vsel %vm3295, %v3294, %v3292
    %s3297 = scalar_lea.vmem [#allocation1], 76
    %v3298 = vld [vmem:[%s3297] sm:$0x4]
    %vm3299 = vcmask 1042434
    %v3300 = vsel %vm3299, %v3298, %v3296
    %s3301 = scalar_lea.vmem [#allocation1], 107
    %v3302 = vld [vmem:[%s3301] sm:$0x8]
    %vm3303 = vcmask 1043459
    %v3304 = vsel %vm3303, %v3302, %v3300
    %s3305 = scalar_lea.vmem [#allocation1], 138
    %v3306 = vld [vmem:[%s3305] sm:$0x10]
    %vm3307 = vcmask 1044484
    %v3308 = vsel %vm3307, %v3306, %v3304
    %s3309 = scalar_lea.vmem [#allocation1], 169
    %v3310 = vld [vmem:[%s3309] sm:$0x20]
    %vm3311 = vcmask 1045509
    %v3312 = vsel %vm3311, %v3310, %v3308
    %s3313 = scalar_lea.vmem [#allocation1], 200
    %v3314 = vld [vmem:[%s3313] sm:$0x40]
    %vm3315 = vcmask 1046534
    %v3316 = vsel %vm3315, %v3314, %v3312
    %s3317 = scalar_lea.vmem [#allocation1], 231
    %v3318 = vld [vmem:[%s3317] sm:$0x80]
    %vm3319 = vcmask 1047559
    %v3320 = vsel %vm3319, %v3318, %v3316
    %3321 = vrot.lane.b32.xlu0 %v3320, 8
    %v3322 = vpop.permute.xlu0 %3321
    %vm3323 = vcmask 293952
    %s3324 = scalar_lea.vmem [#allocation0], 24
    %3325 = vst.msk [vmem:[%s3324] sm:$0xff] %vm3323, %v3322
    %s3326 = scalar_lea.vmem [#allocation1], 279
    %v3327 = vld [vmem:[%s3326] sm:$0x1]
    %s3328 = scalar_lea.vmem [#allocation1], 310
    %v3329 = vld [vmem:[%s3328] sm:$0x2]
    %vm3330 = vcmask 1041409
    %v3331 = vsel %vm3330, %v3329, %v3327
    %s3332 = scalar_lea.vmem [#allocation1], 341
    %v3333 = vld [vmem:[%s3332] sm:$0x4]
    %vm3334 = vcmask 1042434
    %v3335 = vsel %vm3334, %v3333, %v3331
    %s3336 = scalar_lea.vmem [#allocation1], 372
    %v3337 = vld [vmem:[%s3336] sm:$0x8]
    %vm3338 = vcmask 1043459
    %v3339 = vsel %vm3338, %v3337, %v3335
    %s3340 = scalar_lea.vmem [#allocation1], 403
    %v3341 = vld [vmem:[%s3340] sm:$0x10]
    %vm3342 = vcmask 1044484
    %v3343 = vsel %vm3342, %v3341, %v3339
    %s3344 = scalar_lea.vmem [#allocation1], 434
    %v3345 = vld [vmem:[%s3344] sm:$0x20]
    %vm3346 = vcmask 1045509
    %v3347 = vsel %vm3346, %v3345, %v3343
    %s3348 = scalar_lea.vmem [#allocation1], 465
    %v3349 = vld [vmem:[%s3348] sm:$0x40]
    %vm3350 = vcmask 1046534
    %v3351 = vsel %vm3350, %v3349, %v3347
    %s3352 = scalar_lea.vmem [#allocation1], 496
    %v3353 = vld [vmem:[%s3352] sm:$0x80]
    %vm3354 = vcmask 1047559
    %v3355 = vsel %vm3354, %v3353, %v3351
    %3356 = vrot.lane.b32.xlu0 %v3355, 4
    %v3357 = vpop.permute.xlu0 %3356
    %vm3358 = vcmask 261152
    %s3359 = scalar_lea.vmem [#allocation0], 96
    %3360 = vst.msk [vmem:[%s3359] sm:$0xff] %vm3358, %v3357
    %s3361 = scalar_lea.vmem [#allocation1], 23
    %v3362 = vld [vmem:[%s3361] sm:$0x1]
    %s3363 = scalar_lea.vmem [#allocation1], 54
    %v3364 = vld [vmem:[%s3363] sm:$0x2]
    %vm3365 = vcmask 1041409
    %v3366 = vsel %vm3365, %v3364, %v3362
    %s3367 = scalar_lea.vmem [#allocation1], 85
    %v3368 = vld [vmem:[%s3367] sm:$0x4]
    %vm3369 = vcmask 1042434
    %v3370 = vsel %vm3369, %v3368, %v3366
    %s3371 = scalar_lea.vmem [#allocation1], 116
    %v3372 = vld [vmem:[%s3371] sm:$0x8]
    %vm3373 = vcmask 1043459
    %v3374 = vsel %vm3373, %v3372, %v3370
    %s3375 = scalar_lea.vmem [#allocation1], 147
    %v3376 = vld [vmem:[%s3375] sm:$0x10]
    %vm3377 = vcmask 1044484
    %v3378 = vsel %vm3377, %v3376, %v3374
    %s3379 = scalar_lea.vmem [#allocation1], 178
    %v3380 = vld [vmem:[%s3379] sm:$0x20]
    %vm3381 = vcmask 1045509
    %v3382 = vsel %vm3381, %v3380, %v3378
    %s3383 = scalar_lea.vmem [#allocation1], 209
    %v3384 = vld [vmem:[%s3383] sm:$0x40]
    %vm3385 = vcmask 1046534
    %v3386 = vsel %vm3385, %v3384, %v3382
    %s3387 = scalar_lea.vmem [#allocation1], 240
    %v3388 = vld [vmem:[%s3387] sm:$0x80]
    %vm3389 = vcmask 1047559
    %v3390 = vsel %vm3389, %v3388, %v3386
    %3391 = vrot.lane.b32.xlu0 %v3390, 4
    %v3392 = vpop.permute.xlu0 %3391
    %vm3393 = vcmask 261152
    %s3394 = scalar_lea.vmem [#allocation0], 40
    %3395 = vst.msk [vmem:[%s3394] sm:$0xff] %vm3393, %v3392
    %s3397 = smul.u32 4, 2
    %s3398 = sshll.u32 1, %s3397
    %s3399 = ssub.s32 %s3398, 1
    %s3400 = sshrl.u32 %s3397, 1
    %v3401 = vld [vmem:[#allocation0] sm:%s3399]
    %v3402 = vpack.c.bf16 0.0, %v3401
    %s3403 = sshll.u32 1, %s3400
    %s3404 = ssub.s32 %s3403, 1
    %3405 = vst [vmem:[%s1] sm:%s3404] %v3402
    %s3406 = scalar_lea.vmem [#allocation0], 8
    %v3407 = vld [vmem:[%s3406] sm:%s3399]
    %v3408 = vpack.c.bf16 0.0, %v3407
    %s3409 = sshll.u32 1, %s3400
    %s3410 = ssub.s32 %s3409, 1
    %s3411 = scalar_lea.vmem %s1, 4
    %3412 = vst [vmem:[%s3411] sm:%s3410] %v3408
    %s3413 = scalar_lea.vmem [#allocation0], 16
    %v3414 = vld [vmem:[%s3413] sm:%s3399]
    %v3415 = vpack.c.bf16 0.0, %v3414
    %s3416 = sshll.u32 1, %s3400
    %s3417 = ssub.s32 %s3416, 1
    %s3418 = smul.addr 4, 2
    %s3419 = scalar_lea.vmem %s1, %s3418
    %3420 = vst [vmem:[%s3419] sm:%s3417] %v3415
    %s3421 = scalar_lea.vmem [#allocation0], 24
    %v3422 = vld [vmem:[%s3421] sm:%s3399]
    %v3423 = vpack.c.bf16 0.0, %v3422
    %s3424 = sshll.u32 1, %s3400
    %s3425 = ssub.s32 %s3424, 1
    %s3426 = smul.addr 4, 3
    %s3427 = scalar_lea.vmem %s1, %s3426
    %3428 = vst [vmem:[%s3427] sm:%s3425] %v3423
    %s3429 = scalar_lea.vmem [#allocation0], 32
    %v3430 = vld [vmem:[%s3429] sm:%s3399]
    %v3431 = vpack.c.bf16 0.0, %v3430
    %s3432 = sshll.u32 1, %s3400
    %s3433 = ssub.s32 %s3432, 1
    %s3434 = smul.addr 4, 4
    %s3435 = scalar_lea.vmem %s1, %s3434
    %3436 = vst [vmem:[%s3435] sm:%s3433] %v3431
    %s3437 = scalar_lea.vmem [#allocation0], 40
    %v3438 = vld [vmem:[%s3437] sm:%s3399]
    %v3439 = vpack.c.bf16 0.0, %v3438
    %s3440 = sshll.u32 1, %s3400
    %s3441 = ssub.s32 %s3440, 1
    %s3442 = smul.addr 4, 5
    %s3443 = scalar_lea.vmem %s1, %s3442
    %3444 = vst [vmem:[%s3443] sm:%s3441] %v3439
    %s3445 = scalar_lea.vmem [#allocation0], 48
    %v3446 = vld [vmem:[%s3445] sm:%s3399]
    %v3447 = vpack.c.bf16 0.0, %v3446
    %s3448 = sshll.u32 1, %s3400
    %s3449 = ssub.s32 %s3448, 1
    %s3450 = smul.addr 4, 6
    %s3451 = scalar_lea.vmem %s1, %s3450
    %3452 = vst [vmem:[%s3451] sm:%s3449] %v3447
    %s3453 = scalar_lea.vmem [#allocation0], 56
    %v3454 = vld [vmem:[%s3453] sm:%s3399]
    %v3455 = vpack.c.bf16 0.0, %v3454
    %s3456 = sshll.u32 1, %s3400
    %s3457 = ssub.s32 %s3456, 1
    %s3458 = smul.addr 4, 7
    %s3459 = scalar_lea.vmem %s1, %s3458
    %3460 = vst [vmem:[%s3459] sm:%s3457] %v3455
    %s3461 = scalar_lea.vmem [#allocation0], 64
    %v3462 = vld [vmem:[%s3461] sm:%s3399]
    %v3463 = vpack.c.bf16 0.0, %v3462
    %s3464 = sshll.u32 1, %s3400
    %s3465 = ssub.s32 %s3464, 1
    %s3466 = smul.addr 4, 8
    %s3467 = scalar_lea.vmem %s1, %s3466
    %3468 = vst [vmem:[%s3467] sm:%s3465] %v3463
    %s3469 = scalar_lea.vmem [#allocation0], 72
    %v3470 = vld [vmem:[%s3469] sm:%s3399]
    %v3471 = vpack.c.bf16 0.0, %v3470
    %s3472 = sshll.u32 1, %s3400
    %s3473 = ssub.s32 %s3472, 1
    %s3474 = smul.addr 4, 9
    %s3475 = scalar_lea.vmem %s1, %s3474
    %3476 = vst [vmem:[%s3475] sm:%s3473] %v3471
    %s3477 = scalar_lea.vmem [#allocation0], 80
    %v3478 = vld [vmem:[%s3477] sm:%s3399]
    %v3479 = vpack.c.bf16 0.0, %v3478
    %s3480 = sshll.u32 1, %s3400
    %s3481 = ssub.s32 %s3480, 1
    %s3482 = smul.addr 4, 10
    %s3483 = scalar_lea.vmem %s1, %s3482
    %3484 = vst [vmem:[%s3483] sm:%s3481] %v3479
    %s3485 = scalar_lea.vmem [#allocation0], 88
    %v3486 = vld [vmem:[%s3485] sm:%s3399]
    %v3487 = vpack.c.bf16 0.0, %v3486
    %s3488 = sshll.u32 1, %s3400
    %s3489 = ssub.s32 %s3488, 1
    %s3490 = smul.addr 4, 11
    %s3491 = scalar_lea.vmem %s1, %s3490
    %3492 = vst [vmem:[%s3491] sm:%s3489] %v3487
    %s3493 = scalar_lea.vmem [#allocation0], 96
    %v3494 = vld [vmem:[%s3493] sm:%s3399]
    %v3495 = vpack.c.bf16 0.0, %v3494
    %s3496 = sshll.u32 1, %s3400
    %s3497 = ssub.s32 %s3496, 1
    %s3498 = smul.addr 4, 12
    %s3499 = scalar_lea.vmem %s1, %s3498
    %3500 = vst [vmem:[%s3499] sm:%s3497] %v3495
    %s3501 = scalar_lea.vmem [#allocation0], 104
    %v3502 = vld [vmem:[%s3501] sm:%s3399]
    %v3503 = vpack.c.bf16 0.0, %v3502
    %s3504 = sshll.u32 1, %s3400
    %s3505 = ssub.s32 %s3504, 1
    %s3506 = smul.addr 4, 13
    %s3507 = scalar_lea.vmem %s1, %s3506
    %3508 = vst [vmem:[%s3507] sm:%s3505] %v3503

// kernel: net_forward.3
$region0: #{net_forward.3}
  #allocation0 [shape = 'u32[]', space=smem, size = 0x4, offset = 0x4, fixed_abs, tag = 'smem constant byte address 0x4 - core index']
  #allocation1 [shape = 'u32[144,128]{1,0:T(1,128)}', space=vmem, size = 0x12000, scoped, tag = 'internal scratch']
  %s0 = inlined_call_operand.vmem [shape: bf16[16,256], index: 0, kind: input, shape index: {}]
  %s1 = inlined_call_operand.vmem [shape: f32[2], index: 1, kind: input, shape index: {}]
  %s2 = inlined_call_operand.vmem [shape: f32[256,128], index: 2, kind: input, shape index: {}]
  %s3 = inlined_call_operand.vmem [shape: f32[128,128], index: 3, kind: input, shape index: {}]
  %s4 = inlined_call_operand.vmem [shape: f32[1,128], index: 4, kind: input, shape index: {}]
  %s5 = inlined_call_operand.vmem [shape: bf16[16,128], index: 5, kind: output, shape index: {}]
  %s6 = sld [smem:[#allocation0]]
  $region57: #{net_forward.3} parent=0
    _
  %s8 = ssub.s32 1, %s6
  %s9 = scalar_select 0, %s8, %s6
  $region1: #{net_forward.3} parent=0
    #allocation2 [shape = 'u8[512]{0}', space=smem, size = 0x200, scoped, tag = 'input window, operand 1, single buffered']
    #allocation3 [shape = 's32[2]{0}', space=sflag, size = 0x8, scoped, tag = 'scoped memory for net_forward.3']
    %10 = vsyncpa [#allocation3], 0
    loop: start=0, step=1, limit=4
    $region2: #{net_forward.3} parent=1 // loop_pre_header
      _
    $region3: #{net_forward.3} parent=1 // loop_header
      %s12 = sphi 0, %s16
      %p13 = scmp.ge.s32.totalorder %s12, 4
      %s22 = sphi 0, %s24
      %s25 = sphi 0, %s22
      %s26 = sphi 0, %s25
      %s42 = sphi 0, %s26
      %s46 = sphi 0, %s46
      %s48 = sphi 0, %s46
      %s49 = sphi 0, %s48
      %s63 = sphi 0, %s49
      %s67 = sphi 0, %s67
      %s69 = sphi 0, %s67
      %s70 = sphi 0, %s69
      %s84 = sphi 0, %s70
      %s88 = sphi 0, %s88
      %s90 = sphi 0, %s88
      %s91 = sphi 0, %s90
      %s105 = sphi 0, %s91
      %s109 = sphi 0, %s109
      %s111 = sphi 0, %s109
      %s112 = sphi 0, %s111
      %s126 = sphi 0, %s112
      %s132 = sphi 0, %s134
      %s135 = sphi 0, %s132
      %s136 = sphi 0, %s135
      %s152 = sphi 0, %s136
    $region4: #{net_forward.3} parent=1 // loop_header_branch
      %15 = sbr.rel (%p13) target = $region8
    $region5: #{net_forward.3} parent=1 // loop_body
      %s17 = ssub.s32 %s12, 1
      %s18 = ssub.s32 %s12, 2
      %s19 = sadd.s32 %s12, 1
      %s20 = ssub.s32 %s12, %s19
      %p21 = scmp.eq.s32.totalorder %s20, 0
      %s23 = sadd.s32 %s22, 1
      %s24 = scalar_select %p21, %s22, %s23
      %p27 = pneg %p21
      %p28 = scmp.eq.s32.totalorder %s12, 1
      %p29 = por %p27, %p28
      %p30 = scmp.ne.s32.totalorder %s22, %s25
      %p31 = scmp.eq.s32.totalorder %s12, 0
      %p32 = por %p30, %p31
      %p33 = scmp.ne.s32.totalorder %s22, %s25
      %p34 = scmp.eq.s32.totalorder %s17, 1
      %p35 = por %p33, %p34
      %p36 = scmp.ne.s32.totalorder %s25, %s26
      %p37 = scmp.eq.s32.totalorder %s17, 0
      %p38 = por %p36, %p37
      %p39 = scmp.ne.s32.totalorder %s25, %s26
      %p40 = scmp.eq.s32.totalorder %s18, 1
      %p41 = por %p39, %p40
      %p43 = scmp.ne.s32.totalorder %s26, %s42
      %p44 = scmp.eq.s32.totalorder %s18, 0
      %p45 = por %p43, %p44
      %s47 = sadd.s32 %s46, 1
      %p50 = scmp.eq.s32.totalorder %s12, 1
      %p51 = scmp.ne.s32.totalorder %s46, %s48
      %p52 = scmp.eq.s32.totalorder %s12, 0
      %p53 = por %p51, %p52
      %p54 = scmp.ne.s32.totalorder %s46, %s48
      %p55 = scmp.eq.s32.totalorder %s17, 1
      %p56 = por %p54, %p55
      %p57 = scmp.ne.s32.totalorder %s48, %s49
      %p58 = scmp.eq.s32.totalorder %s17, 0
      %p59 = por %p57, %p58
      %p60 = scmp.ne.s32.totalorder %s48, %s49
      %p61 = scmp.eq.s32.totalorder %s18, 1
      %p62 = por %p60, %p61
      %p64 = scmp.ne.s32.totalorder %s49, %s63
      %p65 = scmp.eq.s32.totalorder %s18, 0
      %p66 = por %p64, %p65
      %s68 = sadd.s32 %s67, 1
      %p71 = scmp.eq.s32.totalorder %s12, 1
      %p72 = scmp.ne.s32.totalorder %s67, %s69
      %p73 = scmp.eq.s32.totalorder %s12, 0
      %p74 = por %p72, %p73
      %p75 = scmp.ne.s32.totalorder %s67, %s69
      %p76 = scmp.eq.s32.totalorder %s17, 1
      %p77 = por %p75, %p76
      %p78 = scmp.ne.s32.totalorder %s69, %s70
      %p79 = scmp.eq.s32.totalorder %s17, 0
      %p80 = por %p78, %p79
      %p81 = scmp.ne.s32.totalorder %s69, %s70
      %p82 = scmp.eq.s32.totalorder %s18, 1
      %p83 = por %p81, %p82
      %p85 = scmp.ne.s32.totalorder %s70, %s84
      %p86 = scmp.eq.s32.totalorder %s18, 0
      %p87 = por %p85, %p86
      %s89 = sadd.s32 %s88, 1
      %p92 = scmp.eq.s32.totalorder %s12, 1
      %p93 = scmp.ne.s32.totalorder %s88, %s90
      %p94 = scmp.eq.s32.totalorder %s12, 0
      %p95 = por %p93, %p94
      %p96 = scmp.ne.s32.totalorder %s88, %s90
      %p97 = scmp.eq.s32.totalorder %s17, 1
      %p98 = por %p96, %p97
      %p99 = scmp.ne.s32.totalorder %s90, %s91
      %p100 = scmp.eq.s32.totalorder %s17, 0
      %p101 = por %p99, %p100
      %p102 = scmp.ne.s32.totalorder %s90, %s91
      %p103 = scmp.eq.s32.totalorder %s18, 1
      %p104 = por %p102, %p103
      %p106 = scmp.ne.s32.totalorder %s91, %s105
      %p107 = scmp.eq.s32.totalorder %s18, 0
      %p108 = por %p106, %p107
      %s110 = sadd.s32 %s109, 1
      %p113 = scmp.eq.s32.totalorder %s12, 1
      %p114 = scmp.ne.s32.totalorder %s109, %s111
      %p115 = scmp.eq.s32.totalorder %s12, 0
      %p116 = por %p114, %p115
      %p117 = scmp.ne.s32.totalorder %s109, %s111
      %p118 = scmp.eq.s32.totalorder %s17, 1
      %p119 = por %p117, %p118
      %p120 = scmp.ne.s32.totalorder %s111, %s112
      %p121 = scmp.eq.s32.totalorder %s17, 0
      %p122 = por %p120, %p121
      %p123 = scmp.ne.s32.totalorder %s111, %s112
      %p124 = scmp.eq.s32.totalorder %s18, 1
      %p125 = por %p123, %p124
      %p127 = scmp.ne.s32.totalorder %s112, %s126
      %p128 = scmp.eq.s32.totalorder %s18, 0
      %p129 = por %p127, %p128
      %s130 = ssub.s32 %s12, %s19
      %p131 = scmp.eq.s32.totalorder %s130, 0
      %s133 = sadd.s32 %s132, 1
      %s134 = scalar_select %p131, %s132, %s133
      %p137 = pneg %p131
      %p138 = scmp.eq.s32.totalorder %s12, 1
      %p139 = por %p137, %p138
      %p140 = scmp.ne.s32.totalorder %s132, %s135
      %p141 = scmp.eq.s32.totalorder %s12, 0
      %p142 = por %p140, %p141
      %p143 = scmp.ne.s32.totalorder %s132, %s135
      %p144 = scmp.eq.s32.totalorder %s17, 1
      %p145 = por %p143, %p144
      %p146 = scmp.ne.s32.totalorder %s135, %s136
      %p147 = scmp.eq.s32.totalorder %s17, 0
      %p148 = por %p146, %p147
      %p149 = scmp.ne.s32.totalorder %s135, %s136
      %p150 = scmp.eq.s32.totalorder %s18, 1
      %p151 = por %p149, %p150
      %p153 = scmp.ne.s32.totalorder %s136, %s152
      %p154 = scmp.eq.s32.totalorder %s18, 0
      %p155 = por %p153, %p154
      %p156 = scmp.le.s32.totalorder 1, %s12
      %p157 = scmp.lt.s32.totalorder %s12, 3
      %p158 = pnand %p156, %p157
      %p159 = pneg %p158
      // Predicated region
      $region9: #{net_forward.3} parent=5 // pred_check
        _
      $region10: #{net_forward.3} parent=5 // pred_check_branch
        %161 = sbr.rel (%p158) target = $region12
      $region11: #{net_forward.3} parent=5 // pred_region
        %s162 = ssub.s32 %s12, 1
        // Predicated region
        $region13: #{net_forward.3} parent=11 // pred_check
          %p163 = pneg %p59
        $region14: #{net_forward.3} parent=11 // pred_check_branch
          %165 = sbr.rel (%p163) target = $region16
        $region15: #{net_forward.3} parent=11 // pred_region
          %s167 = ssub.s32 16, 16
          %168 = vsyncadd [#allocation3], %s167
          %s170 = sshll.u32 %s1, 4
          %s171 = int_to_ptr.vmem [resolvable:$true] %s170
          %173 = dma.vmem_to_smem %s171, 16, [#allocation2], [#allocation3]
        $region16: #{net_forward.3} parent=11 // pred_fallthru
          _
        // Predicated region
        $region17: #{net_forward.3} parent=11 // pred_check
          %p174 = pneg %p80
        $region18: #{net_forward.3} parent=11 // pred_check_branch
          %176 = sbr.rel (%p174) target = $region20
        $region19: #{net_forward.3} parent=11 // pred_region
          _
        $region20: #{net_forward.3} parent=11 // pred_fallthru
          _
        // Predicated region
        $region21: #{net_forward.3} parent=11 // pred_check
          %p177 = pneg %p101
        $region22: #{net_forward.3} parent=11 // pred_check_branch
          %179 = sbr.rel (%p177) target = $region24
        $region23: #{net_forward.3} parent=11 // pred_region
          _
        $region24: #{net_forward.3} parent=11 // pred_fallthru
          _
        // Predicated region
        $region25: #{net_forward.3} parent=11 // pred_check
          %p180 = pneg %p122
        $region26: #{net_forward.3} parent=11 // pred_check_branch
          %182 = sbr.rel (%p180) target = $region28
        $region27: #{net_forward.3} parent=11 // pred_region
          _
        $region28: #{net_forward.3} parent=11 // pred_fallthru
          _
      $region12: #{net_forward.3} parent=5 // pred_fallthru
        _
      %p183 = scmp.lt.s32.totalorder %s12, 2
      // Predicated region
      $region29: #{net_forward.3} parent=5 // pred_check
        %p184 = pneg %p183
      $region30: #{net_forward.3} parent=5 // pred_check_branch
        %186 = sbr.rel (%p184) target = $region32
      $region31: #{net_forward.3} parent=5 // pred_region
        // Predicated region
        $region33: #{net_forward.3} parent=31 // pred_check
          %p187 = pneg %p32
        $region34: #{net_forward.3} parent=31 // pred_check_branch
          %189 = sbr.rel (%p187) target = $region36
        $region35: #{net_forward.3} parent=31 // pred_region
          %p190 = scmp.lt.s32.totalorder %s12, 1
          %s191 = scalar_select %p190, %s12, 1
          %s192 = smul.addr %s191, 2
          %s193 = smul.addr %s192, 4
          %s194 = scalar_lea.vmem %s0, %s193
        $region36: #{net_forward.3} parent=31 // pred_fallthru
          _
      $region32: #{net_forward.3} parent=5 // pred_fallthru
        _
      %p195 = scmp.le.s32.totalorder 1, %s12
      %p196 = scmp.lt.s32.totalorder %s12, 3
      %p197 = pnand %p195, %p196
      %p198 = pneg %p197
      // Predicated region
      $region37: #{net_forward.3} parent=5 // pred_check
        _
      $region38: #{net_forward.3} parent=5 // pred_check_branch
        %200 = sbr.rel (%p197) target = $region40
      $region39: #{net_forward.3} parent=5 // pred_region
        %s201 = ssub.s32 %s12, 1
        // Predicated region
        $region41: #{net_forward.3} parent=39 // pred_check
          %p202 = pneg %p59
        $region42: #{net_forward.3} parent=39 // pred_check_branch
          %204 = sbr.rel (%p202) target = $region44
        $region43: #{net_forward.3} parent=39 // pred_region
          %205 = dma.done [#allocation3], 16
        $region44: #{net_forward.3} parent=39 // pred_fallthru
          _
        %206 = sfence
        %p207 = scmp.lt.s32.totalorder %s17, 1
        %s208 = scalar_select %p207, %s17, 1
        %s209 = smul.addr %s208, 2
        %s210 = smul.addr %s209, 4
        %s211 = scalar_lea.vmem %s0, %s210
        %p212 = pneg %p38
        %p213 = pneg %p35
        %p214 = pneg %p59
        %p215 = pneg %p56
        %p216 = pneg %p80
        %p217 = pneg %p77
        %p218 = pneg %p101
        %p219 = pneg %p98
        %p220 = pneg %p122
        %p221 = pneg %p119
        %p222 = pneg %p148
        %p223 = pneg %p145
        %p224 = scmp.lt.s32.totalorder %s17, 1
        %s225 = scalar_select %p224, %s17, 1
        %s226 = smul.addr %s225, 4
        %s227 = scalar_lea.vmem %s5, %s226
        %p228 = scmp.lt.s32.totalorder %s17, 1
        %s229 = scalar_select %p228, %s17, 1
        %s230 = smul.addr %s229, 2
        %s231 = smul.addr %s230, 4
        %s232 = scalar_lea.vmem %s0, %s231
        %p233 = scmp.lt.s32.totalorder %s17, 1
        %s234 = scalar_select %p233, %s17, 1
        %s235 = smul.addr %s234, 4
        %s236 = scalar_lea.vmem %s5, %s235
        %v237 = vld [vmem:[%s232] sm:$0xff]
        %v238 = vunpack.c.l.bf16 %v237
        %v239 = vunpack.c.h.bf16 %v237
        %s240 = sld [smem:[#allocation2]]
        %v241 = vstv %s240
        %v242 = vmul.f32 %v238, %v241
        %v243 = vmul.f32 %v239, %v241
        %s244 = sld [smem:[#allocation2 + $0x1]]
        %v245 = vstv %s244
        %v246 = vadd.f32 %v242, %v245
        %v247 = vadd.f32 %v243, %v245
        %vm248 = vcmp.ge.f32.partialorder %v246, 2.0
        %vm249 = vcmp.ge.f32.partialorder %v247, 2.0
        %v250 = vsel %vm248, 1, 0
        %v251 = vsel %vm249, 1, 0
        %v252 = vcvt.s32.f32 %v250
        %v253 = vcvt.s32.f32 %v251
        %v254 = vld [vmem:[%s2] sm:$0xff]
        %v255 = vld [vmem:[%s2 + $0x8] sm:$0xff]
        %v256 = vld [vmem:[%s2 + $0x10] sm:$0xff]
        %v257 = vld [vmem:[%s2 + $0x18] sm:$0xff]
        %v258 = vld [vmem:[%s2 + $0x20] sm:$0xff]
        %v259 = vld [vmem:[%s2 + $0x28] sm:$0xff]
        %v260 = vld [vmem:[%s2 + $0x30] sm:$0xff]
        %v261 = vld [vmem:[%s2 + $0x38] sm:$0xff]
        %v262 = vld [vmem:[%s2 + $0x40] sm:$0xff]
        %v263 = vld [vmem:[%s2 + $0x48] sm:$0xff]
        %v264 = vld [vmem:[%s2 + $0x50] sm:$0xff]
        %v265 = vld [vmem:[%s2 + $0x58] sm:$0xff]
        %v266 = vld [vmem:[%s2 + $0x60] sm:$0xff]
        %v267 = vld [vmem:[%s2 + $0x68] sm:$0xff]
        %v268 = vld [vmem:[%s2 + $0x70] sm:$0xff]
        %v269 = vld [vmem:[%s2 + $0x78] sm:$0xff]
        %v270 = vld [vmem:[%s2 + $0x80] sm:$0xff]
        %v271 = vld [vmem:[%s2 + $0x88] sm:$0xff]
        %v272 = vld [vmem:[%s2 + $0x90] sm:$0xff]
        %v273 = vld [vmem:[%s2 + $0x98] sm:$0xff]
        %v274 = vld [vmem:[%s2 + $0xa0] sm:$0xff]
        %v275 = vld [vmem:[%s2 + $0xa8] sm:$0xff]
        %v276 = vld [vmem:[%s2 + $0xb0] sm:$0xff]
        %v277 = vld [vmem:[%s2 + $0xb8] sm:$0xff]
        %v278 = vld [vmem:[%s2 + $0xc0] sm:$0xff]
        %v279 = vld [vmem:[%s2 + $0xc8] sm:$0xff]
        %v280 = vld [vmem:[%s2 + $0xd0] sm:$0xff]
        %v281 = vld [vmem:[%s2 + $0xd8] sm:$0xff]
        %v282 = vld [vmem:[%s2 + $0xe0] sm:$0xff]
        %v283 = vld [vmem:[%s2 + $0xe8] sm:$0xff]
        %v284 = vld [vmem:[%s2 + $0xf0] sm:$0xff]
        %v285 = vld [vmem:[%s2 + $0xf8] sm:$0xff]
        %286 = vmatprep.subr.mxu0 0.0
        %287 = vmatpush1.msra.mxu0 %v269
        %288 = vmatprep.subr.mxu0 0.0
        %289 = vmatpush1.msra.mxu0 %v268
        %290 = vmatprep.subr.mxu0 0.0
        %291 = vmatpush1.msra.mxu0 %v267
        %292 = vmatprep.subr.mxu0 0.0
        %293 = vmatpush1.msra.mxu0 %v266
        %294 = vmatprep.subr.mxu0 0.0
        %295 = vmatpush1.msra.mxu0 %v265
        %296 = vmatprep.subr.mxu0 0.0
        %297 = vmatpush1.msra.mxu0 %v264
        %298 = vmatprep.subr.mxu0 0.0
        %299 = vmatpush1.msra.mxu0 %v263
        %300 = vmatprep.subr.mxu0 0.0
        %301 = vmatpush1.msra.mxu0 %v262
        %302 = vmatprep.subr.mxu0 0.0
        %303 = vmatpush1.msra.mxu0 %v261
        %304 = vmatprep.subr.mxu0 0.0
        %305 = vmatpush1.msra.mxu0 %v260
        %306 = vmatprep.subr.mxu0 0.0
        %307 = vmatpush1.msra.mxu0 %v259
        %308 = vmatprep.subr.mxu0 0.0
        %309 = vmatpush1.msra.mxu0 %v258
        %310 = vmatprep.subr.mxu0 0.0
        %311 = vmatpush1.msra.mxu0 %v257
        %312 = vmatprep.subr.mxu0 0.0
        %313 = vmatpush1.msra.mxu0 %v256
        %314 = vmatprep.subr.mxu0 0.0
        %315 = vmatpush1.msra.mxu0 %v255
        %316 = vmatprep.subr.mxu0 0.0
        %317 = vmatpush1.msra.mxu0 %v254
        %318 = vmatprep.subr.mxu0 0.0
        %319 = vmatpush2.msra.mxu0 %v285
        %320 = vmatprep.subr.mxu0 0.0
        %321 = vmatpush2.msra.mxu0 %v284
        %322 = vmatprep.subr.mxu0 0.0
        %323 = vmatpush2.msra.mxu0 %v283
        %324 = vmatprep.subr.mxu0 0.0
        %325 = vmatpush2.msra.mxu0 %v282
        %326 = vmatprep.subr.mxu0 0.0
        %327 = vmatpush2.msra.mxu0 %v281
        %328 = vmatprep.subr.mxu0 0.0
        %329 = vmatpush2.msra.mxu0 %v280
        %330 = vmatprep.subr.mxu0 0.0
        %331 = vmatpush2.msra.mxu0 %v279
        %332 = vmatprep.subr.mxu0 0.0
        %333 = vmatpush2.msra.mxu0 %v278
        %334 = vmatprep.subr.mxu0 0.0
        %335 = vmatpush2.msra.mxu0 %v277
        %336 = vmatprep.subr.mxu0 0.0
        %337 = vmatpush2.msra.mxu0 %v276
        %338 = vmatprep.subr.mxu0 0.0
        %339 = vmatpush2.msra.mxu0 %v275
        %340 = vmatprep.subr.mxu0 0.0
        %341 = vmatpush2.msra.mxu0 %v274
        %342 = vmatprep.subr.mxu0 0.0
        %343 = vmatpush2.msra.mxu0 %v273
        %344 = vmatprep.subr.mxu0 0.0
        %345 = vmatpush2.msra.mxu0 %v272
        %346 = vmatprep.subr.mxu0 0.0
        %347 = vmatpush2.msra.mxu0 %v271
        %348 = vmatprep.subr.mxu0 0.0
        %349 = vmatpush2.msra.mxu0 %v270
        %350 = vmatprep.mubr.f32.mxu0 %v253
        %351 = vmatmul.mubr.f32.gmra.mxu0 %v252
        %v352 = vpop.f32.mrf.mxu0
        %v353 = vadd.f32 0.0, %v352
        %v354 = vpop.f32.mrf.mxu0
        %355 = vdwg.mxu0
        %vm356 = vcmp.ge.f32.partialorder %v353, 0.5
        %v357 = vsel %vm356, 1, 0
        %v358 = vcvt.s32.f32 %v357
        %v359 = vld [vmem:[%s3] sm:$0xff]
        %v360 = vld [vmem:[%s3 + $0x8] sm:$0xff]
        %v361 = vld [vmem:[%s3 + $0x10] sm:$0xff]
        %v362 = vld [vmem:[%s3 + $0x18] sm:$0xff]
        %v363 = vld [vmem:[%s3 + $0x20] sm:$0xff]
        %v364 = vld [vmem:[%s3 + $0x28] sm:$0xff]
        %v365 = vld [vmem:[%s3 + $0x30] sm:$0xff]
        %v366 = vld [vmem:[%s3 + $0x38] sm:$0xff]
        %v367 = vld [vmem:[%s3 + $0x40] sm:$0xff]
        %v368 = vld [vmem:[%s3 + $0x48] sm:$0xff]
        %v369 = vld [vmem:[%s3 + $0x50] sm:$0xff]
        %v370 = vld [vmem:[%s3 + $0x58] sm:$0xff]
        %v371 = vld [vmem:[%s3 + $0x60] sm:$0xff]
        %v372 = vld [vmem:[%s3 + $0x68] sm:$0xff]
        %v373 = vld [vmem:[%s3 + $0x70] sm:$0xff]
        %v374 = vld [vmem:[%s3 + $0x78] sm:$0xff]
        %375 = vmatprep.subr.mxu0 0.0
        %376 = vmatpush1.msra.mxu0 %v374
        %377 = vmatprep.subr.mxu0 0.0
        %378 = vmatpush1.msra.mxu0 %v373
        %379 = vmatprep.subr.mxu0 0.0
        %380 = vmatpush1.msra.mxu0 %v372
        %381 = vmatprep.subr.mxu0 0.0
        %382 = vmatpush1.msra.mxu0 %v371
        %383 = vmatprep.subr.mxu0 0.0
        %384 = vmatpush1.msra.mxu0 %v370
        %385 = vmatprep.subr.mxu0 0.0
        %386 = vmatpush1.msra.mxu0 %v369
        %387 = vmatprep.subr.mxu0 0.0
        %388 = vmatpush1.msra.mxu0 %v368
        %389 = vmatprep.subr.mxu0 0.0
        %390 = vmatpush1.msra.mxu0 %v367
        %391 = vmatprep.subr.mxu0 0.0
        %392 = vmatpush1.msra.mxu0 %v366
        %393 = vmatprep.subr.mxu0 0.0
        %394 = vmatpush1.msra.mxu0 %v365
        %395 = vmatprep.subr.mxu0 0.0
        %396 = vmatpush1.msra.mxu0 %v364
        %397 = vmatprep.subr.mxu0 0.0
        %398 = vmatpush1.msra.mxu0 %v363
        %399 = vmatprep.subr.mxu0 0.0
        %400 = vmatpush1.msra.mxu0 %v362
        %401 = vmatprep.subr.mxu0 0.0
        %402 = vmatpush1.msra.mxu0 %v361
        %403 = vmatprep.subr.mxu0 0.0
        %404 = vmatpush1.msra.mxu0 %v360
        %405 = vmatprep.subr.mxu0 0.0
        %406 = vmatpush1.msra.mxu0 %v359
        %407 = vmatprep.subr.mxu0 0.0
        %408 = vmatpush2.msra.mxu0 0.0
        %409 = vmatprep.subr.mxu0 0.0
        %410 = vmatpush2.msra.mxu0 0.0
        %411 = vmatprep.subr.mxu0 0.0
        %412 = vmatpush2.msra.mxu0 0.0
        %413 = vmatprep.subr.mxu0 0.0
        %414 = vmatpush2.msra.mxu0 0.0
        %415 = vmatprep.subr.mxu0 0.0
        %416 = vmatpush2.msra.mxu0 0.0
        %417 = vmatprep.subr.mxu0 0.0
        %418 = vmatpush2.msra.mxu0 0.0
        %419 = vmatprep.subr.mxu0 0.0
        %420 = vmatpush2.msra.mxu0 0.0
        %421 = vmatprep.subr.mxu0 0.0
        %422 = vmatpush2.msra.mxu0 0.0
        %423 = vmatprep.subr.mxu0 0.0
        %424 = vmatpush2.msra.mxu0 0.0
        %425 = vmatprep.subr.mxu0 0.0
        %426 = vmatpush2.msra.mxu0 0.0
        %427 = vmatprep.subr.mxu0 0.0
        %428 = vmatpush2.msra.mxu0 0.0
        %429 = vmatprep.subr.mxu0 0.0
        %430 = vmatpush2.msra.mxu0 0.0
        %431 = vmatprep.subr.mxu0 0.0
        %432 = vmatpush2.msra.mxu0 0.0
        %433 = vmatprep.subr.mxu0 0.0
        %434 = vmatpush2.msra.mxu0 0.0
        %435 = vmatprep.subr.mxu0 0.0
        %436 = vmatpush2.msra.mxu0 0.0
        %437 = vmatprep.subr.mxu0 0.0
        %438 = vmatpush2.msra.mxu0 0.0
        %439 = vmatprep.mubr.f32.mxu0 0.0
        %440 = vmatmul.mubr.f32.gmra.mxu0 %v358
        %v441 = vpop.f32.mrf.mxu0
        %v442 = vadd.f32 0.0, %v441
        %v443 = vpop.f32.mrf.mxu0
        %444 = vdwg.mxu0
        %v445 = vld [vmem:[%s4] sm:$0x1]
        %v447 = vlaneseq
        %v448 = vshrl.u32 %v447, 7
        %v449 = vsub.s32 0, %v448
        %v450 = vrot.slane %v445, %v449
        %vm452 = vcmp.ge.f32.partialorder %v442, %v450
        %v453 = vsel %vm452, 1, 0
        %v454 = vcvt.s32.f32 %v453
        %v455 = vpack.c.bf16 %v454, %v454
        %456 = vst [vmem:[%s236] sm:$0xf] %v455
        %p457 = scmp.lt.s32.totalorder %s17, 1
        %s458 = scalar_select %p457, %s17, 1
        %s459 = smul.addr %s458, 4
        %s460 = scalar_lea.vmem %s5, %s459
        // Predicated region
        $region45: #{net_forward.3} parent=39 // pred_check
          %p461 = pneg %p145
        $region46: #{net_forward.3} parent=39 // pred_check_branch
          %463 = sbr.rel (%p461) target = $region48
        $region47: #{net_forward.3} parent=39 // pred_region
          _
        $region48: #{net_forward.3} parent=39 // pred_fallthru
          _
      $region40: #{net_forward.3} parent=5 // pred_fallthru
        _
      %p464 = scmp.le.s32.totalorder 2, %s12
      // Predicated region
      $region49: #{net_forward.3} parent=5 // pred_check
        %p465 = pneg %p464
      $region50: #{net_forward.3} parent=5 // pred_check_branch
        %467 = sbr.rel (%p465) target = $region52
      $region51: #{net_forward.3} parent=5 // pred_region
        %s468 = ssub.s32 %s12, 2
        // Predicated region
        $region53: #{net_forward.3} parent=51 // pred_check
          %p469 = pneg %p151
        $region54: #{net_forward.3} parent=51 // pred_check_branch
          %471 = sbr.rel (%p469) target = $region56
        $region55: #{net_forward.3} parent=51 // pred_region
          %p472 = scmp.lt.s32.totalorder %s18, 1
          %s473 = scalar_select %p472, %s18, 1
          %s474 = smul.addr %s473, 4
          %s475 = scalar_lea.vmem %s5, %s474
        $region56: #{net_forward.3} parent=51 // pred_fallthru
          _
      $region52: #{net_forward.3} parent=5 // pred_fallthru
        _
    $region6: #{net_forward.3} parent=1 // loop_footer
      %s16 = sadd.s32 1, %s12
    $region7: #{net_forward.3} parent=1 // loop_footer_branch
      %11 = sbr.rel target = $region3
    $region8: #{net_forward.3} parent=1 // loop_exit
      _
    %476 = vsyncpa [#allocation3], 1
    %s477 = scalar_lea.sflag [#allocation3], 1
    %478 = vsyncpa %s477, 1

// kernel: net_forward.2
$region0: #{net_forward.2}
  #allocation0 [shape = 'u32[]', space=smem, size = 0x4, offset = 0x4, fixed_abs, tag = 'smem constant byte address 0x4 - core index']
  #allocation1 [shape = 'u32[144,128]{1,0:T(1,128)}', space=vmem, size = 0x12000, scoped, tag = 'internal scratch']
  %s0 = inlined_call_operand.vmem [shape: bf16[16,896], index: 0, kind: input, shape index: {}]
  %s1 = inlined_call_operand.vmem [shape: bf16[896,256], index: 1, kind: input, shape index: {}]
  %s2 = inlined_call_operand.vmem [shape: bf16[16,256], index: 2, kind: output, shape index: {0}]
  %s3 = inlined_call_operand.vmem [shape: f32[2,8,256], index: 3, kind: output, shape index: {1}]
  %4 = xla_tuple %s2, %s3
  %s5 = sld [smem:[#allocation0]]
  $region49: #{net_forward.2} parent=0
    _
  %s7 = ssub.s32 1, %s5
  %s8 = scalar_select 0, %s7, %s5
  loop: start=0, step=1, limit=4
  $region2: #{net_forward.2} parent=0 // loop_pre_header
    _
  $region3: #{net_forward.2} parent=0 // loop_header
    %s10 = sphi 0, %s14
    %p11 = scmp.ge.s32.totalorder %s10, 4
    %s20 = sphi 0, %s22
    %s23 = sphi 0, %s20
    %s24 = sphi 0, %s23
    %s40 = sphi 0, %s24
    %s44 = sphi 0, %s44
    %s46 = sphi 0, %s44
    %s47 = sphi 0, %s46
    %s61 = sphi 0, %s47
    %s67 = sphi 0, %s69
    %s70 = sphi 0, %s67
    %s71 = sphi 0, %s70
    %s87 = sphi 0, %s71
    %s93 = sphi 0, %s95
    %s96 = sphi 0, %s93
    %s97 = sphi 0, %s96
    %s113 = sphi 0, %s97
  $region4: #{net_forward.2} parent=0 // loop_header_branch
    %13 = sbr.rel (%p11) target = $region8
  $region5: #{net_forward.2} parent=0 // loop_body
    %s15 = ssub.s32 %s10, 1
    %s16 = ssub.s32 %s10, 2
    %s17 = sadd.s32 %s10, 1
    %s18 = ssub.s32 %s10, %s17
    %p19 = scmp.eq.s32.totalorder %s18, 0
    %s21 = sadd.s32 %s20, 1
    %s22 = scalar_select %p19, %s20, %s21
    %p25 = pneg %p19
    %p26 = scmp.eq.s32.totalorder %s10, 1
    %p27 = por %p25, %p26
    %p28 = scmp.ne.s32.totalorder %s20, %s23
    %p29 = scmp.eq.s32.totalorder %s10, 0
    %p30 = por %p28, %p29
    %p31 = scmp.ne.s32.totalorder %s20, %s23
    %p32 = scmp.eq.s32.totalorder %s15, 1
    %p33 = por %p31, %p32
    %p34 = scmp.ne.s32.totalorder %s23, %s24
    %p35 = scmp.eq.s32.totalorder %s15, 0
    %p36 = por %p34, %p35
    %p37 = scmp.ne.s32.totalorder %s23, %s24
    %p38 = scmp.eq.s32.totalorder %s16, 1
    %p39 = por %p37, %p38
    %p41 = scmp.ne.s32.totalorder %s24, %s40
    %p42 = scmp.eq.s32.totalorder %s16, 0
    %p43 = por %p41, %p42
    %s45 = sadd.s32 %s44, 1
    %p48 = scmp.eq.s32.totalorder %s10, 1
    %p49 = scmp.ne.s32.totalorder %s44, %s46
    %p50 = scmp.eq.s32.totalorder %s10, 0
    %p51 = por %p49, %p50
    %p52 = scmp.ne.s32.totalorder %s44, %s46
    %p53 = scmp.eq.s32.totalorder %s15, 1
    %p54 = por %p52, %p53
    %p55 = scmp.ne.s32.totalorder %s46, %s47
    %p56 = scmp.eq.s32.totalorder %s15, 0
    %p57 = por %p55, %p56
    %p58 = scmp.ne.s32.totalorder %s46, %s47
    %p59 = scmp.eq.s32.totalorder %s16, 1
    %p60 = por %p58, %p59
    %p62 = scmp.ne.s32.totalorder %s47, %s61
    %p63 = scmp.eq.s32.totalorder %s16, 0
    %p64 = por %p62, %p63
    %s65 = ssub.s32 %s10, %s17
    %p66 = scmp.eq.s32.totalorder %s65, 0
    %s68 = sadd.s32 %s67, 1
    %s69 = scalar_select %p66, %s67, %s68
    %p72 = pneg %p66
    %p73 = scmp.eq.s32.totalorder %s10, 1
    %p74 = por %p72, %p73
    %p75 = scmp.ne.s32.totalorder %s67, %s70
    %p76 = scmp.eq.s32.totalorder %s10, 0
    %p77 = por %p75, %p76
    %p78 = scmp.ne.s32.totalorder %s67, %s70
    %p79 = scmp.eq.s32.totalorder %s15, 1
    %p80 = por %p78, %p79
    %p81 = scmp.ne.s32.totalorder %s70, %s71
    %p82 = scmp.eq.s32.totalorder %s15, 0
    %p83 = por %p81, %p82
    %p84 = scmp.ne.s32.totalorder %s70, %s71
    %p85 = scmp.eq.s32.totalorder %s16, 1
    %p86 = por %p84, %p85
    %p88 = scmp.ne.s32.totalorder %s71, %s87
    %p89 = scmp.eq.s32.totalorder %s16, 0
    %p90 = por %p88, %p89
    %s91 = ssub.s32 %s10, %s17
    %p92 = scmp.eq.s32.totalorder %s91, 0
    %s94 = sadd.s32 %s93, 1
    %s95 = scalar_select %p92, %s93, %s94
    %p98 = pneg %p92
    %p99 = scmp.eq.s32.totalorder %s10, 1
    %p100 = por %p98, %p99
    %p101 = scmp.ne.s32.totalorder %s93, %s96
    %p102 = scmp.eq.s32.totalorder %s10, 0
    %p103 = por %p101, %p102
    %p104 = scmp.ne.s32.totalorder %s93, %s96
    %p105 = scmp.eq.s32.totalorder %s15, 1
    %p106 = por %p104, %p105
    %p107 = scmp.ne.s32.totalorder %s96, %s97
    %p108 = scmp.eq.s32.totalorder %s15, 0
    %p109 = por %p107, %p108
    %p110 = scmp.ne.s32.totalorder %s96, %s97
    %p111 = scmp.eq.s32.totalorder %s16, 1
    %p112 = por %p110, %p111
    %p114 = scmp.ne.s32.totalorder %s97, %s113
    %p115 = scmp.eq.s32.totalorder %s16, 0
    %p116 = por %p114, %p115
    %p117 = scmp.le.s32.totalorder 1, %s10
    %p118 = scmp.lt.s32.totalorder %s10, 3
    %p119 = pnand %p117, %p118
    %p120 = pneg %p119
    // Predicated region
    $region9: #{net_forward.2} parent=5 // pred_check
      _
    $region10: #{net_forward.2} parent=5 // pred_check_branch
      %122 = sbr.rel (%p119) target = $region12
    $region11: #{net_forward.2} parent=5 // pred_region
      %s123 = ssub.s32 %s10, 1
      // Predicated region
      $region13: #{net_forward.2} parent=11 // pred_check
        %p124 = pneg %p57
      $region14: #{net_forward.2} parent=11 // pred_check_branch
        %126 = sbr.rel (%p124) target = $region16
      $region15: #{net_forward.2} parent=11 // pred_region
        _
      $region16: #{net_forward.2} parent=11 // pred_fallthru
        _
    $region12: #{net_forward.2} parent=5 // pred_fallthru
      _
    %p127 = scmp.lt.s32.totalorder %s10, 2
    // Predicated region
    $region17: #{net_forward.2} parent=5 // pred_check
      %p128 = pneg %p127
    $region18: #{net_forward.2} parent=5 // pred_check_branch
      %130 = sbr.rel (%p128) target = $region20
    $region19: #{net_forward.2} parent=5 // pred_region
      // Predicated region
      $region21: #{net_forward.2} parent=19 // pred_check
        %p131 = pneg %p30
      $region22: #{net_forward.2} parent=19 // pred_check_branch
        %133 = sbr.rel (%p131) target = $region24
      $region23: #{net_forward.2} parent=19 // pred_region
        %p134 = scmp.lt.s32.totalorder %s10, 1
        %s135 = scalar_select %p134, %s10, 1
        %s136 = smul.addr %s135, 7
        %s137 = smul.addr %s136, 4
        %s138 = scalar_lea.vmem %s0, %s137
      $region24: #{net_forward.2} parent=19 // pred_fallthru
        _
    $region20: #{net_forward.2} parent=5 // pred_fallthru
      _
    %p139 = scmp.le.s32.totalorder 1, %s10
    %p140 = scmp.lt.s32.totalorder %s10, 3
    %p141 = pnand %p139, %p140
    %p142 = pneg %p141
    // Predicated region
    $region25: #{net_forward.2} parent=5 // pred_check
      _
    $region26: #{net_forward.2} parent=5 // pred_check_branch
      %144 = sbr.rel (%p141) target = $region28
    $region27: #{net_forward.2} parent=5 // pred_region
      %s145 = ssub.s32 %s10, 1
      %p146 = scmp.lt.s32.totalorder %s15, 1
      %s147 = scalar_select %p146, %s15, 1
      %s148 = smul.addr %s147, 7
      %s149 = smul.addr %s148, 4
      %s150 = scalar_lea.vmem %s0, %s149
      %p151 = pneg %p36
      %p152 = pneg %p33
      %p153 = pneg %p57
      %p154 = pneg %p54
      %p155 = pneg %p83
      %p156 = pneg %p80
      %p157 = scmp.lt.s32.totalorder %s15, 1
      %s158 = scalar_select %p157, %s15, 1
      %s159 = smul.addr %s158, 2
      %s160 = smul.addr %s159, 4
      %s161 = scalar_lea.vmem %s2, %s160
      %p162 = pneg %p109
      %p163 = pneg %p106
      %p164 = scmp.lt.s32.totalorder %s15, 1
      %s165 = scalar_select %p164, %s15, 1
      %s166 = smul.addr %s165, 2
      %s167 = smul.addr %s166, 8
      %s168 = scalar_lea.vmem %s3, %s167
      %p169 = scmp.lt.s32.totalorder %s15, 1
      %s170 = scalar_select %p169, %s15, 1
      %s171 = smul.addr %s170, 7
      %s172 = smul.addr %s171, 4
      %s173 = scalar_lea.vmem %s0, %s172
      %p174 = scmp.lt.s32.totalorder %s15, 1
      %s175 = scalar_select %p174, %s15, 1
      %s176 = smul.addr %s175, 2
      %s177 = smul.addr %s176, 4
      %s178 = scalar_lea.vmem %s2, %s177
      %p179 = scmp.lt.s32.totalorder %s15, 1
      %s180 = scalar_select %p179, %s15, 1
      %s181 = smul.addr %s180, 2
      %s182 = smul.addr %s181, 8
      %s183 = scalar_lea.vmem %s3, %s182
      %v185 = vld [vmem:[%s173] sm:$0xff]
      %v186 = vld [vmem:[%s173 + $0x8] sm:$0xff]
      %v187 = vld [vmem:[%s173 + $0x10] sm:$0xff]
      %v188 = vld [vmem:[%s173 + $0x18] sm:$0xf]
      %v189 = vld [vmem:[%s1] sm:$0xff]
      %v190 = vld [vmem:[%s1 + $0x8] sm:$0xff]
      %v191 = vld [vmem:[%s1 + $0x10] sm:$0xff]
      %v192 = vld [vmem:[%s1 + $0x18] sm:$0xff]
      %v193 = vld [vmem:[%s1 + $0x20] sm:$0xff]
      %v194 = vld [vmem:[%s1 + $0x28] sm:$0xff]
      %v195 = vld [vmem:[%s1 + $0x30] sm:$0xff]
      %v196 = vld [vmem:[%s1 + $0x38] sm:$0xff]
      %v197 = vld [vmem:[%s1 + $0x40] sm:$0xff]
      %v198 = vld [vmem:[%s1 + $0x48] sm:$0xff]
      %v199 = vld [vmem:[%s1 + $0x50] sm:$0xff]
      %v200 = vld [vmem:[%s1 + $0x58] sm:$0xff]
      %v201 = vld [vmem:[%s1 + $0x60] sm:$0xff]
      %v202 = vld [vmem:[%s1 + $0x68] sm:$0xff]
      %v203 = vld [vmem:[%s1 + $0x70] sm:$0xff]
      %v204 = vld [vmem:[%s1 + $0x78] sm:$0xff]
      %v205 = vld [vmem:[%s1 + $0x80] sm:$0xff]
      %v206 = vld [vmem:[%s1 + $0x88] sm:$0xff]
      %v207 = vld [vmem:[%s1 + $0x90] sm:$0xff]
      %v208 = vld [vmem:[%s1 + $0x98] sm:$0xff]
      %v209 = vld [vmem:[%s1 + $0xa0] sm:$0xff]
      %v210 = vld [vmem:[%s1 + $0xa8] sm:$0xff]
      %v211 = vld [vmem:[%s1 + $0xb0] sm:$0xff]
      %v212 = vld [vmem:[%s1 + $0xb8] sm:$0xff]
      %v213 = vld [vmem:[%s1 + $0xc0] sm:$0xff]
      %v214 = vld [vmem:[%s1 + $0xc8] sm:$0xff]
      %v215 = vld [vmem:[%s1 + $0xd0] sm:$0xff]
      %v216 = vld [vmem:[%s1 + $0xd8] sm:$0xff]
      %v217 = vld [vmem:[%s1 + $0xe0] sm:$0xff]
      %v218 = vld [vmem:[%s1 + $0xe8] sm:$0xff]
      %v219 = vld [vmem:[%s1 + $0xf0] sm:$0xff]
      %v220 = vld [vmem:[%s1 + $0xf8] sm:$0xff]
      %v221 = vld [vmem:[%s1 + $0x100] sm:$0xff]
      %v222 = vld [vmem:[%s1 + $0x108] sm:$0xff]
      %v223 = vld [vmem:[%s1 + $0x110] sm:$0xff]
      %v224 = vld [vmem:[%s1 + $0x118] sm:$0xff]
      %v225 = vld [vmem:[%s1 + $0x120] sm:$0xff]
      %v226 = vld [vmem:[%s1 + $0x128] sm:$0xff]
      %v227 = vld [vmem:[%s1 + $0x130] sm:$0xff]
      %v228 = vld [vmem:[%s1 + $0x138] sm:$0xff]
      %v229 = vld [vmem:[%s1 + $0x140] sm:$0xff]
      %v230 = vld [vmem:[%s1 + $0x148] sm:$0xff]
      %v231 = vld [vmem:[%s1 + $0x150] sm:$0xff]
      %v232 = vld [vmem:[%s1 + $0x158] sm:$0xff]
      %v233 = vld [vmem:[%s1 + $0x160] sm:$0xff]
      %v234 = vld [vmem:[%s1 + $0x168] sm:$0xff]
      %v235 = vld [vmem:[%s1 + $0x170] sm:$0xff]
      %v236 = vld [vmem:[%s1 + $0x178] sm:$0xff]
      %v237 = vld [vmem:[%s1 + $0x180] sm:$0xff]
      %v238 = vld [vmem:[%s1 + $0x188] sm:$0xff]
      %v239 = vld [vmem:[%s1 + $0x190] sm:$0xff]
      %v240 = vld [vmem:[%s1 + $0x198] sm:$0xff]
      %v241 = vld [vmem:[%s1 + $0x1a0] sm:$0xff]
      %v242 = vld [vmem:[%s1 + $0x1a8] sm:$0xff]
      %v243 = vld [vmem:[%s1 + $0x1b0] sm:$0xff]
      %v244 = vld [vmem:[%s1 + $0x1b8] sm:$0xff]
      %v245 = vld [vmem:[%s1 + $0x1c0] sm:$0xff]
      %v246 = vld [vmem:[%s1 + $0x1c8] sm:$0xff]
      %v247 = vld [vmem:[%s1 + $0x1d0] sm:$0xff]
      %v248 = vld [vmem:[%s1 + $0x1d8] sm:$0xff]
      %v249 = vld [vmem:[%s1 + $0x1e0] sm:$0xff]
      %v250 = vld [vmem:[%s1 + $0x1e8] sm:$0xff]
      %v251 = vld [vmem:[%s1 + $0x1f0] sm:$0xff]
      %v252 = vld [vmem:[%s1 + $0x1f8] sm:$0xff]
      %v253 = vld [vmem:[%s1 + $0x200] sm:$0xff]
      %v254 = vld [vmem:[%s1 + $0x208] sm:$0xff]
      %v255 = vld [vmem:[%s1 + $0x210] sm:$0xff]
      %v256 = vld [vmem:[%s1 + $0x218] sm:$0xff]
      %v257 = vld [vmem:[%s1 + $0x220] sm:$0xff]
      %v258 = vld [vmem:[%s1 + $0x228] sm:$0xff]
      %v259 = vld [vmem:[%s1 + $0x230] sm:$0xff]
      %v260 = vld [vmem:[%s1 + $0x238] sm:$0xff]
      %v261 = vld [vmem:[%s1 + $0x240] sm:$0xff]
      %v262 = vld [vmem:[%s1 + $0x248] sm:$0xff]
      %v263 = vld [vmem:[%s1 + $0x250] sm:$0xff]
      %v264 = vld [vmem:[%s1 + $0x258] sm:$0xff]
      %v265 = vld [vmem:[%s1 + $0x260] sm:$0xff]
      %v266 = vld [vmem:[%s1 + $0x268] sm:$0xff]
      %v267 = vld [vmem:[%s1 + $0x270] sm:$0xff]
      %v268 = vld [vmem:[%s1 + $0x278] sm:$0xff]
      %v269 = vld [vmem:[%s1 + $0x280] sm:$0xff]
      %v270 = vld [vmem:[%s1 + $0x288] sm:$0xff]
      %v271 = vld [vmem:[%s1 + $0x290] sm:$0xff]
      %v272 = vld [vmem:[%s1 + $0x298] sm:$0xff]
      %v273 = vld [vmem:[%s1 + $0x2a0] sm:$0xff]
      %v274 = vld [vmem:[%s1 + $0x2a8] sm:$0xff]
      %v275 = vld [vmem:[%s1 + $0x2b0] sm:$0xff]
      %v276 = vld [vmem:[%s1 + $0x2b8] sm:$0xff]
      %v277 = vld [vmem:[%s1 + $0x2c0] sm:$0xff]
      %v278 = vld [vmem:[%s1 + $0x2c8] sm:$0xff]
      %v279 = vld [vmem:[%s1 + $0x2d0] sm:$0xff]
      %v280 = vld [vmem:[%s1 + $0x2d8] sm:$0xff]
      %v281 = vld [vmem:[%s1 + $0x2e0] sm:$0xff]
      %v282 = vld [vmem:[%s1 + $0x2e8] sm:$0xff]
      %v283 = vld [vmem:[%s1 + $0x2f0] sm:$0xff]
      %v284 = vld [vmem:[%s1 + $0x2f8] sm:$0xff]
      %v285 = vld [vmem:[%s1 + $0x300] sm:$0xff]
      %v286 = vld [vmem:[%s1 + $0x308] sm:$0xff]
      %v287 = vld [vmem:[%s1 + $0x310] sm:$0xff]
      %v288 = vld [vmem:[%s1 + $0x318] sm:$0xff]
      %v289 = vld [vmem:[%s1 + $0x320] sm:$0xff]
      %v290 = vld [vmem:[%s1 + $0x328] sm:$0xff]
      %v291 = vld [vmem:[%s1 + $0x330] sm:$0xff]
      %v292 = vld [vmem:[%s1 + $0x338] sm:$0xff]
      %v293 = vld [vmem:[%s1 + $0x340] sm:$0xff]
      %v294 = vld [vmem:[%s1 + $0x348] sm:$0xff]
      %v295 = vld [vmem:[%s1 + $0x350] sm:$0xff]
      %v296 = vld [vmem:[%s1 + $0x358] sm:$0xff]
      %v297 = vld [vmem:[%s1 + $0x360] sm:$0xff]
      %v298 = vld [vmem:[%s1 + $0x368] sm:$0xff]
      %v299 = vld [vmem:[%s1 + $0x370] sm:$0xff]
      %v300 = vld [vmem:[%s1 + $0x378] sm:$0xff]
      %v305 = vunpack.c.l.b16 %v185
      %v306 = vunpack.c.h.b16 %v185
      %v307 = vunpack.c.l.b16 %v186
      %v308 = vunpack.c.h.b16 %v186
      %v309 = vunpack.c.l.b16 %v187
      %v310 = vunpack.c.h.b16 %v187
      %v311 = vunpack.c.l.b16 %v188
      %v312 = vpack.c.b16 %v305, %v305
      %v313 = vpack.c.b16 %v306, %v306
      %v314 = vpack.c.b16 %v307, %v307
      %v315 = vpack.c.b16 %v308, %v308
      %v316 = vpack.c.b16 %v309, %v309
      %v317 = vpack.c.b16 %v310, %v310
      %v318 = vpack.c.b16 %v311, %v311
      %v438 = vunpack.c.l.b16 %v189
      %v439 = vunpack.c.h.b16 %v189
      %v440 = vunpack.c.l.b16 %v190
      %v441 = vunpack.c.h.b16 %v190
      %v442 = vunpack.c.l.b16 %v191
      %v443 = vunpack.c.h.b16 %v191
      %v444 = vunpack.c.l.b16 %v192
      %v445 = vunpack.c.h.b16 %v192
      %v446 = vunpack.c.l.b16 %v193
      %v447 = vunpack.c.h.b16 %v193
      %v448 = vunpack.c.l.b16 %v194
      %v449 = vunpack.c.h.b16 %v194
      %v450 = vunpack.c.l.b16 %v195
      %v451 = vunpack.c.h.b16 %v195
      %v452 = vunpack.c.l.b16 %v196
      %v453 = vunpack.c.h.b16 %v196
      %v454 = vunpack.c.l.b16 %v197
      %v455 = vunpack.c.h.b16 %v197
      %v456 = vunpack.c.l.b16 %v198
      %v457 = vunpack.c.h.b16 %v198
      %v458 = vunpack.c.l.b16 %v199
      %v459 = vunpack.c.h.b16 %v199
      %v460 = vunpack.c.l.b16 %v200
      %v461 = vunpack.c.h.b16 %v200
      %v462 = vunpack.c.l.b16 %v201
      %v463 = vunpack.c.h.b16 %v201
      %v464 = vunpack.c.l.b16 %v202
      %v465 = vunpack.c.h.b16 %v202
      %v466 = vunpack.c.l.b16 %v203
      %v467 = vunpack.c.h.b16 %v203
      %v468 = vunpack.c.l.b16 %v204
      %v469 = vunpack.c.h.b16 %v204
      %v470 = vunpack.c.l.b16 %v205
      %v471 = vunpack.c.h.b16 %v205
      %v472 = vunpack.c.l.b16 %v206
      %v473 = vunpack.c.h.b16 %v206
      %v474 = vunpack.c.l.b16 %v207
      %v475 = vunpack.c.h.b16 %v207
      %v476 = vunpack.c.l.b16 %v208
      %v477 = vunpack.c.h.b16 %v208
      %v478 = vunpack.c.l.b16 %v209
      %v479 = vunpack.c.h.b16 %v209
      %v480 = vunpack.c.l.b16 %v210
      %v481 = vunpack.c.h.b16 %v210
      %v482 = vunpack.c.l.b16 %v211
      %v483 = vunpack.c.h.b16 %v211
      %v484 = vunpack.c.l.b16 %v212
      %v485 = vunpack.c.h.b16 %v212
      %v486 = vunpack.c.l.b16 %v213
      %v487 = vunpack.c.h.b16 %v213
      %v488 = vunpack.c.l.b16 %v214
      %v489 = vunpack.c.h.b16 %v214
      %v490 = vunpack.c.l.b16 %v215
      %v491 = vunpack.c.h.b16 %v215
      %v492 = vunpack.c.l.b16 %v216
      %v493 = vunpack.c.h.b16 %v216
      %v494 = vunpack.c.l.b16 %v217
      %v495 = vunpack.c.h.b16 %v217
      %v496 = vunpack.c.l.b16 %v218
      %v497 = vunpack.c.h.b16 %v218
      %v498 = vunpack.c.l.b16 %v219
      %v499 = vunpack.c.h.b16 %v219
      %v500 = vunpack.c.l.b16 %v220
      %v501 = vunpack.c.h.b16 %v220
      %v502 = vunpack.c.l.b16 %v221
      %v503 = vunpack.c.h.b16 %v221
      %v504 = vunpack.c.l.b16 %v222
      %v505 = vunpack.c.h.b16 %v222
      %v506 = vunpack.c.l.b16 %v223
      %v507 = vunpack.c.h.b16 %v223
      %v508 = vunpack.c.l.b16 %v224
      %v509 = vunpack.c.h.b16 %v224
      %v510 = vunpack.c.l.b16 %v225
      %v511 = vunpack.c.h.b16 %v225
      %v512 = vunpack.c.l.b16 %v226
      %v513 = vunpack.c.h.b16 %v226
      %v514 = vunpack.c.l.b16 %v227
      %v515 = vunpack.c.h.b16 %v227
      %v516 = vunpack.c.l.b16 %v228
      %v517 = vunpack.c.h.b16 %v228
      %v518 = vunpack.c.l.b16 %v229
      %v519 = vunpack.c.h.b16 %v229
      %v520 = vunpack.c.l.b16 %v230
      %v521 = vunpack.c.h.b16 %v230
      %v522 = vunpack.c.l.b16 %v231
      %v523 = vunpack.c.h.b16 %v231
      %v524 = vunpack.c.l.b16 %v232
      %v525 = vunpack.c.h.b16 %v232
      %v526 = vunpack.c.l.b16 %v233
      %v527 = vunpack.c.h.b16 %v233
      %v528 = vunpack.c.l.b16 %v234
      %v529 = vunpack.c.h.b16 %v234
      %v530 = vunpack.c.l.b16 %v235
      %v531 = vunpack.c.h.b16 %v235
      %v532 = vunpack.c.l.b16 %v236
      %v533 = vunpack.c.h.b16 %v236
      %v534 = vunpack.c.l.b16 %v237
      %v535 = vunpack.c.h.b16 %v237
      %v536 = vunpack.c.l.b16 %v238
      %v537 = vunpack.c.h.b16 %v238
      %v538 = vunpack.c.l.b16 %v239
      %v539 = vunpack.c.h.b16 %v239
      %v540 = vunpack.c.l.b16 %v240
      %v541 = vunpack.c.h.b16 %v240
      %v542 = vunpack.c.l.b16 %v241
      %v543 = vunpack.c.h.b16 %v241
      %v544 = vunpack.c.l.b16 %v242
      %v545 = vunpack.c.h.b16 %v242
      %v546 = vunpack.c.l.b16 %v243
      %v547 = vunpack.c.h.b16 %v243
      %v548 = vunpack.c.l.b16 %v244
      %v549 = vunpack.c.h.b16 %v244
      %v550 = vunpack.c.l.b16 %v245
      %v551 = vunpack.c.h.b16 %v245
      %v552 = vunpack.c.l.b16 %v246
      %v553 = vunpack.c.h.b16 %v246
      %v554 = vunpack.c.l.b16 %v247
      %v555 = vunpack.c.h.b16 %v247
      %v556 = vunpack.c.l.b16 %v248
      %v557 = vunpack.c.h.b16 %v248
      %v558 = vunpack.c.l.b16 %v249
      %v559 = vunpack.c.h.b16 %v249
      %v560 = vunpack.c.l.b16 %v250
      %v561 = vunpack.c.h.b16 %v250
      %v562 = vunpack.c.l.b16 %v251
      %v563 = vunpack.c.h.b16 %v251
      %v564 = vunpack.c.l.b16 %v252
      %v565 = vunpack.c.h.b16 %v252
      %v566 = vunpack.c.l.b16 %v253
      %v567 = vunpack.c.h.b16 %v253
      %v568 = vunpack.c.l.b16 %v254
      %v569 = vunpack.c.h.b16 %v254
      %v570 = vunpack.c.l.b16 %v255
      %v571 = vunpack.c.h.b16 %v255
      %v572 = vunpack.c.l.b16 %v256
      %v573 = vunpack.c.h.b16 %v256
      %v574 = vunpack.c.l.b16 %v257
      %v575 = vunpack.c.h.b16 %v257
      %v576 = vunpack.c.l.b16 %v258
      %v577 = vunpack.c.h.b16 %v258
      %v578 = vunpack.c.l.b16 %v259
      %v579 = vunpack.c.h.b16 %v259
      %v580 = vunpack.c.l.b16 %v260
      %v581 = vunpack.c.h.b16 %v260
      %v582 = vunpack.c.l.b16 %v261
      %v583 = vunpack.c.h.b16 %v261
      %v584 = vunpack.c.l.b16 %v262
      %v585 = vunpack.c.h.b16 %v262
      %v586 = vunpack.c.l.b16 %v263
      %v587 = vunpack.c.h.b16 %v263
      %v588 = vunpack.c.l.b16 %v264
      %v589 = vunpack.c.h.b16 %v264
      %v590 = vunpack.c.l.b16 %v265
      %v591 = vunpack.c.h.b16 %v265
      %v592 = vunpack.c.l.b16 %v266
      %v593 = vunpack.c.h.b16 %v266
      %v594 = vunpack.c.l.b16 %v267
      %v595 = vunpack.c.h.b16 %v267
      %v596 = vunpack.c.l.b16 %v268
      %v597 = vunpack.c.h.b16 %v268
      %v598 = vunpack.c.l.b16 %v269
      %v599 = vunpack.c.h.b16 %v269
      %v600 = vunpack.c.l.b16 %v270
      %v601 = vunpack.c.h.b16 %v270
      %v602 = vunpack.c.l.b16 %v271
      %v603 = vunpack.c.h.b16 %v271
      %v604 = vunpack.c.l.b16 %v272
      %v605 = vunpack.c.h.b16 %v272
      %v606 = vunpack.c.l.b16 %v273
      %v607 = vunpack.c.h.b16 %v273
      %v608 = vunpack.c.l.b16 %v274
      %v609 = vunpack.c.h.b16 %v274
      %v610 = vunpack.c.l.b16 %v275
      %v611 = vunpack.c.h.b16 %v275
      %v612 = vunpack.c.l.b16 %v276
      %v613 = vunpack.c.h.b16 %v276
      %v614 = vunpack.c.l.b16 %v277
      %v615 = vunpack.c.h.b16 %v277
      %v616 = vunpack.c.l.b16 %v278
      %v617 = vunpack.c.h.b16 %v278
      %v618 = vunpack.c.l.b16 %v279
      %v619 = vunpack.c.h.b16 %v279
      %v620 = vunpack.c.l.b16 %v280
      %v621 = vunpack.c.h.b16 %v280
      %v622 = vunpack.c.l.b16 %v281
      %v623 = vunpack.c.h.b16 %v281
      %v624 = vunpack.c.l.b16 %v282
      %v625 = vunpack.c.h.b16 %v282
      %v626 = vunpack.c.l.b16 %v283
      %v627 = vunpack.c.h.b16 %v283
      %v628 = vunpack.c.l.b16 %v284
      %v629 = vunpack.c.h.b16 %v284
      %v630 = vunpack.c.l.b16 %v285
      %v631 = vunpack.c.h.b16 %v285
      %v632 = vunpack.c.l.b16 %v286
      %v633 = vunpack.c.h.b16 %v286
      %v634 = vunpack.c.l.b16 %v287
      %v635 = vunpack.c.h.b16 %v287
      %v636 = vunpack.c.l.b16 %v288
      %v637 = vunpack.c.h.b16 %v288
      %v638 = vunpack.c.l.b16 %v289
      %v639 = vunpack.c.h.b16 %v289
      %v640 = vunpack.c.l.b16 %v290
      %v641 = vunpack.c.h.b16 %v290
      %v642 = vunpack.c.l.b16 %v291
      %v643 = vunpack.c.h.b16 %v291
      %v644 = vunpack.c.l.b16 %v292
      %v645 = vunpack.c.h.b16 %v292
      %v646 = vunpack.c.l.b16 %v293
      %v647 = vunpack.c.h.b16 %v293
      %v648 = vunpack.c.l.b16 %v294
      %v649 = vunpack.c.h.b16 %v294
      %v650 = vunpack.c.l.b16 %v295
      %v651 = vunpack.c.h.b16 %v295
      %v652 = vunpack.c.l.b16 %v296
      %v653 = vunpack.c.h.b16 %v296
      %v654 = vunpack.c.l.b16 %v297
      %v655 = vunpack.c.h.b16 %v297
      %v656 = vunpack.c.l.b16 %v298
      %v657 = vunpack.c.h.b16 %v298
      %v658 = vunpack.c.l.b16 %v299
      %v659 = vunpack.c.h.b16 %v299
      %v660 = vunpack.c.l.b16 %v300
      %v661 = vunpack.c.h.b16 %v300
      %v662 = vpack.c.b16 %v440, %v438
      %v663 = vpack.c.b16 %v441, %v439
      %v664 = vpack.c.b16 %v444, %v442
      %v665 = vpack.c.b16 %v445, %v443
      %v666 = vpack.c.b16 %v448, %v446
      %v667 = vpack.c.b16 %v449, %v447
      %v668 = vpack.c.b16 %v452, %v450
      %v669 = vpack.c.b16 %v453, %v451
      %v670 = vpack.c.b16 %v456, %v454
      %v671 = vpack.c.b16 %v457, %v455
      %v672 = vpack.c.b16 %v460, %v458
      %v673 = vpack.c.b16 %v461, %v459
      %v674 = vpack.c.b16 %v464, %v462
      %v675 = vpack.c.b16 %v465, %v463
      %v676 = vpack.c.b16 %v468, %v466
      %v677 = vpack.c.b16 %v469, %v467
      %v678 = vpack.c.b16 %v472, %v470
      %v679 = vpack.c.b16 %v473, %v471
      %v680 = vpack.c.b16 %v476, %v474
      %v681 = vpack.c.b16 %v477, %v475
      %v682 = vpack.c.b16 %v480, %v478
      %v683 = vpack.c.b16 %v481, %v479
      %v684 = vpack.c.b16 %v484, %v482
      %v685 = vpack.c.b16 %v485, %v483
      %v686 = vpack.c.b16 %v488, %v486
      %v687 = vpack.c.b16 %v489, %v487
      %v688 = vpack.c.b16 %v492, %v490
      %v689 = vpack.c.b16 %v493, %v491
      %v690 = vpack.c.b16 %v496, %v494
      %v691 = vpack.c.b16 %v497, %v495
      %v692 = vpack.c.b16 %v500, %v498
      %v693 = vpack.c.b16 %v501, %v499
      %v694 = vpack.c.b16 %v504, %v502
      %v695 = vpack.c.b16 %v505, %v503
      %v696 = vpack.c.b16 %v508, %v506
      %v697 = vpack.c.b16 %v509, %v507
      %v698 = vpack.c.b16 %v512, %v510
      %v699 = vpack.c.b16 %v513, %v511
      %v700 = vpack.c.b16 %v516, %v514
      %v701 = vpack.c.b16 %v517, %v515
      %v702 = vpack.c.b16 %v520, %v518
      %v703 = vpack.c.b16 %v521, %v519
      %v704 = vpack.c.b16 %v524, %v522
      %v705 = vpack.c.b16 %v525, %v523
      %v706 = vpack.c.b16 %v528, %v526
      %v707 = vpack.c.b16 %v529, %v527
      %v708 = vpack.c.b16 %v532, %v530
      %v709 = vpack.c.b16 %v533, %v531
      %v710 = vpack.c.b16 %v536, %v534
      %v711 = vpack.c.b16 %v537, %v535
      %v712 = vpack.c.b16 %v540, %v538
      %v713 = vpack.c.b16 %v541, %v539
      %v714 = vpack.c.b16 %v544, %v542
      %v715 = vpack.c.b16 %v545, %v543
      %v716 = vpack.c.b16 %v548, %v546
      %v717 = vpack.c.b16 %v549, %v547
      %v718 = vpack.c.b16 %v552, %v550
      %v719 = vpack.c.b16 %v553, %v551
      %v720 = vpack.c.b16 %v556, %v554
      %v721 = vpack.c.b16 %v557, %v555
      %v722 = vpack.c.b16 %v560, %v558
      %v723 = vpack.c.b16 %v561, %v559
      %v724 = vpack.c.b16 %v564, %v562
      %v725 = vpack.c.b16 %v565, %v563
      %v726 = vpack.c.b16 %v568, %v566
      %v727 = vpack.c.b16 %v569, %v567
      %v728 = vpack.c.b16 %v572, %v570
      %v729 = vpack.c.b16 %v573, %v571
      %v730 = vpack.c.b16 %v576, %v574
      %v731 = vpack.c.b16 %v577, %v575
      %v732 = vpack.c.b16 %v580, %v578
      %v733 = vpack.c.b16 %v581, %v579
      %v734 = vpack.c.b16 %v584, %v582
      %v735 = vpack.c.b16 %v585, %v583
      %v736 = vpack.c.b16 %v588, %v586
      %v737 = vpack.c.b16 %v589, %v587
      %v738 = vpack.c.b16 %v592, %v590
      %v739 = vpack.c.b16 %v593, %v591
      %v740 = vpack.c.b16 %v596, %v594
      %v741 = vpack.c.b16 %v597, %v595
      %v742 = vpack.c.b16 %v600, %v598
      %v743 = vpack.c.b16 %v601, %v599
      %v744 = vpack.c.b16 %v604, %v602
      %v745 = vpack.c.b16 %v605, %v603
      %v746 = vpack.c.b16 %v608, %v606
      %v747 = vpack.c.b16 %v609, %v607
      %v748 = vpack.c.b16 %v612, %v610
      %v749 = vpack.c.b16 %v613, %v611
      %v750 = vpack.c.b16 %v616, %v614
      %v751 = vpack.c.b16 %v617, %v615
      %v752 = vpack.c.b16 %v620, %v618
      %v753 = vpack.c.b16 %v621, %v619
      %v754 = vpack.c.b16 %v624, %v622
      %v755 = vpack.c.b16 %v625, %v623
      %v756 = vpack.c.b16 %v628, %v626
      %v757 = vpack.c.b16 %v629, %v627
      %v758 = vpack.c.b16 %v632, %v630
      %v759 = vpack.c.b16 %v633, %v631
      %v760 = vpack.c.b16 %v636, %v634
      %v761 = vpack.c.b16 %v637, %v635
      %v762 = vpack.c.b16 %v640, %v638
      %v763 = vpack.c.b16 %v641, %v639
      %v764 = vpack.c.b16 %v644, %v642
      %v765 = vpack.c.b16 %v645, %v643
      %v766 = vpack.c.b16 %v648, %v646
      %v767 = vpack.c.b16 %v649, %v647
      %v768 = vpack.c.b16 %v652, %v650
      %v769 = vpack.c.b16 %v653, %v651
      %v770 = vpack.c.b16 %v656, %v654
      %v771 = vpack.c.b16 %v657, %v655
      %v772 = vpack.c.b16 %v660, %v658
      %v773 = vpack.c.b16 %v661, %v659
      %886 = vmatprep.subr.bf16.mxu0 %v677
      %887 = vmatpush1.bf16.msra.mxu0 %v676
      %888 = vmatprep.subr.bf16.mxu0 %v675
      %889 = vmatpush1.bf16.msra.mxu0 %v674
      %890 = vmatprep.subr.bf16.mxu0 %v673
      %891 = vmatpush1.bf16.msra.mxu0 %v672
      %892 = vmatprep.subr.bf16.mxu0 %v671
      %893 = vmatpush1.bf16.msra.mxu0 %v670
      %894 = vmatprep.subr.bf16.mxu0 %v669
      %895 = vmatpush1.bf16.msra.mxu0 %v668
      %896 = vmatprep.subr.bf16.mxu0 %v667
      %897 = vmatpush1.bf16.msra.mxu0 %v666
      %898 = vmatprep.subr.bf16.mxu0 %v665
      %899 = vmatpush1.bf16.msra.mxu0 %v664
      %900 = vmatprep.subr.bf16.mxu0 %v663
      %901 = vmatpush1.bf16.msra.mxu0 %v662
      %902 = vmatprep.subr.bf16.mxu0 %v693
      %903 = vmatpush2.bf16.msra.mxu0 %v692
      %904 = vmatprep.subr.bf16.mxu0 %v691
      %905 = vmatpush2.bf16.msra.mxu0 %v690
      %906 = vmatprep.subr.bf16.mxu0 %v689
      %907 = vmatpush2.bf16.msra.mxu0 %v688
      %908 = vmatprep.subr.bf16.mxu0 %v687
      %909 = vmatpush2.bf16.msra.mxu0 %v686
      %910 = vmatprep.subr.bf16.mxu0 %v685
      %911 = vmatpush2.bf16.msra.mxu0 %v684
      %912 = vmatprep.subr.bf16.mxu0 %v683
      %913 = vmatpush2.bf16.msra.mxu0 %v682
      %914 = vmatprep.subr.bf16.mxu0 %v681
      %915 = vmatpush2.bf16.msra.mxu0 %v680
      %916 = vmatprep.subr.bf16.mxu0 %v679
      %917 = vmatpush2.bf16.msra.mxu0 %v678
      %918 = vmatprep.mubr.bf16.mxu0 %v313
      %919 = vmatmul.mubr.bf16.gmra.mxu0 %v312
      %v920 = vpop.f32.mrf.mxu0
      %v921 = vadd.f32 0.0, %v920
      %v922 = vpop.f32.mrf.mxu0
      %v923 = vadd.f32 0.0, %v922
      %v924 = vpop.f32.mrf.mxu0
      %v925 = vpop.f32.mrf.mxu0
      %926 = vdwg.mxu0
      %927 = vmatprep.subr.bf16.mxu0 %v709
      %928 = vmatpush1.bf16.msra.mxu0 %v708
      %929 = vmatprep.subr.bf16.mxu0 %v707
      %930 = vmatpush1.bf16.msra.mxu0 %v706
      %931 = vmatprep.subr.bf16.mxu0 %v705
      %932 = vmatpush1.bf16.msra.mxu0 %v704
      %933 = vmatprep.subr.bf16.mxu0 %v703
      %934 = vmatpush1.bf16.msra.mxu0 %v702
      %935 = vmatprep.subr.bf16.mxu0 %v701
      %936 = vmatpush1.bf16.msra.mxu0 %v700
      %937 = vmatprep.subr.bf16.mxu0 %v699
      %938 = vmatpush1.bf16.msra.mxu0 %v698
      %939 = vmatprep.subr.bf16.mxu0 %v697
      %940 = vmatpush1.bf16.msra.mxu0 %v696
      %941 = vmatprep.subr.bf16.mxu0 %v695
      %942 = vmatpush1.bf16.msra.mxu0 %v694
      %943 = vmatprep.subr.bf16.mxu0 %v725
      %944 = vmatpush2.bf16.msra.mxu0 %v724
      %945 = vmatprep.subr.bf16.mxu0 %v723
      %946 = vmatpush2.bf16.msra.mxu0 %v722
      %947 = vmatprep.subr.bf16.mxu0 %v721
      %948 = vmatpush2.bf16.msra.mxu0 %v720
      %949 = vmatprep.subr.bf16.mxu0 %v719
      %950 = vmatpush2.bf16.msra.mxu0 %v718
      %951 = vmatprep.subr.bf16.mxu0 %v717
      %952 = vmatpush2.bf16.msra.mxu0 %v716
      %953 = vmatprep.subr.bf16.mxu0 %v715
      %954 = vmatpush2.bf16.msra.mxu0 %v714
      %955 = vmatprep.subr.bf16.mxu0 %v713
      %956 = vmatpush2.bf16.msra.mxu0 %v712
      %957 = vmatprep.subr.bf16.mxu0 %v711
      %958 = vmatpush2.bf16.msra.mxu0 %v710
      %959 = vmatprep.mubr.bf16.mxu0 %v315
      %960 = vmatmul.mubr.bf16.gmra.mxu0 %v314
      %v961 = vpop.f32.mrf.mxu0
      %v962 = vadd.f32 %v921, %v961
      %v963 = vpop.f32.mrf.mxu0
      %v964 = vadd.f32 %v923, %v963
      %v965 = vpop.f32.mrf.mxu0
      %v966 = vpop.f32.mrf.mxu0
      %967 = vdwg.mxu0
      %968 = vmatprep.subr.bf16.mxu0 %v741
      %969 = vmatpush1.bf16.msra.mxu0 %v740
      %970 = vmatprep.subr.bf16.mxu0 %v739
      %971 = vmatpush1.bf16.msra.mxu0 %v738
      %972 = vmatprep.subr.bf16.mxu0 %v737
      %973 = vmatpush1.bf16.msra.mxu0 %v736
      %974 = vmatprep.subr.bf16.mxu0 %v735
      %975 = vmatpush1.bf16.msra.mxu0 %v734
      %976 = vmatprep.subr.bf16.mxu0 %v733
      %977 = vmatpush1.bf16.msra.mxu0 %v732
      %978 = vmatprep.subr.bf16.mxu0 %v731
      %979 = vmatpush1.bf16.msra.mxu0 %v730
      %980 = vmatprep.subr.bf16.mxu0 %v729
      %981 = vmatpush1.bf16.msra.mxu0 %v728
      %982 = vmatprep.subr.bf16.mxu0 %v727
      %983 = vmatpush1.bf16.msra.mxu0 %v726
      %984 = vmatprep.subr.bf16.mxu0 %v757
      %985 = vmatpush2.bf16.msra.mxu0 %v756
      %986 = vmatprep.subr.bf16.mxu0 %v755
      %987 = vmatpush2.bf16.msra.mxu0 %v754
      %988 = vmatprep.subr.bf16.mxu0 %v753
      %989 = vmatpush2.bf16.msra.mxu0 %v752
      %990 = vmatprep.subr.bf16.mxu0 %v751
      %991 = vmatpush2.bf16.msra.mxu0 %v750
      %992 = vmatprep.subr.bf16.mxu0 %v749
      %993 = vmatpush2.bf16.msra.mxu0 %v748
      %994 = vmatprep.subr.bf16.mxu0 %v747
      %995 = vmatpush2.bf16.msra.mxu0 %v746
      %996 = vmatprep.subr.bf16.mxu0 %v745
      %997 = vmatpush2.bf16.msra.mxu0 %v744
      %998 = vmatprep.subr.bf16.mxu0 %v743
      %999 = vmatpush2.bf16.msra.mxu0 %v742
      %1000 = vmatprep.mubr.bf16.mxu0 %v317
      %1001 = vmatmul.mubr.bf16.gmra.mxu0 %v316
      %v1002 = vpop.f32.mrf.mxu0
      %v1003 = vadd.f32 %v962, %v1002
      %v1004 = vpop.f32.mrf.mxu0
      %v1005 = vadd.f32 %v964, %v1004
      %v1006 = vpop.f32.mrf.mxu0
      %v1007 = vpop.f32.mrf.mxu0
      %1008 = vdwg.mxu0
      %1009 = vmatprep.subr.bf16.mxu0 %v773
      %1010 = vmatpush1.bf16.msra.mxu0 %v772
      %1011 = vmatprep.subr.bf16.mxu0 %v771
      %1012 = vmatpush1.bf16.msra.mxu0 %v770
      %1013 = vmatprep.subr.bf16.mxu0 %v769
      %1014 = vmatpush1.bf16.msra.mxu0 %v768
      %1015 = vmatprep.subr.bf16.mxu0 %v767
      %1016 = vmatpush1.bf16.msra.mxu0 %v766
      %1017 = vmatprep.subr.bf16.mxu0 %v765
      %1018 = vmatpush1.bf16.msra.mxu0 %v764
      %1019 = vmatprep.subr.bf16.mxu0 %v763
      %1020 = vmatpush1.bf16.msra.mxu0 %v762
      %1021 = vmatprep.subr.bf16.mxu0 %v761
      %1022 = vmatpush1.bf16.msra.mxu0 %v760
      %1023 = vmatprep.subr.bf16.mxu0 %v759
      %1024 = vmatpush1.bf16.msra.mxu0 %v758
      %1025 = vmatprep.subr.bf16.mxu0 0
      %1026 = vmatpush2.bf16.msra.mxu0 0
      %1027 = vmatprep.subr.bf16.mxu0 0
      %1028 = vmatpush2.bf16.msra.mxu0 0
      %1029 = vmatprep.subr.bf16.mxu0 0
      %1030 = vmatpush2.bf16.msra.mxu0 0
      %1031 = vmatprep.subr.bf16.mxu0 0
      %1032 = vmatpush2.bf16.msra.mxu0 0
      %1033 = vmatprep.subr.bf16.mxu0 0
      %1034 = vmatpush2.bf16.msra.mxu0 0
      %1035 = vmatprep.subr.bf16.mxu0 0
      %1036 = vmatpush2.bf16.msra.mxu0 0
      %1037 = vmatprep.subr.bf16.mxu0 0
      %1038 = vmatpush2.bf16.msra.mxu0 0
      %1039 = vmatprep.subr.bf16.mxu0 0
      %1040 = vmatpush2.bf16.msra.mxu0 0
      %1041 = vmatprep.mubr.bf16.mxu0 0
      %1042 = vmatmul.mubr.bf16.gmra.mxu0 %v318
      %v1043 = vpop.f32.mrf.mxu0
      %v1044 = vadd.f32 %v1003, %v1043
      %v1045 = vpop.f32.mrf.mxu0
      %v1046 = vadd.f32 %v1005, %v1045
      %v1047 = vpop.f32.mrf.mxu0
      %v1048 = vpop.f32.mrf.mxu0
      %1049 = vdwg.mxu0
      %v1050 = vpack.c.bf16 %v1044, %v1044
      %v1051 = vpack.c.bf16 %v1046, %v1046
      %v1054 = vunpack.c.l.b16 %v1050
      %v1055 = vunpack.c.l.b16 %v1051
      %v1056 = vpack.c.b16 %v1055, %v1054
      %1058 = vst [vmem:[%s178] sm:$0xff] %v1056
      %v1059 = vrot.slane %v1044, 4
      %v1060 = vadd.f32 %v1044, %v1059
      %v1061 = vrot.slane %v1060, 2
      %v1062 = vadd.f32 %v1060, %v1061
      %v1063 = vrot.slane %v1062, 1
      %v1064 = vadd.f32 %v1062, %v1063
      %v1065 = vrot.slane %v1046, 4
      %v1066 = vadd.f32 %v1046, %v1065
      %v1067 = vrot.slane %v1066, 2
      %v1068 = vadd.f32 %v1066, %v1067
      %v1069 = vrot.slane %v1068, 1
      %v1070 = vadd.f32 %v1068, %v1069
      %v1073 = vcombine.low %v1064, %v1070
      %v1075 = vunpack.c.l.s4 1966171168
      %v1076 = vunpack.c.0.s8 %v1075
      %v1077 = vlaneseq
      %v1078 = vshrl.u32 %v1077, 7
      %v1079 = vsub.s32 %v1076, %v1078
      %v1080 = vrot.slane %v1073, %v1079
      %v1082 = vunpack.c.l.s4 1966171168
      %v1083 = vunpack.c.0.s8 %v1082
      %v1084 = vlaneseq
      %v1085 = vshrl.u32 %v1084, 7
      %v1086 = vsub.s32 %v1083, %v1085
      %v1087 = vrot.slane %v1080, %v1086
      %v1089 = vlaneseq
      %vm1090 = vcmp.ge.s32.totalorder %v1089, 0
      %vm1091 = vcmp.lt.s32.totalorder %v1089, 256
      %vm1092 = vmand %vm1090, %vm1091
      %1093 = vst.msk [vmem:[%s183] ss:$8 sm:$0x3] %vm1092, %v1087
      %1094 = vst.msk [vmem:[%s183] ss:$8 sm:$0x0] %vm1092, %v1087
      %v1095 = vmul.f32 %v1044, %v1044
      %v1096 = vmul.f32 %v1046, %v1046
      %v1097 = vrot.slane %v1095, 4
      %v1098 = vadd.f32 %v1095, %v1097
      %v1099 = vrot.slane %v1098, 2
      %v1100 = vadd.f32 %v1098, %v1099
      %v1101 = vrot.slane %v1100, 1
      %v1102 = vadd.f32 %v1100, %v1101
      %v1103 = vrot.slane %v1096, 4
      %v1104 = vadd.f32 %v1096, %v1103
      %v1105 = vrot.slane %v1104, 2
      %v1106 = vadd.f32 %v1104, %v1105
      %v1107 = vrot.slane %v1106, 1
      %v1108 = vadd.f32 %v1106, %v1107
      %v1111 = vcombine.low %v1102, %v1108
      %v1113 = vunpack.c.l.s4 1966171168
      %v1114 = vunpack.c.0.s8 %v1113
      %v1115 = vlaneseq
      %v1116 = vshrl.u32 %v1115, 7
      %v1117 = vsub.s32 %v1114, %v1116
      %v1118 = vrot.slane %v1111, %v1117
      %v1120 = vunpack.c.l.s4 1966171168
      %v1121 = vunpack.c.0.s8 %v1120
      %v1122 = vlaneseq
      %v1123 = vshrl.u32 %v1122, 7
      %v1124 = vsub.s32 %v1121, %v1123
      %v1125 = vrot.slane %v1118, %v1124
      %s1127 = scalar_lea.vmem %s183, 1
      %1128 = vst.msk [vmem:[%s1127] ss:$8 sm:$0x3] %vm1092, %v1125
      %1129 = vst.msk [vmem:[%s1127] ss:$8 sm:$0x0] %vm1092, %v1125
      %p1130 = scmp.lt.s32.totalorder %s15, 1
      %s1131 = scalar_select %p1130, %s15, 1
      %s1132 = smul.addr %s1131, 2
      %s1133 = smul.addr %s1132, 4
      %s1134 = scalar_lea.vmem %s2, %s1133
      %p1135 = scmp.lt.s32.totalorder %s15, 1
      %s1136 = scalar_select %p1135, %s15, 1
      %s1137 = smul.addr %s1136, 2
      %s1138 = smul.addr %s1137, 8
      %s1139 = scalar_lea.vmem %s3, %s1138
      // Predicated region
      $region29: #{net_forward.2} parent=27 // pred_check
        %p1140 = pneg %p80
      $region30: #{net_forward.2} parent=27 // pred_check_branch
        %1142 = sbr.rel (%p1140) target = $region32
      $region31: #{net_forward.2} parent=27 // pred_region
        _
      $region32: #{net_forward.2} parent=27 // pred_fallthru
        _
      // Predicated region
      $region33: #{net_forward.2} parent=27 // pred_check
        %p1143 = pneg %p106
      $region34: #{net_forward.2} parent=27 // pred_check_branch
        %1145 = sbr.rel (%p1143) target = $region36
      $region35: #{net_forward.2} parent=27 // pred_region
        _
      $region36: #{net_forward.2} parent=27 // pred_fallthru
        _
    $region28: #{net_forward.2} parent=5 // pred_fallthru
      _
    %p1146 = scmp.le.s32.totalorder 2, %s10
    // Predicated region
    $region37: #{net_forward.2} parent=5 // pred_check
      %p1147 = pneg %p1146
    $region38: #{net_forward.2} parent=5 // pred_check_branch
      %1149 = sbr.rel (%p1147) target = $region40
    $region39: #{net_forward.2} parent=5 // pred_region
      %s1150 = ssub.s32 %s10, 2
      // Predicated region
      $region41: #{net_forward.2} parent=39 // pred_check
        %p1151 = pneg %p86
      $region42: #{net_forward.2} parent=39 // pred_check_branch
        %1153 = sbr.rel (%p1151) target = $region44
      $region43: #{net_forward.2} parent=39 // pred_region
        %p1154 = scmp.lt.s32.totalorder %s16, 1
        %s1155 = scalar_select %p1154, %s16, 1
        %s1156 = smul.addr %s1155, 2
        %s1157 = smul.addr %s1156, 4
        %s1158 = scalar_lea.vmem %s2, %s1157
      $region44: #{net_forward.2} parent=39 // pred_fallthru
        _
      // Predicated region
      $region45: #{net_forward.2} parent=39 // pred_check
        %p1159 = pneg %p112
      $region46: #{net_forward.2} parent=39 // pred_check_branch
        %1161 = sbr.rel (%p1159) target = $region48
      $region47: #{net_forward.2} parent=39 // pred_region
        %p1162 = scmp.lt.s32.totalorder %s16, 1
        %s1163 = scalar_select %p1162, %s16, 1
        %s1164 = smul.addr %s1163, 2
        %s1165 = smul.addr %s1164, 8
        %s1166 = scalar_lea.vmem %s3, %s1165
      $region48: #{net_forward.2} parent=39 // pred_fallthru
        _
    $region40: #{net_forward.2} parent=5 // pred_fallthru
      _
  $region6: #{net_forward.2} parent=0 // loop_footer
    %s14 = sadd.s32 1, %s10
  $region7: #{net_forward.2} parent=0 // loop_footer_branch
    %9 = sbr.rel target = $region3
  $region8: #{net_forward.2} parent=0 // loop_exit
    _

</llo_original>
